<compile_context>
chip_gen: v7x
topology: tpu7x:2x2x1
jax: 0.10.0
libtpu: 0.0.40
codegen_flags: <defaults>
</compile_context>

<pallas_src>
import math
import functools

import jax
import jax.numpy as jnp
from jax.experimental import pallas as pl
from jax.experimental.pallas import tpu as pltpu


# ---------------------------------------------------------------------------
# Fused (LayerNorm) + matmul + bias (+relu) (+residual) kernel
# ---------------------------------------------------------------------------

def _make_linear_kernel(use_ln, activation, use_residual, eps=1e-5):
    def kernel(*refs):
        if use_ln:
            x_ref, g_ref, b_ref = refs[0], refs[1], refs[2]
            idx = 3
        else:
            x_ref = refs[0]
            idx = 1
        w_ref, bias_ref = refs[idx], refs[idx + 1]
        idx += 2
        r_ref = refs[idx] if use_residual else None
        o_ref = refs[-1]

        x = x_ref[...].astype(jnp.float32)
        if use_ln:
            # PyTorch LayerNorm semantics: biased variance, eps inside rsqrt.
            mean = jnp.mean(x, axis=-1, keepdims=True)
            var = jnp.mean(jnp.square(x - mean), axis=-1, keepdims=True)
            x = (x - mean) * jax.lax.rsqrt(var + eps)
            x = x * g_ref[...] + b_ref[...]

        # Weight ref is already bf16 (pre-cast in the wrapper).
        acc = jnp.dot(x.astype(jnp.bfloat16), w_ref[...],
                      preferred_element_type=jnp.float32)
        acc = acc + bias_ref[...]
        if activation == "relu":
            acc = jnp.maximum(acc, 0.0)
        if use_residual:
            acc = acc + r_ref[...].astype(jnp.float32)
        o_ref[...] = acc.astype(o_ref.dtype)

    return kernel


def fused_linear(x2, w, bias, *, ln=None, activation=None, residual=None,
                 tm=256, tn=512):
    """out = act(LN?(x2) @ w + bias) (+ residual).

    x2: (M, K)  w: (K, N) pre-transposed  bias: (N,)  residual: (M, N)
    ln: optional (gamma, beta) each (K,) — fused row-wise LayerNorm on x2.
    """
    M, K = x2.shape
    _, N = w.shape
    tm = M if M <= tm else tm      # full rows or 256 (multiple of 8)
    tn = N if N <= tn else tn      # full lanes or 512 (multiple of 128)
    grid = (pl.cdiv(M, tm), pl.cdiv(N, tn))

    in_specs = [pl.BlockSpec((tm, K), lambda i, j: (i, 0))]
    args = [x2]
    if ln is not None:
        g, b = ln
        in_specs += [pl.BlockSpec((1, K), lambda i, j: (0, 0)),
                     pl.BlockSpec((1, K), lambda i, j: (0, 0))]
        args += [g.reshape(1, K), b.reshape(1, K)]
    in_specs += [pl.BlockSpec((K, tn), lambda i, j: (0, j)),
                 pl.BlockSpec((1, tn), lambda i, j: (0, j))]
    args += [w.astype(jnp.bfloat16), bias.reshape(1, N)]
    if residual is not None:
        in_specs.append(pl.BlockSpec((tm, tn), lambda i, j: (i, j)))
        args.append(residual)

    kernel = _make_linear_kernel(ln is not None, activation, residual is not None)
    return pl.pallas_call(
        kernel,
        out_shape=jax.ShapeDtypeStruct((M, N), x2.dtype),
        grid=grid,
        in_specs=in_specs,
        out_specs=pl.BlockSpec((tm, tn), lambda i, j: (i, j)),
        compiler_params=pltpu.CompilerParams(
            dimension_semantics=("parallel", "parallel")),
    )(*args)


# ---------------------------------------------------------------------------
# Attention kernels (heads packed in lane dim; out-proj + residual fused)
# ---------------------------------------------------------------------------

def _attention_core(q, k, v, num_heads, scale):
    """q: (Lq, D), k/v: (Lk, D) f32. Returns (Lq, D) f32."""
    _, D = q.shape
    dh = D // num_heads
    outs = []
    for h in range(num_heads):                      # static unroll over heads
        sl = slice(h * dh, (h + 1) * dh)
        qh = (q[:, sl] * scale).astype(jnp.bfloat16)   # fold scale into Q
        kh = k[:, sl].astype(jnp.bfloat16)
        vh = v[:, sl].astype(jnp.bfloat16)
        # Contract on d_head directly — MXU consumes the transposed operand,
        # no explicit XLU transpose of k.
        s = jax.lax.dot_general(qh, kh, (((1,), (1,)), ((), ())),
                                preferred_element_type=jnp.float32)
        s = s - jnp.max(s, axis=-1, keepdims=True)
        p = jnp.exp(s)
        inv = pl.reciprocal(jnp.sum(p, axis=-1, keepdims=True), approx=True)
        p = p * inv
        outs.append(jax.lax.dot_general(p.astype(jnp.bfloat16), vh,
                                        (((1,), (0,)), ((), ())),
                                        preferred_element_type=jnp.float32))
    return jnp.concatenate(outs, axis=-1)           # (Lq, D), lane-dense


def _make_self_attn_kernel(num_heads, scale):
    def kernel(qkv_ref, wo_ref, bo_ref, res_ref, o_ref):
        D = qkv_ref.shape[-1] // 3
        qkv = qkv_ref[0].astype(jnp.float32)        # (Lq, 3D)
        attn = _attention_core(qkv[:, :D], qkv[:, D:2 * D], qkv[:, 2 * D:],
                               num_heads, scale)
        out = jnp.dot(attn.astype(jnp.bfloat16), wo_ref[...],
                      preferred_element_type=jnp.float32)
        out = out + bo_ref[...] + res_ref[0].astype(jnp.float32)
        o_ref[0] = out.astype(o_ref.dtype)
    return kernel


def _make_cross_attn_kernel(num_heads, scale):
    def kernel(q_ref, kv_ref, wo_ref, bo_ref, res_ref, o_ref):
        D = q_ref.shape[-1]
        q = q_ref[0].astype(jnp.float32)            # (Lq, D)
        kv = kv_ref[0].astype(jnp.float32)          # (Lk, 2D)
        attn = _attention_core(q, kv[:, :D], kv[:, D:], num_heads, scale)
        out = jnp.dot(attn.astype(jnp.bfloat16), wo_ref[...],
                      preferred_element_type=jnp.float32)
        out = out + bo_ref[...] + res_ref[0].astype(jnp.float32)
        o_ref[0] = out.astype(o_ref.dtype)
    return kernel


def self_attention(qkv, wo, bo, residual, num_heads):
    """qkv: (B, Lq, 3D) packed projections; wo: (D, D); residual: (B, Lq, D).

    Returns residual + (softmax(QK^T/sqrt(dh)) V) @ wo + bo, shape (B, Lq, D)."""
    B, Lq, D3 = qkv.shape
    D = D3 // 3
    scale = 1.0 / math.sqrt(D // num_heads)
    kernel = _make_self_attn_kernel(num_heads, scale)
    return pl.pallas_call(
        kernel,
        out_shape=jax.ShapeDtypeStruct((B, Lq, D), qkv.dtype),
        grid=(B,),
        in_specs=[pl.BlockSpec((1, Lq, D3), lambda b: (b, 0, 0)),
                  pl.BlockSpec((D, D), lambda b: (0, 0)),
                  pl.BlockSpec((1, D), lambda b: (0, 0)),
                  pl.BlockSpec((1, Lq, D), lambda b: (b, 0, 0))],
        out_specs=pl.BlockSpec((1, Lq, D), lambda b: (b, 0, 0)),
        compiler_params=pltpu.CompilerParams(dimension_semantics=("parallel",)),
    )(qkv, wo.astype(jnp.bfloat16), bo.reshape(1, D), residual)


def cross_attention(q, kv, wo, bo, residual, num_heads):
    """q: (B, Lq, D), kv: (B, Lk, 2D) packed K/V; out-proj + residual fused."""
    B, Lq, D = q.shape
    _, Lk, _ = kv.shape
    scale = 1.0 / math.sqrt(D // num_heads)
    kernel = _make_cross_attn_kernel(num_heads, scale)
    return pl.pallas_call(
        kernel,
        out_shape=jax.ShapeDtypeStruct((B, Lq, D), q.dtype),
        grid=(B,),
        in_specs=[pl.BlockSpec((1, Lq, D), lambda b: (b, 0, 0)),
                  pl.BlockSpec((1, Lk, 2 * D), lambda b: (b, 0, 0)),
                  pl.BlockSpec((D, D), lambda b: (0, 0)),
                  pl.BlockSpec((1, D), lambda b: (0, 0)),
                  pl.BlockSpec((1, Lq, D), lambda b: (b, 0, 0))],
        out_specs=pl.BlockSpec((1, Lq, D), lambda b: (b, 0, 0)),
        compiler_params=pltpu.CompilerParams(dimension_semantics=("parallel",)),
    )(q, kv, wo.astype(jnp.bfloat16), bo.reshape(1, D), residual)


# ---------------------------------------------------------------------------
# DecoderLayer forward
# ---------------------------------------------------------------------------

def decoder_layer(x, seq, params, num_heads):
    B, Lq, D = x.shape
    _, Lk, _ = seq.shape
    x2 = x.reshape(B * Lq, D)
    seq2 = seq.reshape(B * Lk, D)

    # --- sublayer 0: x = x + OutProj(SelfAttn(LN0(x))) -----------------------
    p, ln = params["self_attn"], params["ln0"]
    qkv = fused_linear(x2, p["wqkv"], p["bqkv"], ln=(ln["g"], ln["b"]))
    x3 = self_attention(qkv.reshape(B, Lq, 3 * D), p["wo"], p["bo"],
                        x2.reshape(B, Lq, D), num_heads)
    x2 = x3.reshape(B * Lq, D)

    # --- sublayer 1: x = x + OutProj(SeqAttn(LN1(x), seq, seq)) --------------
    p, ln = params["seq_attn"], params["ln1"]
    q = fused_linear(x2, p["wq"], p["bq"], ln=(ln["g"], ln["b"]))
    kv = fused_linear(seq2, p["wkv"], p["bkv"])   # K/V from raw seq (reference passes s un-normed)
    x3 = cross_attention(q.reshape(B, Lq, D), kv.reshape(B, Lk, 2 * D),
                         p["wo"], p["bo"], x2.reshape(B, Lq, D), num_heads)
    x2 = x3.reshape(B * Lq, D)

    # --- sublayer 2: x = x + FFN(LN2(x)) -------------------------------------
    p, ln = params["ff"], params["ln2"]
    h = fused_linear(x2, p["w1"], p["b1"], ln=(ln["g"], ln["b"]), activation="relu")
    x2 = fused_linear(h, p["w2"], p["b2"], residual=x2)

    return x2.reshape(B, Lq, D)


# ---------------------------------------------------------------------------
# Deterministic parameter initialization (weights stored pre-transposed: (in, out))
# ---------------------------------------------------------------------------

def init_params(key, D, Dff):
    ks = jax.random.split(key, 8)

    def dense(k, shape):
        return jax.random.normal(k, shape, jnp.float32) * 0.02

    def ln():
        return {"g": jnp.ones((D,), jnp.float32), "b": jnp.zeros((D,), jnp.float32)}

    return {
        "self_attn": {
            "wqkv": dense(ks[0], (D, 3 * D)),     # fused, pre-transposed in_proj
            "bqkv": jnp.zeros((3 * D,), jnp.float32),
            "wo": dense(ks[1], (D, D)),           # pre-transposed out_proj
            "bo": jnp.zeros((D,), jnp.float32),
        },
        "seq_attn": {
            "wq": dense(ks[2], (D, D)),
            "bq": jnp.zeros((D,), jnp.float32),
            "wkv": dense(ks[3], (D, 2 * D)),      # fused K/V projection
            "bkv": jnp.zeros((2 * D,), jnp.float32),
            "wo": dense(ks[6], (D, D)),
            "bo": jnp.zeros((D,), jnp.float32),
        },
        "ff": {
            "w1": dense(ks[4], (D, Dff)),
            "b1": jnp.zeros((Dff,), jnp.float32),
            "w2": dense(ks[5], (Dff, D)),
            "b2": jnp.zeros((D,), jnp.float32),
        },
        "ln0": ln(), "ln1": ln(), "ln2": ln(),
    }


# ---------------------------------------------------------------------------
# Main
# ---------------------------------------------------------------------------

if __name__ == "__main__":
    B, L, S, D, H, Dff = 2, 8, 8, 32, 4, 64

    key = jax.random.PRNGKey(0)
    kx, kseq, kp = jax.random.split(key, 3)
    x = jax.random.normal(kx, (B, L, D), jnp.float32)
    seq = jax.random.normal(kseq, (B, S, D), jnp.float32)
    params = init_params(kp, D, Dff)

    fwd = jax.jit(functools.partial(decoder_layer, num_heads=H))
    out = jax.block_until_ready(fwd(x, seq, params))

    assert out.shape == (B, L, D) and out.dtype == jnp.float32
    assert bool(jnp.all(jnp.isfinite(out)))
    print("KERNEL_OK")
</pallas_src>

<mosaic_0001>
module attributes {stable_mosaic.version = 11 : i64} {
  func.func @kernel(%arg0: i32, %arg1: memref<1x8x96xf32, #tpu.memory_space<vmem>>, %arg2: memref<32x32xbf16, #tpu.memory_space<vmem>>, %arg3: memref<1x32xf32, #tpu.memory_space<vmem>>, %arg4: memref<1x8x32xf32, #tpu.memory_space<vmem>>, %arg5: memref<1x8x32xf32, #tpu.memory_space<vmem>>) attributes {dimension_semantics = [#tpu.dimension_semantics<parallel>], iteration_bounds = array<i64: 2>, scalar_prefetch = 0 : i64, scratch_operands = 0 : i64, tpu.core_type = #tpu.core_type<tc>, window_params = [{transform_indices = @transform_0, window_bounds = array<i64: 1, 8, 96>}, {pipeline_mode = #tpu.pipeline_mode<synchronous>, transform_indices = @transform_1, window_bounds = array<i64: 32, 32>}, {pipeline_mode = #tpu.pipeline_mode<synchronous>, transform_indices = @transform_2, window_bounds = array<i64: 1, 32>}, {transform_indices = @transform_3, window_bounds = array<i64: 1, 8, 32>}, {transform_indices = @transform_4, window_bounds = array<i64: 1, 8, 32>}]} {
    %c0 = arith.constant 0 : index
    %c0_0 = arith.constant 0 : index
    %c0_1 = arith.constant 0 : index
    %0 = vector.load %arg1[%c0, %c0_0, %c0_1] : memref<1x8x96xf32, #tpu.memory_space<vmem>>, vector<1x8x96xf32>
    %1 = vector.shape_cast %0 : vector<1x8x96xf32> to vector<8x96xf32>
    %2 = vector.extract_strided_slice %1 {offsets = [0, 0], sizes = [8, 32], strides = [1, 1]} : vector<8x96xf32> to vector<8x32xf32>
    %3 = vector.extract_strided_slice %1 {offsets = [0, 32], sizes = [8, 32], strides = [1, 1]} : vector<8x96xf32> to vector<8x32xf32>
    %4 = vector.extract_strided_slice %1 {offsets = [0, 64], sizes = [8, 32], strides = [1, 1]} : vector<8x96xf32> to vector<8x32xf32>
    %5 = vector.extract_strided_slice %2 {offsets = [0, 0], sizes = [8, 8], strides = [1, 1]} : vector<8x32xf32> to vector<8x8xf32>
    %cst = arith.constant 0.353553385 : f32
    %6 = vector.broadcast %cst : f32 to vector<8x8xf32>
    %7 = arith.mulf %5, %6 : vector<8x8xf32>
    %8 = arith.truncf %7 : vector<8x8xf32> to vector<8x8xbf16>
    %9 = vector.extract_strided_slice %3 {offsets = [0, 0], sizes = [8, 8], strides = [1, 1]} : vector<8x32xf32> to vector<8x8xf32>
    %10 = arith.truncf %9 : vector<8x8xf32> to vector<8x8xbf16>
    %11 = vector.extract_strided_slice %4 {offsets = [0, 0], sizes = [8, 8], strides = [1, 1]} : vector<8x32xf32> to vector<8x8xf32>
    %12 = arith.truncf %11 : vector<8x8xf32> to vector<8x8xbf16>
    %cst_2 = arith.constant dense<0.000000e+00> : vector<8x8xf32>
    %13 = tpu.matmul %8, %10, %cst_2 {dimension_numbers = #tpu.dot_dimension_numbers<[1], [1], [0], [0], [0, 0, 1, 0], [], []>} : vector<8x8xbf16>, vector<8x8xbf16>, vector<8x8xf32> -> vector<8x8xf32>
    %cst_3 = arith.constant dense<0xFF800000> : vector<8xf32>
    %14 = vector.multi_reduction <maximumf>, %13, %cst_3 [1] : vector<8x8xf32> to vector<8xf32>
    %15 = vector.shape_cast %14 : vector<8xf32> to vector<8x1xf32>
    %16 = vector.broadcast %15 : vector<8x1xf32> to vector<8x8xf32>
    %17 = arith.subf %13, %16 : vector<8x8xf32>
    %18 = math.exp %17 : vector<8x8xf32>
    %cst_4 = arith.constant dense<0.000000e+00> : vector<8xf32>
    %19 = vector.multi_reduction <add>, %18, %cst_4 [1] : vector<8x8xf32> to vector<8xf32>
    %20 = vector.shape_cast %19 : vector<8xf32> to vector<8x1xf32>
    %21 = tpu.reciprocal %20 {approx = true} : vector<8x1xf32> -> vector<8x1xf32>
    %22 = vector.broadcast %21 : vector<8x1xf32> to vector<8x8xf32>
    %23 = arith.mulf %18, %22 : vector<8x8xf32>
    %24 = arith.truncf %23 : vector<8x8xf32> to vector<8x8xbf16>
    %cst_5 = arith.constant dense<0.000000e+00> : vector<8x8xf32>
    %25 = tpu.matmul %24, %12, %cst_5 {dimension_numbers = #tpu.dot_dimension_numbers<[1], [0], [0], [1], [0, 0, 1, 1], [], []>} : vector<8x8xbf16>, vector<8x8xbf16>, vector<8x8xf32> -> vector<8x8xf32>
    %26 = vector.extract_strided_slice %2 {offsets = [0, 8], sizes = [8, 8], strides = [1, 1]} : vector<8x32xf32> to vector<8x8xf32>
    %cst_6 = arith.constant 0.353553385 : f32
    %27 = vector.broadcast %cst_6 : f32 to vector<8x8xf32>
    %28 = arith.mulf %26, %27 : vector<8x8xf32>
    %29 = arith.truncf %28 : vector<8x8xf32> to vector<8x8xbf16>
    %30 = vector.extract_strided_slice %3 {offsets = [0, 8], sizes = [8, 8], strides = [1, 1]} : vector<8x32xf32> to vector<8x8xf32>
    %31 = arith.truncf %30 : vector<8x8xf32> to vector<8x8xbf16>
    %32 = vector.extract_strided_slice %4 {offsets = [0, 8], sizes = [8, 8], strides = [1, 1]} : vector<8x32xf32> to vector<8x8xf32>
    %33 = arith.truncf %32 : vector<8x8xf32> to vector<8x8xbf16>
    %cst_7 = arith.constant dense<0.000000e+00> : vector<8x8xf32>
    %34 = tpu.matmul %29, %31, %cst_7 {dimension_numbers = #tpu.dot_dimension_numbers<[1], [1], [0], [0], [0, 0, 1, 0], [], []>} : vector<8x8xbf16>, vector<8x8xbf16>, vector<8x8xf32> -> vector<8x8xf32>
    %cst_8 = arith.constant dense<0xFF800000> : vector<8xf32>
    %35 = vector.multi_reduction <maximumf>, %34, %cst_8 [1] : vector<8x8xf32> to vector<8xf32>
    %36 = vector.shape_cast %35 : vector<8xf32> to vector<8x1xf32>
    %37 = vector.broadcast %36 : vector<8x1xf32> to vector<8x8xf32>
    %38 = arith.subf %34, %37 : vector<8x8xf32>
    %39 = math.exp %38 : vector<8x8xf32>
    %cst_9 = arith.constant dense<0.000000e+00> : vector<8xf32>
    %40 = vector.multi_reduction <add>, %39, %cst_9 [1] : vector<8x8xf32> to vector<8xf32>
    %41 = vector.shape_cast %40 : vector<8xf32> to vector<8x1xf32>
    %42 = tpu.reciprocal %41 {approx = true} : vector<8x1xf32> -> vector<8x1xf32>
    %43 = vector.broadcast %42 : vector<8x1xf32> to vector<8x8xf32>
    %44 = arith.mulf %39, %43 : vector<8x8xf32>
    %45 = arith.truncf %44 : vector<8x8xf32> to vector<8x8xbf16>
    %cst_10 = arith.constant dense<0.000000e+00> : vector<8x8xf32>
    %46 = tpu.matmul %45, %33, %cst_10 {dimension_numbers = #tpu.dot_dimension_numbers<[1], [0], [0], [1], [0, 0, 1, 1], [], []>} : vector<8x8xbf16>, vector<8x8xbf16>, vector<8x8xf32> -> vector<8x8xf32>
    %47 = vector.extract_strided_slice %2 {offsets = [0, 16], sizes = [8, 8], strides = [1, 1]} : vector<8x32xf32> to vector<8x8xf32>
    %cst_11 = arith.constant 0.353553385 : f32
    %48 = vector.broadcast %cst_11 : f32 to vector<8x8xf32>
    %49 = arith.mulf %47, %48 : vector<8x8xf32>
    %50 = arith.truncf %49 : vector<8x8xf32> to vector<8x8xbf16>
    %51 = vector.extract_strided_slice %3 {offsets = [0, 16], sizes = [8, 8], strides = [1, 1]} : vector<8x32xf32> to vector<8x8xf32>
    %52 = arith.truncf %51 : vector<8x8xf32> to vector<8x8xbf16>
    %53 = vector.extract_strided_slice %4 {offsets = [0, 16], sizes = [8, 8], strides = [1, 1]} : vector<8x32xf32> to vector<8x8xf32>
    %54 = arith.truncf %53 : vector<8x8xf32> to vector<8x8xbf16>
    %cst_12 = arith.constant dense<0.000000e+00> : vector<8x8xf32>
    %55 = tpu.matmul %50, %52, %cst_12 {dimension_numbers = #tpu.dot_dimension_numbers<[1], [1], [0], [0], [0, 0, 1, 0], [], []>} : vector<8x8xbf16>, vector<8x8xbf16>, vector<8x8xf32> -> vector<8x8xf32>
    %cst_13 = arith.constant dense<0xFF800000> : vector<8xf32>
    %56 = vector.multi_reduction <maximumf>, %55, %cst_13 [1] : vector<8x8xf32> to vector<8xf32>
    %57 = vector.shape_cast %56 : vector<8xf32> to vector<8x1xf32>
    %58 = vector.broadcast %57 : vector<8x1xf32> to vector<8x8xf32>
    %59 = arith.subf %55, %58 : vector<8x8xf32>
    %60 = math.exp %59 : vector<8x8xf32>
    %cst_14 = arith.constant dense<0.000000e+00> : vector<8xf32>
    %61 = vector.multi_reduction <add>, %60, %cst_14 [1] : vector<8x8xf32> to vector<8xf32>
    %62 = vector.shape_cast %61 : vector<8xf32> to vector<8x1xf32>
    %63 = tpu.reciprocal %62 {approx = true} : vector<8x1xf32> -> vector<8x1xf32>
    %64 = vector.broadcast %63 : vector<8x1xf32> to vector<8x8xf32>
    %65 = arith.mulf %60, %64 : vector<8x8xf32>
    %66 = arith.truncf %65 : vector<8x8xf32> to vector<8x8xbf16>
    %cst_15 = arith.constant dense<0.000000e+00> : vector<8x8xf32>
    %67 = tpu.matmul %66, %54, %cst_15 {dimension_numbers = #tpu.dot_dimension_numbers<[1], [0], [0], [1], [0, 0, 1, 1], [], []>} : vector<8x8xbf16>, vector<8x8xbf16>, vector<8x8xf32> -> vector<8x8xf32>
    %68 = vector.extract_strided_slice %2 {offsets = [0, 24], sizes = [8, 8], strides = [1, 1]} : vector<8x32xf32> to vector<8x8xf32>
    %cst_16 = arith.constant 0.353553385 : f32
    %69 = vector.broadcast %cst_16 : f32 to vector<8x8xf32>
    %70 = arith.mulf %68, %69 : vector<8x8xf32>
    %71 = arith.truncf %70 : vector<8x8xf32> to vector<8x8xbf16>
    %72 = vector.extract_strided_slice %3 {offsets = [0, 24], sizes = [8, 8], strides = [1, 1]} : vector<8x32xf32> to vector<8x8xf32>
    %73 = arith.truncf %72 : vector<8x8xf32> to vector<8x8xbf16>
    %74 = vector.extract_strided_slice %4 {offsets = [0, 24], sizes = [8, 8], strides = [1, 1]} : vector<8x32xf32> to vector<8x8xf32>
    %75 = arith.truncf %74 : vector<8x8xf32> to vector<8x8xbf16>
    %cst_17 = arith.constant dense<0.000000e+00> : vector<8x8xf32>
    %76 = tpu.matmul %71, %73, %cst_17 {dimension_numbers = #tpu.dot_dimension_numbers<[1], [1], [0], [0], [0, 0, 1, 0], [], []>} : vector<8x8xbf16>, vector<8x8xbf16>, vector<8x8xf32> -> vector<8x8xf32>
    %cst_18 = arith.constant dense<0xFF800000> : vector<8xf32>
    %77 = vector.multi_reduction <maximumf>, %76, %cst_18 [1] : vector<8x8xf32> to vector<8xf32>
    %78 = vector.shape_cast %77 : vector<8xf32> to vector<8x1xf32>
    %79 = vector.broadcast %78 : vector<8x1xf32> to vector<8x8xf32>
    %80 = arith.subf %76, %79 : vector<8x8xf32>
    %81 = math.exp %80 : vector<8x8xf32>
    %cst_19 = arith.constant dense<0.000000e+00> : vector<8xf32>
    %82 = vector.multi_reduction <add>, %81, %cst_19 [1] : vector<8x8xf32> to vector<8xf32>
    %83 = vector.shape_cast %82 : vector<8xf32> to vector<8x1xf32>
    %84 = tpu.reciprocal %83 {approx = true} : vector<8x1xf32> -> vector<8x1xf32>
    %85 = vector.broadcast %84 : vector<8x1xf32> to vector<8x8xf32>
    %86 = arith.mulf %81, %85 : vector<8x8xf32>
    %87 = arith.truncf %86 : vector<8x8xf32> to vector<8x8xbf16>
    %cst_20 = arith.constant dense<0.000000e+00> : vector<8x8xf32>
    %88 = tpu.matmul %87, %75, %cst_20 {dimension_numbers = #tpu.dot_dimension_numbers<[1], [0], [0], [1], [0, 0, 1, 1], [], []>} : vector<8x8xbf16>, vector<8x8xbf16>, vector<8x8xf32> -> vector<8x8xf32>
    %89 = tpu.concatenate %25, %46, %67, %88 in 1 : vector<8x8xf32>, vector<8x8xf32>, vector<8x8xf32>, vector<8x8xf32> -> vector<8x32xf32>
    %90 = arith.truncf %89 : vector<8x32xf32> to vector<8x32xbf16>
    %c0_21 = arith.constant 0 : index
    %c0_22 = arith.constant 0 : index
    %91 = vector.load %arg2[%c0_21, %c0_22] : memref<32x32xbf16, #tpu.memory_space<vmem>>, vector<32x32xbf16>
    %cst_23 = arith.constant dense<0.000000e+00> : vector<8x32xf32>
    %92 = tpu.matmul %90, %91, %cst_23 {dimension_numbers = #tpu.dot_dimension_numbers<[1], [0], [0], [1], [0, 0, 1, 1], [], []>} : vector<8x32xbf16>, vector<32x32xbf16>, vector<8x32xf32> -> vector<8x32xf32>
    %c0_24 = arith.constant 0 : index
    %c0_25 = arith.constant 0 : index
    %93 = vector.load %arg3[%c0_24, %c0_25] : memref<1x32xf32, #tpu.memory_space<vmem>>, vector<1x32xf32>
    %94 = vector.broadcast %93 : vector<1x32xf32> to vector<8x32xf32>
    %95 = arith.addf %92, %94 : vector<8x32xf32>
    %c0_26 = arith.constant 0 : index
    %c0_27 = arith.constant 0 : index
    %c0_28 = arith.constant 0 : index
    %96 = vector.load %arg4[%c0_26, %c0_27, %c0_28] : memref<1x8x32xf32, #tpu.memory_space<vmem>>, vector<1x8x32xf32>
    %97 = vector.shape_cast %96 : vector<1x8x32xf32> to vector<8x32xf32>
    %98 = arith.addf %95, %97 : vector<8x32xf32>
    %c0_29 = arith.constant 0 : index
    %c0_30 = arith.constant 0 : index
    %c0_31 = arith.constant 0 : index
    %99 = vector.load %arg5[%c0_29, %c0_30, %c0_31] : memref<1x8x32xf32, #tpu.memory_space<vmem>>, vector<1x8x32xf32>
    %100 = vector.shape_cast %99 : vector<1x8x32xf32> to vector<8x32xf32>
    %101 = vector.shape_cast %98 : vector<8x32xf32> to vector<1x8x32xf32>
    tpu.vector_store %arg5[%c0_29, %c0_30, %c0_31], %101 {strides = array<i32>} : memref<1x8x32xf32, #tpu.memory_space<vmem>>, vector<1x8x32xf32>,
    return
  }
  func.func @transform_0(%arg0: i32) -> (i32, i32, i32) {
    %c0_i32 = arith.constant 0 : i32
    %c0_i32_0 = arith.constant 0 : i32
    %c0_i32_1 = arith.constant 0 : i32
    return %arg0, %c0_i32, %c0_i32_0 : i32, i32, i32
  }
  func.func @transform_1(%arg0: i32) -> (i32, i32) {
    %c0_i32 = arith.constant 0 : i32
    %c0_i32_0 = arith.constant 0 : i32
    %c0_i32_1 = arith.constant 0 : i32
    return %c0_i32, %c0_i32_0 : i32, i32
  }
  func.func @transform_2(%arg0: i32) -> (i32, i32) {
    %c0_i32 = arith.constant 0 : i32
    %c0_i32_0 = arith.constant 0 : i32
    %c0_i32_1 = arith.constant 0 : i32
    return %c0_i32, %c0_i32_0 : i32, i32
  }
  func.func @transform_3(%arg0: i32) -> (i32, i32, i32) {
    %c0_i32 = arith.constant 0 : i32
    %c0_i32_0 = arith.constant 0 : i32
    %c0_i32_1 = arith.constant 0 : i32
    return %arg0, %c0_i32, %c0_i32_0 : i32, i32, i32
  }
  func.func @transform_4(%arg0: i32) -> (i32, i32, i32) {
    %c0_i32 = arith.constant 0 : i32
    %c0_i32_0 = arith.constant 0 : i32
    %c0_i32_1 = arith.constant 0 : i32
    return %arg0, %c0_i32, %c0_i32_0 : i32, i32, i32
  }
}

module attributes {stable_mosaic.version = 11 : i64} {
  func.func @kernel(%arg0: i32, %arg1: i32, %arg2: memref<16x32xf32, #tpu.memory_space<vmem>>, %arg3: memref<1x32xf32, #tpu.memory_space<vmem>>, %arg4: memref<1x32xf32, #tpu.memory_space<vmem>>, %arg5: memref<32x96xbf16, #tpu.memory_space<vmem>>, %arg6: memref<1x96xf32, #tpu.memory_space<vmem>>, %arg7: memref<16x96xf32, #tpu.memory_space<vmem>>) attributes {dimension_semantics = [#tpu.dimension_semantics<parallel>, #tpu.dimension_semantics<parallel>], iteration_bounds = array<i64: 1, 1>, scalar_prefetch = 0 : i64, scratch_operands = 0 : i64, tpu.core_type = #tpu.core_type<tc>, window_params = [{transform_indices = @transform_0, window_bounds = array<i64: 16, 32>}, {pipeline_mode = #tpu.pipeline_mode<synchronous>, transform_indices = @transform_1, window_bounds = array<i64: 1, 32>}, {pipeline_mode = #tpu.pipeline_mode<synchronous>, transform_indices = @transform_2, window_bounds = array<i64: 1, 32>}, {transform_indices = @transform_3, window_bounds = array<i64: 32, 96>}, {transform_indices = @transform_4, window_bounds = array<i64: 1, 96>}, {transform_indices = @transform_5, window_bounds = array<i64: 16, 96>}]} {
    %c0 = arith.constant 0 : index
    %c0_0 = arith.constant 0 : index
    %0 = vector.load %arg2[%c0, %c0_0] : memref<16x32xf32, #tpu.memory_space<vmem>>, vector<16x32xf32>
    %cst = arith.constant dense<0.000000e+00> : vector<16xf32>
    %1 = vector.multi_reduction <add>, %0, %cst [1] : vector<16x32xf32> to vector<16xf32>
    %2 = vector.shape_cast %1 : vector<16xf32> to vector<16x1xf32>
    %cst_1 = arith.constant 3.200000e+01 : f32
    %3 = vector.broadcast %cst_1 : f32 to vector<16x1xf32>
    %4 = arith.divf %2, %3 : vector<16x1xf32>
    %5 = vector.broadcast %4 : vector<16x1xf32> to vector<16x32xf32>
    %6 = arith.subf %0, %5 : vector<16x32xf32>
    %7 = arith.mulf %6, %6 : vector<16x32xf32>
    %cst_2 = arith.constant dense<0.000000e+00> : vector<16xf32>
    %8 = vector.multi_reduction <add>, %7, %cst_2 [1] : vector<16x32xf32> to vector<16xf32>
    %9 = vector.shape_cast %8 : vector<16xf32> to vector<16x1xf32>
    %cst_3 = arith.constant 3.200000e+01 : f32
    %10 = vector.broadcast %cst_3 : f32 to vector<16x1xf32>
    %11 = arith.divf %9, %10 : vector<16x1xf32>
    %12 = vector.broadcast %4 : vector<16x1xf32> to vector<16x32xf32>
    %13 = arith.subf %0, %12 : vector<16x32xf32>
    %cst_4 = arith.constant 9.99999974E-6 : f32
    %14 = vector.broadcast %cst_4 : f32 to vector<16x1xf32>
    %15 = arith.addf %11, %14 : vector<16x1xf32>
    %16 = math.rsqrt %15 : vector<16x1xf32>
    %17 = vector.broadcast %16 : vector<16x1xf32> to vector<16x32xf32>
    %18 = arith.mulf %13, %17 : vector<16x32xf32>
    %c0_5 = arith.constant 0 : index
    %c0_6 = arith.constant 0 : index
    %19 = vector.load %arg3[%c0_5, %c0_6] : memref<1x32xf32, #tpu.memory_space<vmem>>, vector<1x32xf32>
    %20 = vector.broadcast %19 : vector<1x32xf32> to vector<16x32xf32>
    %21 = arith.mulf %18, %20 : vector<16x32xf32>
    %c0_7 = arith.constant 0 : index
    %c0_8 = arith.constant 0 : index
    %22 = vector.load %arg4[%c0_7, %c0_8] : memref<1x32xf32, #tpu.memory_space<vmem>>, vector<1x32xf32>
    %23 = vector.broadcast %22 : vector<1x32xf32> to vector<16x32xf32>
    %24 = arith.addf %21, %23 : vector<16x32xf32>
    %25 = arith.truncf %24 : vector<16x32xf32> to vector<16x32xbf16>
    %c0_9 = arith.constant 0 : index
    %c0_10 = arith.constant 0 : index
    %26 = vector.load %arg5[%c0_9, %c0_10] : memref<32x96xbf16, #tpu.memory_space<vmem>>, vector<32x96xbf16>
    %cst_11 = arith.constant dense<0.000000e+00> : vector<16x96xf32>
    %27 = tpu.matmul %25, %26, %cst_11 {dimension_numbers = #tpu.dot_dimension_numbers<[1], [0], [0], [1], [0, 0, 1, 1], [], []>} : vector<16x32xbf16>, vector<32x96xbf16>, vector<16x96xf32> -> vector<16x96xf32>
    %c0_12 = arith.constant 0 : index
    %c0_13 = arith.constant 0 : index
    %28 = vector.load %arg6[%c0_12, %c0_13] : memref<1x96xf32, #tpu.memory_space<vmem>>, vector<1x96xf32>
    %29 = vector.broadcast %28 : vector<1x96xf32> to vector<16x96xf32>
    %30 = arith.addf %27, %29 : vector<16x96xf32>
    %c0_14 = arith.constant 0 : index
    %c0_15 = arith.constant 0 : index
    %31 = vector.load %arg7[%c0_14, %c0_15] : memref<16x96xf32, #tpu.memory_space<vmem>>, vector<16x96xf32>
    tpu.vector_store %arg7[%c0_14, %c0_15], %30 {strides = array<i32>} : memref<16x96xf32, #tpu.memory_space<vmem>>, vector<16x96xf32>,
    return
  }
  func.func @transform_0(%arg0: i32, %arg1: i32) -> (i32, i32) {
    %c0_i32 = arith.constant 0 : i32
    %c0_i32_0 = arith.constant 0 : i32
    return %arg0, %c0_i32 : i32, i32
  }
  func.func @transform_1(%arg0: i32, %arg1: i32) -> (i32, i32) {
    %c0_i32 = arith.constant 0 : i32
    %c0_i32_0 = arith.constant 0 : i32
    %c0_i32_1 = arith.constant 0 : i32
    return %c0_i32, %c0_i32_0 : i32, i32
  }
  func.func @transform_2(%arg0: i32, %arg1: i32) -> (i32, i32) {
    %c0_i32 = arith.constant 0 : i32
    %c0_i32_0 = arith.constant 0 : i32
    %c0_i32_1 = arith.constant 0 : i32
    return %c0_i32, %c0_i32_0 : i32, i32
  }
  func.func @transform_3(%arg0: i32, %arg1: i32) -> (i32, i32) {
    %c0_i32 = arith.constant 0 : i32
    %c0_i32_0 = arith.constant 0 : i32
    return %c0_i32, %arg1 : i32, i32
  }
  func.func @transform_4(%arg0: i32, %arg1: i32) -> (i32, i32) {
    %c0_i32 = arith.constant 0 : i32
    %c0_i32_0 = arith.constant 0 : i32
    return %c0_i32, %arg1 : i32, i32
  }
  func.func @transform_5(%arg0: i32, %arg1: i32) -> (i32, i32) {
    %c0_i32 = arith.constant 0 : i32
    return %arg0, %arg1 : i32, i32
  }
}

module attributes {stable_mosaic.version = 11 : i64} {
  func.func @kernel(%arg0: i32, %arg1: i32, %arg2: memref<16x32xf32, #tpu.memory_space<vmem>>, %arg3: memref<1x32xf32, #tpu.memory_space<vmem>>, %arg4: memref<1x32xf32, #tpu.memory_space<vmem>>, %arg5: memref<32x32xbf16, #tpu.memory_space<vmem>>, %arg6: memref<1x32xf32, #tpu.memory_space<vmem>>, %arg7: memref<16x32xf32, #tpu.memory_space<vmem>>) attributes {dimension_semantics = [#tpu.dimension_semantics<parallel>, #tpu.dimension_semantics<parallel>], iteration_bounds = array<i64: 1, 1>, scalar_prefetch = 0 : i64, scratch_operands = 0 : i64, tpu.core_type = #tpu.core_type<tc>, window_params = [{transform_indices = @transform_0, window_bounds = array<i64: 16, 32>}, {pipeline_mode = #tpu.pipeline_mode<synchronous>, transform_indices = @transform_1, window_bounds = array<i64: 1, 32>}, {pipeline_mode = #tpu.pipeline_mode<synchronous>, transform_indices = @transform_2, window_bounds = array<i64: 1, 32>}, {transform_indices = @transform_3, window_bounds = array<i64: 32, 32>}, {transform_indices = @transform_4, window_bounds = array<i64: 1, 32>}, {transform_indices = @transform_5, window_bounds = array<i64: 16, 32>}]} {
    %c0 = arith.constant 0 : index
    %c0_0 = arith.constant 0 : index
    %0 = vector.load %arg2[%c0, %c0_0] : memref<16x32xf32, #tpu.memory_space<vmem>>, vector<16x32xf32>
    %cst = arith.constant dense<0.000000e+00> : vector<16xf32>
    %1 = vector.multi_reduction <add>, %0, %cst [1] : vector<16x32xf32> to vector<16xf32>
    %2 = vector.shape_cast %1 : vector<16xf32> to vector<16x1xf32>
    %cst_1 = arith.constant 3.200000e+01 : f32
    %3 = vector.broadcast %cst_1 : f32 to vector<16x1xf32>
    %4 = arith.divf %2, %3 : vector<16x1xf32>
    %5 = vector.broadcast %4 : vector<16x1xf32> to vector<16x32xf32>
    %6 = arith.subf %0, %5 : vector<16x32xf32>
    %7 = arith.mulf %6, %6 : vector<16x32xf32>
    %cst_2 = arith.constant dense<0.000000e+00> : vector<16xf32>
    %8 = vector.multi_reduction <add>, %7, %cst_2 [1] : vector<16x32xf32> to vector<16xf32>
    %9 = vector.shape_cast %8 : vector<16xf32> to vector<16x1xf32>
    %cst_3 = arith.constant 3.200000e+01 : f32
    %10 = vector.broadcast %cst_3 : f32 to vector<16x1xf32>
    %11 = arith.divf %9, %10 : vector<16x1xf32>
    %12 = vector.broadcast %4 : vector<16x1xf32> to vector<16x32xf32>
    %13 = arith.subf %0, %12 : vector<16x32xf32>
    %cst_4 = arith.constant 9.99999974E-6 : f32
    %14 = vector.broadcast %cst_4 : f32 to vector<16x1xf32>
    %15 = arith.addf %11, %14 : vector<16x1xf32>
    %16 = math.rsqrt %15 : vector<16x1xf32>
    %17 = vector.broadcast %16 : vector<16x1xf32> to vector<16x32xf32>
    %18 = arith.mulf %13, %17 : vector<16x32xf32>
    %c0_5 = arith.constant 0 : index
    %c0_6 = arith.constant 0 : index
    %19 = vector.load %arg3[%c0_5, %c0_6] : memref<1x32xf32, #tpu.memory_space<vmem>>, vector<1x32xf32>
    %20 = vector.broadcast %19 : vector<1x32xf32> to vector<16x32xf32>
    %21 = arith.mulf %18, %20 : vector<16x32xf32>
    %c0_7 = arith.constant 0 : index
    %c0_8 = arith.constant 0 : index
    %22 = vector.load %arg4[%c0_7, %c0_8] : memref<1x32xf32, #tpu.memory_space<vmem>>, vector<1x32xf32>
    %23 = vector.broadcast %22 : vector<1x32xf32> to vector<16x32xf32>
    %24 = arith.addf %21, %23 : vector<16x32xf32>
    %25 = arith.truncf %24 : vector<16x32xf32> to vector<16x32xbf16>
    %c0_9 = arith.constant 0 : index
    %c0_10 = arith.constant 0 : index
    %26 = vector.load %arg5[%c0_9, %c0_10] : memref<32x32xbf16, #tpu.memory_space<vmem>>, vector<32x32xbf16>
    %cst_11 = arith.constant dense<0.000000e+00> : vector<16x32xf32>
    %27 = tpu.matmul %25, %26, %cst_11 {dimension_numbers = #tpu.dot_dimension_numbers<[1], [0], [0], [1], [0, 0, 1, 1], [], []>} : vector<16x32xbf16>, vector<32x32xbf16>, vector<16x32xf32> -> vector<16x32xf32>
    %c0_12 = arith.constant 0 : index
    %c0_13 = arith.constant 0 : index
    %28 = vector.load %arg6[%c0_12, %c0_13] : memref<1x32xf32, #tpu.memory_space<vmem>>, vector<1x32xf32>
    %29 = vector.broadcast %28 : vector<1x32xf32> to vector<16x32xf32>
    %30 = arith.addf %27, %29 : vector<16x32xf32>
    %c0_14 = arith.constant 0 : index
    %c0_15 = arith.constant 0 : index
    %31 = vector.load %arg7[%c0_14, %c0_15] : memref<16x32xf32, #tpu.memory_space<vmem>>, vector<16x32xf32>
    tpu.vector_store %arg7[%c0_14, %c0_15], %30 {strides = array<i32>} : memref<16x32xf32, #tpu.memory_space<vmem>>, vector<16x32xf32>,
    return
  }
  func.func @transform_0(%arg0: i32, %arg1: i32) -> (i32, i32) {
    %c0_i32 = arith.constant 0 : i32
    %c0_i32_0 = arith.constant 0 : i32
    return %arg0, %c0_i32 : i32, i32
  }
  func.func @transform_1(%arg0: i32, %arg1: i32) -> (i32, i32) {
    %c0_i32 = arith.constant 0 : i32
    %c0_i32_0 = arith.constant 0 : i32
    %c0_i32_1 = arith.constant 0 : i32
    return %c0_i32, %c0_i32_0 : i32, i32
  }
  func.func @transform_2(%arg0: i32, %arg1: i32) -> (i32, i32) {
    %c0_i32 = arith.constant 0 : i32
    %c0_i32_0 = arith.constant 0 : i32
    %c0_i32_1 = arith.constant 0 : i32
    return %c0_i32, %c0_i32_0 : i32, i32
  }
  func.func @transform_3(%arg0: i32, %arg1: i32) -> (i32, i32) {
    %c0_i32 = arith.constant 0 : i32
    %c0_i32_0 = arith.constant 0 : i32
    return %c0_i32, %arg1 : i32, i32
  }
  func.func @transform_4(%arg0: i32, %arg1: i32) -> (i32, i32) {
    %c0_i32 = arith.constant 0 : i32
    %c0_i32_0 = arith.constant 0 : i32
    return %c0_i32, %arg1 : i32, i32
  }
  func.func @transform_5(%arg0: i32, %arg1: i32) -> (i32, i32) {
    %c0_i32 = arith.constant 0 : i32
    return %arg0, %arg1 : i32, i32
  }
}

module attributes {stable_mosaic.version = 11 : i64} {
  func.func @kernel(%arg0: i32, %arg1: i32, %arg2: memref<16x32xf32, #tpu.memory_space<vmem>>, %arg3: memref<32x64xbf16, #tpu.memory_space<vmem>>, %arg4: memref<1x64xf32, #tpu.memory_space<vmem>>, %arg5: memref<16x64xf32, #tpu.memory_space<vmem>>) attributes {dimension_semantics = [#tpu.dimension_semantics<parallel>, #tpu.dimension_semantics<parallel>], iteration_bounds = array<i64: 1, 1>, scalar_prefetch = 0 : i64, scratch_operands = 0 : i64, tpu.core_type = #tpu.core_type<tc>, window_params = [{transform_indices = @transform_0, window_bounds = array<i64: 16, 32>}, {transform_indices = @transform_1, window_bounds = array<i64: 32, 64>}, {transform_indices = @transform_2, window_bounds = array<i64: 1, 64>}, {transform_indices = @transform_3, window_bounds = array<i64: 16, 64>}]} {
    %c0 = arith.constant 0 : index
    %c0_0 = arith.constant 0 : index
    %0 = vector.load %arg2[%c0, %c0_0] : memref<16x32xf32, #tpu.memory_space<vmem>>, vector<16x32xf32>
    %1 = arith.truncf %0 : vector<16x32xf32> to vector<16x32xbf16>
    %c0_1 = arith.constant 0 : index
    %c0_2 = arith.constant 0 : index
    %2 = vector.load %arg3[%c0_1, %c0_2] : memref<32x64xbf16, #tpu.memory_space<vmem>>, vector<32x64xbf16>
    %cst = arith.constant dense<0.000000e+00> : vector<16x64xf32>
    %3 = tpu.matmul %1, %2, %cst {dimension_numbers = #tpu.dot_dimension_numbers<[1], [0], [0], [1], [0, 0, 1, 1], [], []>} : vector<16x32xbf16>, vector<32x64xbf16>, vector<16x64xf32> -> vector<16x64xf32>
    %c0_3 = arith.constant 0 : index
    %c0_4 = arith.constant 0 : index
    %4 = vector.load %arg4[%c0_3, %c0_4] : memref<1x64xf32, #tpu.memory_space<vmem>>, vector<1x64xf32>
    %5 = vector.broadcast %4 : vector<1x64xf32> to vector<16x64xf32>
    %6 = arith.addf %3, %5 : vector<16x64xf32>
    %c0_5 = arith.constant 0 : index
    %c0_6 = arith.constant 0 : index
    %7 = vector.load %arg5[%c0_5, %c0_6] : memref<16x64xf32, #tpu.memory_space<vmem>>, vector<16x64xf32>
    tpu.vector_store %arg5[%c0_5, %c0_6], %6 {strides = array<i32>} : memref<16x64xf32, #tpu.memory_space<vmem>>, vector<16x64xf32>,
    return
  }
  func.func @transform_0(%arg0: i32, %arg1: i32) -> (i32, i32) {
    %c0_i32 = arith.constant 0 : i32
    %c0_i32_0 = arith.constant 0 : i32
    return %arg0, %c0_i32 : i32, i32
  }
  func.func @transform_1(%arg0: i32, %arg1: i32) -> (i32, i32) {
    %c0_i32 = arith.constant 0 : i32
    %c0_i32_0 = arith.constant 0 : i32
    return %c0_i32, %arg1 : i32, i32
  }
  func.func @transform_2(%arg0: i32, %arg1: i32) -> (i32, i32) {
    %c0_i32 = arith.constant 0 : i32
    %c0_i32_0 = arith.constant 0 : i32
    return %c0_i32, %arg1 : i32, i32
  }
  func.func @transform_3(%arg0: i32, %arg1: i32) -> (i32, i32) {
    %c0_i32 = arith.constant 0 : i32
    return %arg0, %arg1 : i32, i32
  }
}

module attributes {stable_mosaic.version = 11 : i64} {
  func.func @kernel(%arg0: i32, %arg1: i32, %arg2: memref<16x64xf32, #tpu.memory_space<vmem>>, %arg3: memref<64x32xbf16, #tpu.memory_space<vmem>>, %arg4: memref<1x32xf32, #tpu.memory_space<vmem>>, %arg5: memref<16x32xf32, #tpu.memory_space<vmem>>, %arg6: memref<16x32xf32, #tpu.memory_space<vmem>>) attributes {dimension_semantics = [#tpu.dimension_semantics<parallel>, #tpu.dimension_semantics<parallel>], iteration_bounds = array<i64: 1, 1>, scalar_prefetch = 0 : i64, scratch_operands = 0 : i64, tpu.core_type = #tpu.core_type<tc>, window_params = [{transform_indices = @transform_0, window_bounds = array<i64: 16, 64>}, {transform_indices = @transform_1, window_bounds = array<i64: 64, 32>}, {transform_indices = @transform_2, window_bounds = array<i64: 1, 32>}, {transform_indices = @transform_3, window_bounds = array<i64: 16, 32>}, {transform_indices = @transform_4, window_bounds = array<i64: 16, 32>}]} {
    %c0 = arith.constant 0 : index
    %c0_0 = arith.constant 0 : index
    %0 = vector.load %arg2[%c0, %c0_0] : memref<16x64xf32, #tpu.memory_space<vmem>>, vector<16x64xf32>
    %1 = arith.truncf %0 : vector<16x64xf32> to vector<16x64xbf16>
    %c0_1 = arith.constant 0 : index
    %c0_2 = arith.constant 0 : index
    %2 = vector.load %arg3[%c0_1, %c0_2] : memref<64x32xbf16, #tpu.memory_space<vmem>>, vector<64x32xbf16>
    %cst = arith.constant dense<0.000000e+00> : vector<16x32xf32>
    %3 = tpu.matmul %1, %2, %cst {dimension_numbers = #tpu.dot_dimension_numbers<[1], [0], [0], [1], [0, 0, 1, 1], [], []>} : vector<16x64xbf16>, vector<64x32xbf16>, vector<16x32xf32> -> vector<16x32xf32>
    %c0_3 = arith.constant 0 : index
    %c0_4 = arith.constant 0 : index
    %4 = vector.load %arg4[%c0_3, %c0_4] : memref<1x32xf32, #tpu.memory_space<vmem>>, vector<1x32xf32>
    %5 = vector.broadcast %4 : vector<1x32xf32> to vector<16x32xf32>
    %6 = arith.addf %3, %5 : vector<16x32xf32>
    %c0_5 = arith.constant 0 : index
    %c0_6 = arith.constant 0 : index
    %7 = vector.load %arg5[%c0_5, %c0_6] : memref<16x32xf32, #tpu.memory_space<vmem>>, vector<16x32xf32>
    %8 = arith.addf %6, %7 : vector<16x32xf32>
    %c0_7 = arith.constant 0 : index
    %c0_8 = arith.constant 0 : index
    %9 = vector.load %arg6[%c0_7, %c0_8] : memref<16x32xf32, #tpu.memory_space<vmem>>, vector<16x32xf32>
    tpu.vector_store %arg6[%c0_7, %c0_8], %8 {strides = array<i32>} : memref<16x32xf32, #tpu.memory_space<vmem>>, vector<16x32xf32>,
    return
  }
  func.func @transform_0(%arg0: i32, %arg1: i32) -> (i32, i32) {
    %c0_i32 = arith.constant 0 : i32
    %c0_i32_0 = arith.constant 0 : i32
    return %arg0, %c0_i32 : i32, i32
  }
  func.func @transform_1(%arg0: i32, %arg1: i32) -> (i32, i32) {
    %c0_i32 = arith.constant 0 : i32
    %c0_i32_0 = arith.constant 0 : i32
    return %c0_i32, %arg1 : i32, i32
  }
  func.func @transform_2(%arg0: i32, %arg1: i32) -> (i32, i32) {
    %c0_i32 = arith.constant 0 : i32
    %c0_i32_0 = arith.constant 0 : i32
    return %c0_i32, %arg1 : i32, i32
  }
  func.func @transform_3(%arg0: i32, %arg1: i32) -> (i32, i32) {
    %c0_i32 = arith.constant 0 : i32
    return %arg0, %arg1 : i32, i32
  }
  func.func @transform_4(%arg0: i32, %arg1: i32) -> (i32, i32) {
    %c0_i32 = arith.constant 0 : i32
    return %arg0, %arg1 : i32, i32
  }
}

module attributes {stable_mosaic.version = 11 : i64} {
  func.func @kernel(%arg0: i32, %arg1: i32, %arg2: memref<16x32xf32, #tpu.memory_space<vmem>>, %arg3: memref<1x32xf32, #tpu.memory_space<vmem>>, %arg4: memref<1x32xf32, #tpu.memory_space<vmem>>, %arg5: memref<32x64xbf16, #tpu.memory_space<vmem>>, %arg6: memref<1x64xf32, #tpu.memory_space<vmem>>, %arg7: memref<16x64xf32, #tpu.memory_space<vmem>>) attributes {dimension_semantics = [#tpu.dimension_semantics<parallel>, #tpu.dimension_semantics<parallel>], iteration_bounds = array<i64: 1, 1>, scalar_prefetch = 0 : i64, scratch_operands = 0 : i64, tpu.core_type = #tpu.core_type<tc>, window_params = [{transform_indices = @transform_0, window_bounds = array<i64: 16, 32>}, {pipeline_mode = #tpu.pipeline_mode<synchronous>, transform_indices = @transform_1, window_bounds = array<i64: 1, 32>}, {pipeline_mode = #tpu.pipeline_mode<synchronous>, transform_indices = @transform_2, window_bounds = array<i64: 1, 32>}, {transform_indices = @transform_3, window_bounds = array<i64: 32, 64>}, {transform_indices = @transform_4, window_bounds = array<i64: 1, 64>}, {transform_indices = @transform_5, window_bounds = array<i64: 16, 64>}]} {
    %c0 = arith.constant 0 : index
    %c0_0 = arith.constant 0 : index
    %0 = vector.load %arg2[%c0, %c0_0] : memref<16x32xf32, #tpu.memory_space<vmem>>, vector<16x32xf32>
    %cst = arith.constant dense<0.000000e+00> : vector<16xf32>
    %1 = vector.multi_reduction <add>, %0, %cst [1] : vector<16x32xf32> to vector<16xf32>
    %2 = vector.shape_cast %1 : vector<16xf32> to vector<16x1xf32>
    %cst_1 = arith.constant 3.200000e+01 : f32
    %3 = vector.broadcast %cst_1 : f32 to vector<16x1xf32>
    %4 = arith.divf %2, %3 : vector<16x1xf32>
    %5 = vector.broadcast %4 : vector<16x1xf32> to vector<16x32xf32>
    %6 = arith.subf %0, %5 : vector<16x32xf32>
    %7 = arith.mulf %6, %6 : vector<16x32xf32>
    %cst_2 = arith.constant dense<0.000000e+00> : vector<16xf32>
    %8 = vector.multi_reduction <add>, %7, %cst_2 [1] : vector<16x32xf32> to vector<16xf32>
    %9 = vector.shape_cast %8 : vector<16xf32> to vector<16x1xf32>
    %cst_3 = arith.constant 3.200000e+01 : f32
    %10 = vector.broadcast %cst_3 : f32 to vector<16x1xf32>
    %11 = arith.divf %9, %10 : vector<16x1xf32>
    %12 = vector.broadcast %4 : vector<16x1xf32> to vector<16x32xf32>
    %13 = arith.subf %0, %12 : vector<16x32xf32>
    %cst_4 = arith.constant 9.99999974E-6 : f32
    %14 = vector.broadcast %cst_4 : f32 to vector<16x1xf32>
    %15 = arith.addf %11, %14 : vector<16x1xf32>
    %16 = math.rsqrt %15 : vector<16x1xf32>
    %17 = vector.broadcast %16 : vector<16x1xf32> to vector<16x32xf32>
    %18 = arith.mulf %13, %17 : vector<16x32xf32>
    %c0_5 = arith.constant 0 : index
    %c0_6 = arith.constant 0 : index
    %19 = vector.load %arg3[%c0_5, %c0_6] : memref<1x32xf32, #tpu.memory_space<vmem>>, vector<1x32xf32>
    %20 = vector.broadcast %19 : vector<1x32xf32> to vector<16x32xf32>
    %21 = arith.mulf %18, %20 : vector<16x32xf32>
    %c0_7 = arith.constant 0 : index
    %c0_8 = arith.constant 0 : index
    %22 = vector.load %arg4[%c0_7, %c0_8] : memref<1x32xf32, #tpu.memory_space<vmem>>, vector<1x32xf32>
    %23 = vector.broadcast %22 : vector<1x32xf32> to vector<16x32xf32>
    %24 = arith.addf %21, %23 : vector<16x32xf32>
    %25 = arith.truncf %24 : vector<16x32xf32> to vector<16x32xbf16>
    %c0_9 = arith.constant 0 : index
    %c0_10 = arith.constant 0 : index
    %26 = vector.load %arg5[%c0_9, %c0_10] : memref<32x64xbf16, #tpu.memory_space<vmem>>, vector<32x64xbf16>
    %cst_11 = arith.constant dense<0.000000e+00> : vector<16x64xf32>
    %27 = tpu.matmul %25, %26, %cst_11 {dimension_numbers = #tpu.dot_dimension_numbers<[1], [0], [0], [1], [0, 0, 1, 1], [], []>} : vector<16x32xbf16>, vector<32x64xbf16>, vector<16x64xf32> -> vector<16x64xf32>
    %c0_12 = arith.constant 0 : index
    %c0_13 = arith.constant 0 : index
    %28 = vector.load %arg6[%c0_12, %c0_13] : memref<1x64xf32, #tpu.memory_space<vmem>>, vector<1x64xf32>
    %29 = vector.broadcast %28 : vector<1x64xf32> to vector<16x64xf32>
    %30 = arith.addf %27, %29 : vector<16x64xf32>
    %cst_14 = arith.constant 0.000000e+00 : f32
    %31 = vector.broadcast %cst_14 : f32 to vector<16x64xf32>
    %32 = arith.maximumf %30, %31 : vector<16x64xf32>
    %c0_15 = arith.constant 0 : index
    %c0_16 = arith.constant 0 : index
    %33 = vector.load %arg7[%c0_15, %c0_16] : memref<16x64xf32, #tpu.memory_space<vmem>>, vector<16x64xf32>
    tpu.vector_store %arg7[%c0_15, %c0_16], %32 {strides = array<i32>} : memref<16x64xf32, #tpu.memory_space<vmem>>, vector<16x64xf32>,
    return
  }
  func.func @transform_0(%arg0: i32, %arg1: i32) -> (i32, i32) {
    %c0_i32 = arith.constant 0 : i32
    %c0_i32_0 = arith.constant 0 : i32
    return %arg0, %c0_i32 : i32, i32
  }
  func.func @transform_1(%arg0: i32, %arg1: i32) -> (i32, i32) {
    %c0_i32 = arith.constant 0 : i32
    %c0_i32_0 = arith.constant 0 : i32
    %c0_i32_1 = arith.constant 0 : i32
    return %c0_i32, %c0_i32_0 : i32, i32
  }
  func.func @transform_2(%arg0: i32, %arg1: i32) -> (i32, i32) {
    %c0_i32 = arith.constant 0 : i32
    %c0_i32_0 = arith.constant 0 : i32
    %c0_i32_1 = arith.constant 0 : i32
    return %c0_i32, %c0_i32_0 : i32, i32
  }
  func.func @transform_3(%arg0: i32, %arg1: i32) -> (i32, i32) {
    %c0_i32 = arith.constant 0 : i32
    %c0_i32_0 = arith.constant 0 : i32
    return %c0_i32, %arg1 : i32, i32
  }
  func.func @transform_4(%arg0: i32, %arg1: i32) -> (i32, i32) {
    %c0_i32 = arith.constant 0 : i32
    %c0_i32_0 = arith.constant 0 : i32
    return %c0_i32, %arg1 : i32, i32
  }
  func.func @transform_5(%arg0: i32, %arg1: i32) -> (i32, i32) {
    %c0_i32 = arith.constant 0 : i32
    return %arg0, %arg1 : i32, i32
  }
}

module attributes {stable_mosaic.version = 11 : i64} {
  func.func @kernel(%arg0: i32, %arg1: memref<1x8x32xf32, #tpu.memory_space<vmem>>, %arg2: memref<1x8x64xf32, #tpu.memory_space<vmem>>, %arg3: memref<32x32xbf16, #tpu.memory_space<vmem>>, %arg4: memref<1x32xf32, #tpu.memory_space<vmem>>, %arg5: memref<1x8x32xf32, #tpu.memory_space<vmem>>, %arg6: memref<1x8x32xf32, #tpu.memory_space<vmem>>) attributes {dimension_semantics = [#tpu.dimension_semantics<parallel>], iteration_bounds = array<i64: 2>, scalar_prefetch = 0 : i64, scratch_operands = 0 : i64, tpu.core_type = #tpu.core_type<tc>, window_params = [{transform_indices = @transform_0, window_bounds = array<i64: 1, 8, 32>}, {transform_indices = @transform_1, window_bounds = array<i64: 1, 8, 64>}, {pipeline_mode = #tpu.pipeline_mode<synchronous>, transform_indices = @transform_2, window_bounds = array<i64: 32, 32>}, {pipeline_mode = #tpu.pipeline_mode<synchronous>, transform_indices = @transform_3, window_bounds = array<i64: 1, 32>}, {transform_indices = @transform_4, window_bounds = array<i64: 1, 8, 32>}, {transform_indices = @transform_5, window_bounds = array<i64: 1, 8, 32>}]} {
    %c0 = arith.constant 0 : index
    %c0_0 = arith.constant 0 : index
    %c0_1 = arith.constant 0 : index
    %0 = vector.load %arg1[%c0, %c0_0, %c0_1] : memref<1x8x32xf32, #tpu.memory_space<vmem>>, vector<1x8x32xf32>
    %1 = vector.shape_cast %0 : vector<1x8x32xf32> to vector<8x32xf32>
    %c0_2 = arith.constant 0 : index
    %c0_3 = arith.constant 0 : index
    %c0_4 = arith.constant 0 : index
    %2 = vector.load %arg2[%c0_2, %c0_3, %c0_4] : memref<1x8x64xf32, #tpu.memory_space<vmem>>, vector<1x8x64xf32>
    %3 = vector.shape_cast %2 : vector<1x8x64xf32> to vector<8x64xf32>
    %4 = vector.extract_strided_slice %3 {offsets = [0, 0], sizes = [8, 32], strides = [1, 1]} : vector<8x64xf32> to vector<8x32xf32>
    %5 = vector.extract_strided_slice %3 {offsets = [0, 32], sizes = [8, 32], strides = [1, 1]} : vector<8x64xf32> to vector<8x32xf32>
    %6 = vector.extract_strided_slice %1 {offsets = [0, 0], sizes = [8, 8], strides = [1, 1]} : vector<8x32xf32> to vector<8x8xf32>
    %cst = arith.constant 0.353553385 : f32
    %7 = vector.broadcast %cst : f32 to vector<8x8xf32>
    %8 = arith.mulf %6, %7 : vector<8x8xf32>
    %9 = arith.truncf %8 : vector<8x8xf32> to vector<8x8xbf16>
    %10 = vector.extract_strided_slice %4 {offsets = [0, 0], sizes = [8, 8], strides = [1, 1]} : vector<8x32xf32> to vector<8x8xf32>
    %11 = arith.truncf %10 : vector<8x8xf32> to vector<8x8xbf16>
    %12 = vector.extract_strided_slice %5 {offsets = [0, 0], sizes = [8, 8], strides = [1, 1]} : vector<8x32xf32> to vector<8x8xf32>
    %13 = arith.truncf %12 : vector<8x8xf32> to vector<8x8xbf16>
    %cst_5 = arith.constant dense<0.000000e+00> : vector<8x8xf32>
    %14 = tpu.matmul %9, %11, %cst_5 {dimension_numbers = #tpu.dot_dimension_numbers<[1], [1], [0], [0], [0, 0, 1, 0], [], []>} : vector<8x8xbf16>, vector<8x8xbf16>, vector<8x8xf32> -> vector<8x8xf32>
    %cst_6 = arith.constant dense<0xFF800000> : vector<8xf32>
    %15 = vector.multi_reduction <maximumf>, %14, %cst_6 [1] : vector<8x8xf32> to vector<8xf32>
    %16 = vector.shape_cast %15 : vector<8xf32> to vector<8x1xf32>
    %17 = vector.broadcast %16 : vector<8x1xf32> to vector<8x8xf32>
    %18 = arith.subf %14, %17 : vector<8x8xf32>
    %19 = math.exp %18 : vector<8x8xf32>
    %cst_7 = arith.constant dense<0.000000e+00> : vector<8xf32>
    %20 = vector.multi_reduction <add>, %19, %cst_7 [1] : vector<8x8xf32> to vector<8xf32>
    %21 = vector.shape_cast %20 : vector<8xf32> to vector<8x1xf32>
    %22 = tpu.reciprocal %21 {approx = true} : vector<8x1xf32> -> vector<8x1xf32>
    %23 = vector.broadcast %22 : vector<8x1xf32> to vector<8x8xf32>
    %24 = arith.mulf %19, %23 : vector<8x8xf32>
    %25 = arith.truncf %24 : vector<8x8xf32> to vector<8x8xbf16>
    %cst_8 = arith.constant dense<0.000000e+00> : vector<8x8xf32>
    %26 = tpu.matmul %25, %13, %cst_8 {dimension_numbers = #tpu.dot_dimension_numbers<[1], [0], [0], [1], [0, 0, 1, 1], [], []>} : vector<8x8xbf16>, vector<8x8xbf16>, vector<8x8xf32> -> vector<8x8xf32>
    %27 = vector.extract_strided_slice %1 {offsets = [0, 8], sizes = [8, 8], strides = [1, 1]} : vector<8x32xf32> to vector<8x8xf32>
    %cst_9 = arith.constant 0.353553385 : f32
    %28 = vector.broadcast %cst_9 : f32 to vector<8x8xf32>
    %29 = arith.mulf %27, %28 : vector<8x8xf32>
    %30 = arith.truncf %29 : vector<8x8xf32> to vector<8x8xbf16>
    %31 = vector.extract_strided_slice %4 {offsets = [0, 8], sizes = [8, 8], strides = [1, 1]} : vector<8x32xf32> to vector<8x8xf32>
    %32 = arith.truncf %31 : vector<8x8xf32> to vector<8x8xbf16>
    %33 = vector.extract_strided_slice %5 {offsets = [0, 8], sizes = [8, 8], strides = [1, 1]} : vector<8x32xf32> to vector<8x8xf32>
    %34 = arith.truncf %33 : vector<8x8xf32> to vector<8x8xbf16>
    %cst_10 = arith.constant dense<0.000000e+00> : vector<8x8xf32>
    %35 = tpu.matmul %30, %32, %cst_10 {dimension_numbers = #tpu.dot_dimension_numbers<[1], [1], [0], [0], [0, 0, 1, 0], [], []>} : vector<8x8xbf16>, vector<8x8xbf16>, vector<8x8xf32> -> vector<8x8xf32>
    %cst_11 = arith.constant dense<0xFF800000> : vector<8xf32>
    %36 = vector.multi_reduction <maximumf>, %35, %cst_11 [1] : vector<8x8xf32> to vector<8xf32>
    %37 = vector.shape_cast %36 : vector<8xf32> to vector<8x1xf32>
    %38 = vector.broadcast %37 : vector<8x1xf32> to vector<8x8xf32>
    %39 = arith.subf %35, %38 : vector<8x8xf32>
    %40 = math.exp %39 : vector<8x8xf32>
    %cst_12 = arith.constant dense<0.000000e+00> : vector<8xf32>
    %41 = vector.multi_reduction <add>, %40, %cst_12 [1] : vector<8x8xf32> to vector<8xf32>
    %42 = vector.shape_cast %41 : vector<8xf32> to vector<8x1xf32>
    %43 = tpu.reciprocal %42 {approx = true} : vector<8x1xf32> -> vector<8x1xf32>
    %44 = vector.broadcast %43 : vector<8x1xf32> to vector<8x8xf32>
    %45 = arith.mulf %40, %44 : vector<8x8xf32>
    %46 = arith.truncf %45 : vector<8x8xf32> to vector<8x8xbf16>
    %cst_13 = arith.constant dense<0.000000e+00> : vector<8x8xf32>
    %47 = tpu.matmul %46, %34, %cst_13 {dimension_numbers = #tpu.dot_dimension_numbers<[1], [0], [0], [1], [0, 0, 1, 1], [], []>} : vector<8x8xbf16>, vector<8x8xbf16>, vector<8x8xf32> -> vector<8x8xf32>
    %48 = vector.extract_strided_slice %1 {offsets = [0, 16], sizes = [8, 8], strides = [1, 1]} : vector<8x32xf32> to vector<8x8xf32>
    %cst_14 = arith.constant 0.353553385 : f32
    %49 = vector.broadcast %cst_14 : f32 to vector<8x8xf32>
    %50 = arith.mulf %48, %49 : vector<8x8xf32>
    %51 = arith.truncf %50 : vector<8x8xf32> to vector<8x8xbf16>
    %52 = vector.extract_strided_slice %4 {offsets = [0, 16], sizes = [8, 8], strides = [1, 1]} : vector<8x32xf32> to vector<8x8xf32>
    %53 = arith.truncf %52 : vector<8x8xf32> to vector<8x8xbf16>
    %54 = vector.extract_strided_slice %5 {offsets = [0, 16], sizes = [8, 8], strides = [1, 1]} : vector<8x32xf32> to vector<8x8xf32>
    %55 = arith.truncf %54 : vector<8x8xf32> to vector<8x8xbf16>
    %cst_15 = arith.constant dense<0.000000e+00> : vector<8x8xf32>
    %56 = tpu.matmul %51, %53, %cst_15 {dimension_numbers = #tpu.dot_dimension_numbers<[1], [1], [0], [0], [0, 0, 1, 0], [], []>} : vector<8x8xbf16>, vector<8x8xbf16>, vector<8x8xf32> -> vector<8x8xf32>
    %cst_16 = arith.constant dense<0xFF800000> : vector<8xf32>
    %57 = vector.multi_reduction <maximumf>, %56, %cst_16 [1] : vector<8x8xf32> to vector<8xf32>
    %58 = vector.shape_cast %57 : vector<8xf32> to vector<8x1xf32>
    %59 = vector.broadcast %58 : vector<8x1xf32> to vector<8x8xf32>
    %60 = arith.subf %56, %59 : vector<8x8xf32>
    %61 = math.exp %60 : vector<8x8xf32>
    %cst_17 = arith.constant dense<0.000000e+00> : vector<8xf32>
    %62 = vector.multi_reduction <add>, %61, %cst_17 [1] : vector<8x8xf32> to vector<8xf32>
    %63 = vector.shape_cast %62 : vector<8xf32> to vector<8x1xf32>
    %64 = tpu.reciprocal %63 {approx = true} : vector<8x1xf32> -> vector<8x1xf32>
    %65 = vector.broadcast %64 : vector<8x1xf32> to vector<8x8xf32>
    %66 = arith.mulf %61, %65 : vector<8x8xf32>
    %67 = arith.truncf %66 : vector<8x8xf32> to vector<8x8xbf16>
    %cst_18 = arith.constant dense<0.000000e+00> : vector<8x8xf32>
    %68 = tpu.matmul %67, %55, %cst_18 {dimension_numbers = #tpu.dot_dimension_numbers<[1], [0], [0], [1], [0, 0, 1, 1], [], []>} : vector<8x8xbf16>, vector<8x8xbf16>, vector<8x8xf32> -> vector<8x8xf32>
    %69 = vector.extract_strided_slice %1 {offsets = [0, 24], sizes = [8, 8], strides = [1, 1]} : vector<8x32xf32> to vector<8x8xf32>
    %cst_19 = arith.constant 0.353553385 : f32
    %70 = vector.broadcast %cst_19 : f32 to vector<8x8xf32>
    %71 = arith.mulf %69, %70 : vector<8x8xf32>
    %72 = arith.truncf %71 : vector<8x8xf32> to vector<8x8xbf16>
    %73 = vector.extract_strided_slice %4 {offsets = [0, 24], sizes = [8, 8], strides = [1, 1]} : vector<8x32xf32> to vector<8x8xf32>
    %74 = arith.truncf %73 : vector<8x8xf32> to vector<8x8xbf16>
    %75 = vector.extract_strided_slice %5 {offsets = [0, 24], sizes = [8, 8], strides = [1, 1]} : vector<8x32xf32> to vector<8x8xf32>
    %76 = arith.truncf %75 : vector<8x8xf32> to vector<8x8xbf16>
    %cst_20 = arith.constant dense<0.000000e+00> : vector<8x8xf32>
    %77 = tpu.matmul %72, %74, %cst_20 {dimension_numbers = #tpu.dot_dimension_numbers<[1], [1], [0], [0], [0, 0, 1, 0], [], []>} : vector<8x8xbf16>, vector<8x8xbf16>, vector<8x8xf32> -> vector<8x8xf32>
    %cst_21 = arith.constant dense<0xFF800000> : vector<8xf32>
    %78 = vector.multi_reduction <maximumf>, %77, %cst_21 [1] : vector<8x8xf32> to vector<8xf32>
    %79 = vector.shape_cast %78 : vector<8xf32> to vector<8x1xf32>
    %80 = vector.broadcast %79 : vector<8x1xf32> to vector<8x8xf32>
    %81 = arith.subf %77, %80 : vector<8x8xf32>
    %82 = math.exp %81 : vector<8x8xf32>
    %cst_22 = arith.constant dense<0.000000e+00> : vector<8xf32>
    %83 = vector.multi_reduction <add>, %82, %cst_22 [1] : vector<8x8xf32> to vector<8xf32>
    %84 = vector.shape_cast %83 : vector<8xf32> to vector<8x1xf32>
    %85 = tpu.reciprocal %84 {approx = true} : vector<8x1xf32> -> vector<8x1xf32>
    %86 = vector.broadcast %85 : vector<8x1xf32> to vector<8x8xf32>
    %87 = arith.mulf %82, %86 : vector<8x8xf32>
    %88 = arith.truncf %87 : vector<8x8xf32> to vector<8x8xbf16>
    %cst_23 = arith.constant dense<0.000000e+00> : vector<8x8xf32>
    %89 = tpu.matmul %88, %76, %cst_23 {dimension_numbers = #tpu.dot_dimension_numbers<[1], [0], [0], [1], [0, 0, 1, 1], [], []>} : vector<8x8xbf16>, vector<8x8xbf16>, vector<8x8xf32> -> vector<8x8xf32>
    %90 = tpu.concatenate %26, %47, %68, %89 in 1 : vector<8x8xf32>, vector<8x8xf32>, vector<8x8xf32>, vector<8x8xf32> -> vector<8x32xf32>
    %91 = arith.truncf %90 : vector<8x32xf32> to vector<8x32xbf16>
    %c0_24 = arith.constant 0 : index
    %c0_25 = arith.constant 0 : index
    %92 = vector.load %arg3[%c0_24, %c0_25] : memref<32x32xbf16, #tpu.memory_space<vmem>>, vector<32x32xbf16>
    %cst_26 = arith.constant dense<0.000000e+00> : vector<8x32xf32>
    %93 = tpu.matmul %91, %92, %cst_26 {dimension_numbers = #tpu.dot_dimension_numbers<[1], [0], [0], [1], [0, 0, 1, 1], [], []>} : vector<8x32xbf16>, vector<32x32xbf16>, vector<8x32xf32> -> vector<8x32xf32>
    %c0_27 = arith.constant 0 : index
    %c0_28 = arith.constant 0 : index
    %94 = vector.load %arg4[%c0_27, %c0_28] : memref<1x32xf32, #tpu.memory_space<vmem>>, vector<1x32xf32>
    %95 = vector.broadcast %94 : vector<1x32xf32> to vector<8x32xf32>
    %96 = arith.addf %93, %95 : vector<8x32xf32>
    %c0_29 = arith.constant 0 : index
    %c0_30 = arith.constant 0 : index
    %c0_31 = arith.constant 0 : index
    %97 = vector.load %arg5[%c0_29, %c0_30, %c0_31] : memref<1x8x32xf32, #tpu.memory_space<vmem>>, vector<1x8x32xf32>
    %98 = vector.shape_cast %97 : vector<1x8x32xf32> to vector<8x32xf32>
    %99 = arith.addf %96, %98 : vector<8x32xf32>
    %c0_32 = arith.constant 0 : index
    %c0_33 = arith.constant 0 : index
    %c0_34 = arith.constant 0 : index
    %100 = vector.load %arg6[%c0_32, %c0_33, %c0_34] : memref<1x8x32xf32, #tpu.memory_space<vmem>>, vector<1x8x32xf32>
    %101 = vector.shape_cast %100 : vector<1x8x32xf32> to vector<8x32xf32>
    %102 = vector.shape_cast %99 : vector<8x32xf32> to vector<1x8x32xf32>
    tpu.vector_store %arg6[%c0_32, %c0_33, %c0_34], %102 {strides = array<i32>} : memref<1x8x32xf32, #tpu.memory_space<vmem>>, vector<1x8x32xf32>,
    return
  }
  func.func @transform_0(%arg0: i32) -> (i32, i32, i32) {
    %c0_i32 = arith.constant 0 : i32
    %c0_i32_0 = arith.constant 0 : i32
    %c0_i32_1 = arith.constant 0 : i32
    return %arg0, %c0_i32, %c0_i32_0 : i32, i32, i32
  }
  func.func @transform_1(%arg0: i32) -> (i32, i32, i32) {
    %c0_i32 = arith.constant 0 : i32
    %c0_i32_0 = arith.constant 0 : i32
    %c0_i32_1 = arith.constant 0 : i32
    return %arg0, %c0_i32, %c0_i32_0 : i32, i32, i32
  }
  func.func @transform_2(%arg0: i32) -> (i32, i32) {
    %c0_i32 = arith.constant 0 : i32
    %c0_i32_0 = arith.constant 0 : i32
    %c0_i32_1 = arith.constant 0 : i32
    return %c0_i32, %c0_i32_0 : i32, i32
  }
  func.func @transform_3(%arg0: i32) -> (i32, i32) {
    %c0_i32 = arith.constant 0 : i32
    %c0_i32_0 = arith.constant 0 : i32
    %c0_i32_1 = arith.constant 0 : i32
    return %c0_i32, %c0_i32_0 : i32, i32
  }
  func.func @transform_4(%arg0: i32) -> (i32, i32, i32) {
    %c0_i32 = arith.constant 0 : i32
    %c0_i32_0 = arith.constant 0 : i32
    %c0_i32_1 = arith.constant 0 : i32
    return %arg0, %c0_i32, %c0_i32_0 : i32, i32, i32
  }
  func.func @transform_5(%arg0: i32) -> (i32, i32, i32) {
    %c0_i32 = arith.constant 0 : i32
    %c0_i32_0 = arith.constant 0 : i32
    %c0_i32_1 = arith.constant 0 : i32
    return %arg0, %c0_i32, %c0_i32_0 : i32, i32, i32
  }
}

</mosaic_0001>

<llo_original>
// kernel: decoder_layer.7
$region0: #{decoder_layer.7}
  #allocation0 [shape = 'u32[]', space=smem, size = 0x4, offset = 0x4, fixed_abs, tag = 'smem constant byte address 0x4 - core index']
  #allocation1 [shape = 'u32[144,128]{1,0:T(1,128)}', space=vmem, size = 0x12000, scoped, tag = 'internal scratch']
  %s0 = inlined_call_operand.vmem [shape: f32[16,32], index: 0, kind: input, shape index: {}]
  %s1 = inlined_call_operand.vmem [shape: f32[1,32], index: 1, kind: input, shape index: {}]
  %s2 = inlined_call_operand.vmem [shape: f32[1,32], index: 2, kind: input, shape index: {}]
  %s3 = inlined_call_operand.vmem [shape: bf16[32,96], index: 3, kind: input, shape index: {}]
  %s4 = inlined_call_operand.vmem [shape: f32[1,96], index: 4, kind: input, shape index: {}]
  %s5 = inlined_call_operand.vmem [shape: f32[16,96], index: 5, kind: output, shape index: {}]
  %s6 = sld [smem:[#allocation0]]
  $region30: #{decoder_layer.7} parent=0
    _
  %s8 = ssub.s32 1, %s6
  %s9 = scalar_select 0, %s8, %s6
  // Predicated region
  $region2: #{decoder_layer.7} parent=0 // pred_check
    _
  $region3: #{decoder_layer.7} parent=0 // pred_check_branch
    %11 = sbr.rel (0) target = $region5
  $region4: #{decoder_layer.7} parent=0 // pred_region
    _
  $region5: #{decoder_layer.7} parent=0 // pred_fallthru
    _
  // Predicated region
  $region6: #{decoder_layer.7} parent=0 // pred_check
    _
  $region7: #{decoder_layer.7} parent=0 // pred_check_branch
    %13 = sbr.rel (0) target = $region9
  $region8: #{decoder_layer.7} parent=0 // pred_region
    _
  $region9: #{decoder_layer.7} parent=0 // pred_fallthru
    _
  // Predicated region
  $region10: #{decoder_layer.7} parent=0 // pred_check
    _
  $region11: #{decoder_layer.7} parent=0 // pred_check_branch
    %15 = sbr.rel (0) target = $region13
  $region12: #{decoder_layer.7} parent=0 // pred_region
    _
  $region13: #{decoder_layer.7} parent=0 // pred_fallthru
    _
  // Predicated region
  $region14: #{decoder_layer.7} parent=0 // pred_check
    _
  $region15: #{decoder_layer.7} parent=0 // pred_check_branch
    %17 = sbr.rel (0) target = $region17
  $region16: #{decoder_layer.7} parent=0 // pred_region
    _
  $region17: #{decoder_layer.7} parent=0 // pred_fallthru
    _
  // Predicated region
  $region18: #{decoder_layer.7} parent=0 // pred_check
    _
  $region19: #{decoder_layer.7} parent=0 // pred_check_branch
    %19 = sbr.rel (0) target = $region21
  $region20: #{decoder_layer.7} parent=0 // pred_region
    _
  $region21: #{decoder_layer.7} parent=0 // pred_fallthru
    _
  %v21 = vld [vmem:[%s0] sm:$0xff]
  %v22 = vld [vmem:[%s0 + $0x8] sm:$0xff]
  %vm23 = vcmask 261120
  %v24 = vsel %vm23, %v21, 0.0
  %25 = vadd.xlane.f32.xlu0 %v24
  %v26 = vpop.xlane.xlu0 %25
  %v27 = vsel %vm23, %v22, 0.0
  %28 = vadd.xlane.f32.xlu0 %v27
  %v29 = vpop.xlane.xlu0 %28
  %v30 = vrcp.pop 32.0
  %v31 = vmul.f32 %v26, %v30
  %v32 = vmul.f32 %v29, %v30
  %v33 = vsub.f32 %v21, %v31
  %v34 = vsub.f32 %v22, %v32
  %v35 = vmul.f32 %v33, %v33
  %v36 = vmul.f32 %v34, %v34
  %v37 = vsel %vm23, %v35, 0.0
  %38 = vadd.xlane.f32.xlu0 %v37
  %v39 = vpop.xlane.xlu0 %38
  %v40 = vsel %vm23, %v36, 0.0
  %41 = vadd.xlane.f32.xlu0 %v40
  %v42 = vpop.xlane.xlu0 %41
  %v43 = vmul.f32 %v39, %v30
  %v44 = vmul.f32 %v42, %v30
  %v45 = vadd.f32 %v43, 1e-05
  %v46 = vadd.f32 %v44, 1e-05
  %v47 = vrsqrt.pop %v45
  %v48 = vrsqrt.pop %v46
  %v49 = vmul.f32 %v33, %v47
  %v50 = vmul.f32 %v34, %v48
  %v51 = vld [vmem:[%s1] sm:$0x1]
  %v53 = vlaneseq
  %v54 = vshrl.u32 %v53, 7
  %v55 = vsub.s32 0, %v54
  %v56 = vrot.slane %v51, %v55
  %v58 = vmul.f32 %v49, %v56
  %v59 = vmul.f32 %v50, %v56
  %v60 = vld [vmem:[%s2] sm:$0x1]
  %v62 = vlaneseq
  %v63 = vshrl.u32 %v62, 7
  %v64 = vsub.s32 0, %v63
  %v65 = vrot.slane %v60, %v64
  %v67 = vadd.f32 %v58, %v65
  %v68 = vadd.f32 %v59, %v65
  %v69 = vpack.c.bf16 %v68, %v67
  %v70 = vld [vmem:[%s3] sm:$0xf]
  %v71 = vld [vmem:[%s3 + $0x4] sm:$0xf]
  %v72 = vld [vmem:[%s3 + $0x8] sm:$0xf]
  %v73 = vld [vmem:[%s3 + $0xc] sm:$0xf]
  %v74 = vld [vmem:[%s4] sm:$0x1]
  %v76 = vlaneseq
  %v77 = vshrl.u32 %v76, 7
  %v78 = vsub.s32 0, %v77
  %v79 = vrot.slane %v74, %v78
  %v85 = vunpack.c.l.b16 %v70
  %v86 = vunpack.c.l.b16 %v71
  %v87 = vunpack.c.l.b16 %v72
  %v88 = vunpack.c.l.b16 %v73
  %v89 = vpack.c.b16 %v86, %v85
  %v90 = vpack.c.b16 %v88, %v87
  %v94 = vsel %vm23, %v69, 0
  %96 = vmatprep.subr.bf16.mxu0 0
  %97 = vmatpush1.bf16.msra.mxu0 %v89
  %98 = vmatprep.subr.bf16.mxu0 0
  %99 = vmatpush1.bf16.msra.mxu0 %v90
  %100 = vmatprep.subr.bf16.mxu0 0
  %101 = vmatpush1.bf16.msra.mxu0 0
  %102 = vmatprep.subr.bf16.mxu0 0
  %103 = vmatpush1.bf16.msra.mxu0 0
  %104 = vmatprep.subr.bf16.mxu0 0
  %105 = vmatpush1.bf16.msra.mxu0 0
  %106 = vmatprep.subr.bf16.mxu0 0
  %107 = vmatpush1.bf16.msra.mxu0 0
  %108 = vmatprep.subr.bf16.mxu0 0
  %109 = vmatpush1.bf16.msra.mxu0 0
  %110 = vmatprep.subr.bf16.mxu0 0
  %111 = vmatpush1.bf16.msra.mxu0 0
  %112 = vmatprep.subr.bf16.mxu0 0
  %113 = vmatpush1.bf16.msra.mxu0 0
  %114 = vmatprep.subr.bf16.mxu0 0
  %115 = vmatpush1.bf16.msra.mxu0 0
  %116 = vmatprep.subr.bf16.mxu0 0
  %117 = vmatpush1.bf16.msra.mxu0 0
  %118 = vmatprep.subr.bf16.mxu0 0
  %119 = vmatpush1.bf16.msra.mxu0 0
  %120 = vmatprep.subr.bf16.mxu0 0
  %121 = vmatpush1.bf16.msra.mxu0 0
  %122 = vmatprep.subr.bf16.mxu0 0
  %123 = vmatpush1.bf16.msra.mxu0 0
  %124 = vmatprep.subr.bf16.mxu0 0
  %125 = vmatpush1.bf16.msra.mxu0 0
  %126 = vmatprep.subr.bf16.mxu0 0
  %127 = vmatpush1.bf16.msra.mxu0 0
  %128 = vmatprep.mubr.bf16.mxu0 0
  %129 = vmatmul.mubr.bf16.gmra.mrb[0].mxu0 %v94
  %v130 = vpop.f32.mrb[0].mxu0
  %v131 = vadd.f32 %v79, %v130
  %v132 = vpop.f32.mrb[0].mxu0
  %v133 = vpop.f32.mrb[0].mxu0
  %v134 = vadd.f32 %v79, %v133
  %v135 = vpop.f32.mrb[0].mxu0
  %136 = vdwg.mxu0
  %vm137 = vcmask 785408
  %138 = vst.msk [vmem:[%s5] sm:$0xff] %vm137, %v131
  %139 = vst.msk [vmem:[%s5 + $0x8] sm:$0xff] %vm137, %v134
  // Predicated region
  $region22: #{decoder_layer.7} parent=0 // pred_check
    _
  $region23: #{decoder_layer.7} parent=0 // pred_check_branch
    %141 = sbr.rel (0) target = $region25
  $region24: #{decoder_layer.7} parent=0 // pred_region
    _
  $region25: #{decoder_layer.7} parent=0 // pred_fallthru
    _
  // Predicated region
  $region26: #{decoder_layer.7} parent=0 // pred_check
    _
  $region27: #{decoder_layer.7} parent=0 // pred_check_branch
    %143 = sbr.rel (0) target = $region29
  $region28: #{decoder_layer.7} parent=0 // pred_region
    _
  $region29: #{decoder_layer.7} parent=0 // pred_fallthru
    _

// kernel: decoder_layer.8
$region0: #{decoder_layer.8}
  #allocation0 [shape = 'u32[]', space=smem, size = 0x4, offset = 0x4, fixed_abs, tag = 'smem constant byte address 0x4 - core index']
  #allocation1 [shape = 'u32[144,128]{1,0:T(1,128)}', space=vmem, size = 0x12000, scoped, tag = 'internal scratch']
  %s0 = inlined_call_operand.vmem [shape: f32[2,8,96], index: 0, kind: input, shape index: {}]
  %s1 = inlined_call_operand.vmem [shape: bf16[32,32], index: 1, kind: input, shape index: {}]
  %s2 = inlined_call_operand.vmem [shape: f32[1,32], index: 2, kind: input, shape index: {}]
  %s3 = inlined_call_operand.vmem [shape: f32[2,8,32], index: 3, kind: input, shape index: {}]
  %s4 = inlined_call_operand.vmem [shape: f32[2,8,32], index: 4, kind: output, shape index: {}]
  %s5 = sld [smem:[#allocation0]]
  $region49: #{decoder_layer.8} parent=0
    _
  %s7 = ssub.s32 1, %s5
  %s8 = scalar_select 0, %s7, %s5
  loop: start=0, step=1, limit=4
  $region2: #{decoder_layer.8} parent=0 // loop_pre_header
    _
  $region3: #{decoder_layer.8} parent=0 // loop_header
    %s10 = sphi 0, %s14
    %p11 = scmp.ge.s32.totalorder %s10, 4
    %s20 = sphi 0, %s22
    %s23 = sphi 0, %s20
    %s24 = sphi 0, %s23
    %s40 = sphi 0, %s24
    %s44 = sphi 0, %s44
    %s46 = sphi 0, %s44
    %s47 = sphi 0, %s46
    %s61 = sphi 0, %s47
    %s65 = sphi 0, %s65
    %s67 = sphi 0, %s65
    %s68 = sphi 0, %s67
    %s82 = sphi 0, %s68
    %s88 = sphi 0, %s90
    %s91 = sphi 0, %s88
    %s92 = sphi 0, %s91
    %s108 = sphi 0, %s92
    %s114 = sphi 0, %s116
    %s117 = sphi 0, %s114
    %s118 = sphi 0, %s117
    %s134 = sphi 0, %s118
  $region4: #{decoder_layer.8} parent=0 // loop_header_branch
    %13 = sbr.rel (%p11) target = $region8
  $region5: #{decoder_layer.8} parent=0 // loop_body
    %s15 = ssub.s32 %s10, 1
    %s16 = ssub.s32 %s10, 2
    %s17 = sadd.s32 %s10, 1
    %s18 = ssub.s32 %s10, %s17
    %p19 = scmp.eq.s32.totalorder %s18, 0
    %s21 = sadd.s32 %s20, 1
    %s22 = scalar_select %p19, %s20, %s21
    %p25 = pneg %p19
    %p26 = scmp.eq.s32.totalorder %s10, 1
    %p27 = por %p25, %p26
    %p28 = scmp.ne.s32.totalorder %s20, %s23
    %p29 = scmp.eq.s32.totalorder %s10, 0
    %p30 = por %p28, %p29
    %p31 = scmp.ne.s32.totalorder %s20, %s23
    %p32 = scmp.eq.s32.totalorder %s15, 1
    %p33 = por %p31, %p32
    %p34 = scmp.ne.s32.totalorder %s23, %s24
    %p35 = scmp.eq.s32.totalorder %s15, 0
    %p36 = por %p34, %p35
    %p37 = scmp.ne.s32.totalorder %s23, %s24
    %p38 = scmp.eq.s32.totalorder %s16, 1
    %p39 = por %p37, %p38
    %p41 = scmp.ne.s32.totalorder %s24, %s40
    %p42 = scmp.eq.s32.totalorder %s16, 0
    %p43 = por %p41, %p42
    %s45 = sadd.s32 %s44, 1
    %p48 = scmp.eq.s32.totalorder %s10, 1
    %p49 = scmp.ne.s32.totalorder %s44, %s46
    %p50 = scmp.eq.s32.totalorder %s10, 0
    %p51 = por %p49, %p50
    %p52 = scmp.ne.s32.totalorder %s44, %s46
    %p53 = scmp.eq.s32.totalorder %s15, 1
    %p54 = por %p52, %p53
    %p55 = scmp.ne.s32.totalorder %s46, %s47
    %p56 = scmp.eq.s32.totalorder %s15, 0
    %p57 = por %p55, %p56
    %p58 = scmp.ne.s32.totalorder %s46, %s47
    %p59 = scmp.eq.s32.totalorder %s16, 1
    %p60 = por %p58, %p59
    %p62 = scmp.ne.s32.totalorder %s47, %s61
    %p63 = scmp.eq.s32.totalorder %s16, 0
    %p64 = por %p62, %p63
    %s66 = sadd.s32 %s65, 1
    %p69 = scmp.eq.s32.totalorder %s10, 1
    %p70 = scmp.ne.s32.totalorder %s65, %s67
    %p71 = scmp.eq.s32.totalorder %s10, 0
    %p72 = por %p70, %p71
    %p73 = scmp.ne.s32.totalorder %s65, %s67
    %p74 = scmp.eq.s32.totalorder %s15, 1
    %p75 = por %p73, %p74
    %p76 = scmp.ne.s32.totalorder %s67, %s68
    %p77 = scmp.eq.s32.totalorder %s15, 0
    %p78 = por %p76, %p77
    %p79 = scmp.ne.s32.totalorder %s67, %s68
    %p80 = scmp.eq.s32.totalorder %s16, 1
    %p81 = por %p79, %p80
    %p83 = scmp.ne.s32.totalorder %s68, %s82
    %p84 = scmp.eq.s32.totalorder %s16, 0
    %p85 = por %p83, %p84
    %s86 = ssub.s32 %s10, %s17
    %p87 = scmp.eq.s32.totalorder %s86, 0
    %s89 = sadd.s32 %s88, 1
    %s90 = scalar_select %p87, %s88, %s89
    %p93 = pneg %p87
    %p94 = scmp.eq.s32.totalorder %s10, 1
    %p95 = por %p93, %p94
    %p96 = scmp.ne.s32.totalorder %s88, %s91
    %p97 = scmp.eq.s32.totalorder %s10, 0
    %p98 = por %p96, %p97
    %p99 = scmp.ne.s32.totalorder %s88, %s91
    %p100 = scmp.eq.s32.totalorder %s15, 1
    %p101 = por %p99, %p100
    %p102 = scmp.ne.s32.totalorder %s91, %s92
    %p103 = scmp.eq.s32.totalorder %s15, 0
    %p104 = por %p102, %p103
    %p105 = scmp.ne.s32.totalorder %s91, %s92
    %p106 = scmp.eq.s32.totalorder %s16, 1
    %p107 = por %p105, %p106
    %p109 = scmp.ne.s32.totalorder %s92, %s108
    %p110 = scmp.eq.s32.totalorder %s16, 0
    %p111 = por %p109, %p110
    %s112 = ssub.s32 %s10, %s17
    %p113 = scmp.eq.s32.totalorder %s112, 0
    %s115 = sadd.s32 %s114, 1
    %s116 = scalar_select %p113, %s114, %s115
    %p119 = pneg %p113
    %p120 = scmp.eq.s32.totalorder %s10, 1
    %p121 = por %p119, %p120
    %p122 = scmp.ne.s32.totalorder %s114, %s117
    %p123 = scmp.eq.s32.totalorder %s10, 0
    %p124 = por %p122, %p123
    %p125 = scmp.ne.s32.totalorder %s114, %s117
    %p126 = scmp.eq.s32.totalorder %s15, 1
    %p127 = por %p125, %p126
    %p128 = scmp.ne.s32.totalorder %s117, %s118
    %p129 = scmp.eq.s32.totalorder %s15, 0
    %p130 = por %p128, %p129
    %p131 = scmp.ne.s32.totalorder %s117, %s118
    %p132 = scmp.eq.s32.totalorder %s16, 1
    %p133 = por %p131, %p132
    %p135 = scmp.ne.s32.totalorder %s118, %s134
    %p136 = scmp.eq.s32.totalorder %s16, 0
    %p137 = por %p135, %p136
    %p138 = scmp.le.s32.totalorder 1, %s10
    %p139 = scmp.lt.s32.totalorder %s10, 3
    %p140 = pnand %p138, %p139
    %p141 = pneg %p140
    // Predicated region
    $region9: #{decoder_layer.8} parent=5 // pred_check
      _
    $region10: #{decoder_layer.8} parent=5 // pred_check_branch
      %143 = sbr.rel (%p140) target = $region12
    $region11: #{decoder_layer.8} parent=5 // pred_region
      %s144 = ssub.s32 %s10, 1
      // Predicated region
      $region13: #{decoder_layer.8} parent=11 // pred_check
        %p145 = pneg %p57
      $region14: #{decoder_layer.8} parent=11 // pred_check_branch
        %147 = sbr.rel (%p145) target = $region16
      $region15: #{decoder_layer.8} parent=11 // pred_region
        _
      $region16: #{decoder_layer.8} parent=11 // pred_fallthru
        _
      // Predicated region
      $region17: #{decoder_layer.8} parent=11 // pred_check
        %p148 = pneg %p78
      $region18: #{decoder_layer.8} parent=11 // pred_check_branch
        %150 = sbr.rel (%p148) target = $region20
      $region19: #{decoder_layer.8} parent=11 // pred_region
        _
      $region20: #{decoder_layer.8} parent=11 // pred_fallthru
        _
    $region12: #{decoder_layer.8} parent=5 // pred_fallthru
      _
    %p151 = scmp.lt.s32.totalorder %s10, 2
    // Predicated region
    $region21: #{decoder_layer.8} parent=5 // pred_check
      %p152 = pneg %p151
    $region22: #{decoder_layer.8} parent=5 // pred_check_branch
      %154 = sbr.rel (%p152) target = $region24
    $region23: #{decoder_layer.8} parent=5 // pred_region
      // Predicated region
      $region25: #{decoder_layer.8} parent=23 // pred_check
        %p155 = pneg %p30
      $region26: #{decoder_layer.8} parent=23 // pred_check_branch
        %157 = sbr.rel (%p155) target = $region28
      $region27: #{decoder_layer.8} parent=23 // pred_region
        %p158 = scmp.lt.s32.totalorder %s10, 1
        %s159 = scalar_select %p158, %s10, 1
        %s160 = smul.addr %s159, 8
        %s161 = scalar_lea.vmem %s0, %s160
      $region28: #{decoder_layer.8} parent=23 // pred_fallthru
        _
      // Predicated region
      $region29: #{decoder_layer.8} parent=23 // pred_check
        %p162 = pneg %p98
      $region30: #{decoder_layer.8} parent=23 // pred_check_branch
        %164 = sbr.rel (%p162) target = $region32
      $region31: #{decoder_layer.8} parent=23 // pred_region
        %p165 = scmp.lt.s32.totalorder %s10, 1
        %s166 = scalar_select %p165, %s10, 1
        %s167 = smul.addr %s166, 8
        %s168 = scalar_lea.vmem %s3, %s167
      $region32: #{decoder_layer.8} parent=23 // pred_fallthru
        _
    $region24: #{decoder_layer.8} parent=5 // pred_fallthru
      _
    %p169 = scmp.le.s32.totalorder 1, %s10
    %p170 = scmp.lt.s32.totalorder %s10, 3
    %p171 = pnand %p169, %p170
    %p172 = pneg %p171
    // Predicated region
    $region33: #{decoder_layer.8} parent=5 // pred_check
      _
    $region34: #{decoder_layer.8} parent=5 // pred_check_branch
      %174 = sbr.rel (%p171) target = $region36
    $region35: #{decoder_layer.8} parent=5 // pred_region
      %s175 = ssub.s32 %s10, 1
      %p176 = scmp.lt.s32.totalorder %s15, 1
      %s177 = scalar_select %p176, %s15, 1
      %s178 = smul.addr %s177, 8
      %s179 = scalar_lea.vmem %s0, %s178
      %p180 = pneg %p36
      %p181 = pneg %p33
      %p182 = pneg %p57
      %p183 = pneg %p54
      %p184 = pneg %p78
      %p185 = pneg %p75
      %p186 = scmp.lt.s32.totalorder %s15, 1
      %s187 = scalar_select %p186, %s15, 1
      %s188 = smul.addr %s187, 8
      %s189 = scalar_lea.vmem %s3, %s188
      %p190 = pneg %p104
      %p191 = pneg %p101
      %p192 = pneg %p130
      %p193 = pneg %p127
      %p194 = scmp.lt.s32.totalorder %s15, 1
      %s195 = scalar_select %p194, %s15, 1
      %s196 = smul.addr %s195, 8
      %s197 = scalar_lea.vmem %s4, %s196
      %p198 = scmp.lt.s32.totalorder %s15, 1
      %s199 = scalar_select %p198, %s15, 1
      %s200 = smul.addr %s199, 8
      %s201 = scalar_lea.vmem %s0, %s200
      %p202 = scmp.lt.s32.totalorder %s15, 1
      %s203 = scalar_select %p202, %s15, 1
      %s204 = smul.addr %s203, 8
      %s205 = scalar_lea.vmem %s3, %s204
      %p206 = scmp.lt.s32.totalorder %s15, 1
      %s207 = scalar_select %p206, %s15, 1
      %s208 = smul.addr %s207, 8
      %s209 = scalar_lea.vmem %s4, %s208
      %v211 = vld [vmem:[%s201] sm:$0xff]
      %v212 = vmul.f32 %v211, 0.35355338
      %v213 = vpack.c.bf16 %v212, %v212
      %v214 = vpack.c.bf16 %v211, %v211
      %216 = vrot.lane.b32.xlu0 %v214, 96
      %v217 = vpop.permute.xlu0 %216
      %vm218 = vcmask 64512
      %v220 = vsel %vm218, %v213, 0
      %v223 = vsel %vm218, %v217, 0
      %225 = vmatprep.subr.bf16.mxu0 0
      %226 = vmatpush1.bf16.xpose.msra.mxu0 %v223
      %227 = vmatprep.subr.bf16.mxu0 0
      %228 = vmatpush1.bf16.xpose.msra.mxu0 0
      %229 = vmatprep.subr.bf16.mxu0 0
      %230 = vmatpush1.bf16.xpose.msra.mxu0 0
      %231 = vmatprep.subr.bf16.mxu0 0
      %232 = vmatpush1.bf16.xpose.msra.mxu0 0
      %233 = vmatprep.subr.bf16.mxu0 0
      %234 = vmatpush1.bf16.xpose.msra.mxu0 0
      %235 = vmatprep.subr.bf16.mxu0 0
      %236 = vmatpush1.bf16.xpose.msra.mxu0 0
      %237 = vmatprep.subr.bf16.mxu0 0
      %238 = vmatpush1.bf16.xpose.msra.mxu0 0
      %239 = vmatprep.subr.bf16.mxu0 0
      %240 = vmatpush1.bf16.xpose.msra.mxu0 0
      %241 = vmatprep.subr.bf16.mxu0 0
      %242 = vmatpush1.bf16.xpose.msra.mxu0 0
      %243 = vmatprep.subr.bf16.mxu0 0
      %244 = vmatpush1.bf16.xpose.msra.mxu0 0
      %245 = vmatprep.subr.bf16.mxu0 0
      %246 = vmatpush1.bf16.xpose.msra.mxu0 0
      %247 = vmatprep.subr.bf16.mxu0 0
      %248 = vmatpush1.bf16.xpose.msra.mxu0 0
      %249 = vmatprep.subr.bf16.mxu0 0
      %250 = vmatpush1.bf16.xpose.msra.mxu0 0
      %251 = vmatprep.subr.bf16.mxu0 0
      %252 = vmatpush1.bf16.xpose.msra.mxu0 0
      %253 = vmatprep.subr.bf16.mxu0 0
      %254 = vmatpush1.bf16.xpose.msra.mxu0 0
      %255 = vmatprep.subr.bf16.mxu0 0
      %256 = vmatpush1.bf16.xpose.msra.mxu0 0
      %257 = vmatprep.mubr.bf16.mxu0 0
      %258 = vmatmul.mubr.bf16.gmra.mrb[0].mxu0 %v220
      %v259 = vpop.f32.mrb[0].mxu0
      %v260 = vadd.f32 0.0, %v259
      %v261 = vpop.f32.mrb[0].mxu0
      %v262 = vpop.f32.mrb[0].mxu0
      %v263 = vpop.f32.mrb[0].mxu0
      %264 = vdwg.mxu0
      %v265 = vsel %vm218, %v260, -inf
      %266 = vmax.xlane.f32.xlu0 %v265
      %v267 = vpop.xlane.xlu0 %266
      %v268 = vsub.f32 %v260, %v267
      %v269 = vmul.f32 %v268, 1.442695
      %v270 = vpow.pop %v269
      %v271 = vsel %vm218, %v270, 0.0
      %272 = vadd.xlane.f32.xlu0 %v271
      %v273 = vpop.xlane.xlu0 %272
      %v274 = vrcp.pop %v273
      %v275 = vmul.f32 %v270, %v274
      %v276 = vpack.c.bf16 %v275, %v275
      %277 = vrot.lane.b32.xlu0 %v214, 64
      %v278 = vpop.permute.xlu0 %277
      %v280 = vsel %vm218, %v276, 0
      %vm282 = vcmask 1043456
      %v284 = vsel %vm282, %v278, 0
      %286 = vmatprep.subr.bf16.mxu0 0
      %287 = vmatpush1.bf16.msra.mxu0 %v284
      %288 = vmatprep.subr.bf16.mxu0 0
      %289 = vmatpush1.bf16.msra.mxu0 0
      %290 = vmatprep.subr.bf16.mxu0 0
      %291 = vmatpush1.bf16.msra.mxu0 0
      %292 = vmatprep.subr.bf16.mxu0 0
      %293 = vmatpush1.bf16.msra.mxu0 0
      %294 = vmatprep.subr.bf16.mxu0 0
      %295 = vmatpush1.bf16.msra.mxu0 0
      %296 = vmatprep.subr.bf16.mxu0 0
      %297 = vmatpush1.bf16.msra.mxu0 0
      %298 = vmatprep.subr.bf16.mxu0 0
      %299 = vmatpush1.bf16.msra.mxu0 0
      %300 = vmatprep.subr.bf16.mxu0 0
      %301 = vmatpush1.bf16.msra.mxu0 0
      %302 = vmatprep.subr.bf16.mxu0 0
      %303 = vmatpush1.bf16.msra.mxu0 0
      %304 = vmatprep.subr.bf16.mxu0 0
      %305 = vmatpush1.bf16.msra.mxu0 0
      %306 = vmatprep.subr.bf16.mxu0 0
      %307 = vmatpush1.bf16.msra.mxu0 0
      %308 = vmatprep.subr.bf16.mxu0 0
      %309 = vmatpush1.bf16.msra.mxu0 0
      %310 = vmatprep.subr.bf16.mxu0 0
      %311 = vmatpush1.bf16.msra.mxu0 0
      %312 = vmatprep.subr.bf16.mxu0 0
      %313 = vmatpush1.bf16.msra.mxu0 0
      %314 = vmatprep.subr.bf16.mxu0 0
      %315 = vmatpush1.bf16.msra.mxu0 0
      %316 = vmatprep.subr.bf16.mxu0 0
      %317 = vmatpush1.bf16.msra.mxu0 0
      %318 = vmatprep.mubr.bf16.mxu0 0
      %319 = vmatmul.mubr.bf16.gmra.mrb[0].mxu0 %v280
      %v320 = vpop.f32.mrb[0].mxu0
      %v321 = vadd.f32 0.0, %v320
      %v322 = vpop.f32.mrb[0].mxu0
      %v323 = vpop.f32.mrb[0].mxu0
      %v324 = vpop.f32.mrb[0].mxu0
      %325 = vdwg.mxu0
      %327 = vrot.lane.b32.xlu0 %v213, 120
      %v328 = vpop.permute.xlu0 %327
      %329 = vrot.lane.b32.xlu0 %v214, 88
      %v330 = vpop.permute.xlu0 %329
      %v332 = vsel %vm218, %v328, 0
      %v335 = vsel %vm218, %v330, 0
      %337 = vmatprep.subr.bf16.mxu0 0
      %338 = vmatpush1.bf16.xpose.msra.mxu0 %v335
      %339 = vmatprep.subr.bf16.mxu0 0
      %340 = vmatpush1.bf16.xpose.msra.mxu0 0
      %341 = vmatprep.subr.bf16.mxu0 0
      %342 = vmatpush1.bf16.xpose.msra.mxu0 0
      %343 = vmatprep.subr.bf16.mxu0 0
      %344 = vmatpush1.bf16.xpose.msra.mxu0 0
      %345 = vmatprep.subr.bf16.mxu0 0
      %346 = vmatpush1.bf16.xpose.msra.mxu0 0
      %347 = vmatprep.subr.bf16.mxu0 0
      %348 = vmatpush1.bf16.xpose.msra.mxu0 0
      %349 = vmatprep.subr.bf16.mxu0 0
      %350 = vmatpush1.bf16.xpose.msra.mxu0 0
      %351 = vmatprep.subr.bf16.mxu0 0
      %352 = vmatpush1.bf16.xpose.msra.mxu0 0
      %353 = vmatprep.subr.bf16.mxu0 0
      %354 = vmatpush1.bf16.xpose.msra.mxu0 0
      %355 = vmatprep.subr.bf16.mxu0 0
      %356 = vmatpush1.bf16.xpose.msra.mxu0 0
      %357 = vmatprep.subr.bf16.mxu0 0
      %358 = vmatpush1.bf16.xpose.msra.mxu0 0
      %359 = vmatprep.subr.bf16.mxu0 0
      %360 = vmatpush1.bf16.xpose.msra.mxu0 0
      %361 = vmatprep.subr.bf16.mxu0 0
      %362 = vmatpush1.bf16.xpose.msra.mxu0 0
      %363 = vmatprep.subr.bf16.mxu0 0
      %364 = vmatpush1.bf16.xpose.msra.mxu0 0
      %365 = vmatprep.subr.bf16.mxu0 0
      %366 = vmatpush1.bf16.xpose.msra.mxu0 0
      %367 = vmatprep.subr.bf16.mxu0 0
      %368 = vmatpush1.bf16.xpose.msra.mxu0 0
      %369 = vmatprep.mubr.bf16.mxu0 0
      %370 = vmatmul.mubr.bf16.gmra.mrb[0].mxu0 %v332
      %v371 = vpop.f32.mrb[0].mxu0
      %v372 = vadd.f32 0.0, %v371
      %v373 = vpop.f32.mrb[0].mxu0
      %v374 = vpop.f32.mrb[0].mxu0
      %v375 = vpop.f32.mrb[0].mxu0
      %376 = vdwg.mxu0
      %v377 = vsel %vm218, %v372, -inf
      %378 = vmax.xlane.f32.xlu0 %v377
      %v379 = vpop.xlane.xlu0 %378
      %v380 = vsub.f32 %v372, %v379
      %v381 = vmul.f32 %v380, 1.442695
      %v382 = vpow.pop %v381
      %v383 = vsel %vm218, %v382, 0.0
      %384 = vadd.xlane.f32.xlu0 %v383
      %v385 = vpop.xlane.xlu0 %384
      %v386 = vrcp.pop %v385
      %v387 = vmul.f32 %v382, %v386
      %v388 = vpack.c.bf16 %v387, %v387
      %389 = vrot.lane.b32.xlu0 %v214, 56
      %v390 = vpop.permute.xlu0 %389
      %v392 = vsel %vm218, %v388, 0
      %v395 = vsel %vm282, %v390, 0
      %397 = vmatprep.subr.bf16.mxu0 0
      %398 = vmatpush1.bf16.msra.mxu0 %v395
      %399 = vmatprep.subr.bf16.mxu0 0
      %400 = vmatpush1.bf16.msra.mxu0 0
      %401 = vmatprep.subr.bf16.mxu0 0
      %402 = vmatpush1.bf16.msra.mxu0 0
      %403 = vmatprep.subr.bf16.mxu0 0
      %404 = vmatpush1.bf16.msra.mxu0 0
      %405 = vmatprep.subr.bf16.mxu0 0
      %406 = vmatpush1.bf16.msra.mxu0 0
      %407 = vmatprep.subr.bf16.mxu0 0
      %408 = vmatpush1.bf16.msra.mxu0 0
      %409 = vmatprep.subr.bf16.mxu0 0
      %410 = vmatpush1.bf16.msra.mxu0 0
      %411 = vmatprep.subr.bf16.mxu0 0
      %412 = vmatpush1.bf16.msra.mxu0 0
      %413 = vmatprep.subr.bf16.mxu0 0
      %414 = vmatpush1.bf16.msra.mxu0 0
      %415 = vmatprep.subr.bf16.mxu0 0
      %416 = vmatpush1.bf16.msra.mxu0 0
      %417 = vmatprep.subr.bf16.mxu0 0
      %418 = vmatpush1.bf16.msra.mxu0 0
      %419 = vmatprep.subr.bf16.mxu0 0
      %420 = vmatpush1.bf16.msra.mxu0 0
      %421 = vmatprep.subr.bf16.mxu0 0
      %422 = vmatpush1.bf16.msra.mxu0 0
      %423 = vmatprep.subr.bf16.mxu0 0
      %424 = vmatpush1.bf16.msra.mxu0 0
      %425 = vmatprep.subr.bf16.mxu0 0
      %426 = vmatpush1.bf16.msra.mxu0 0
      %427 = vmatprep.subr.bf16.mxu0 0
      %428 = vmatpush1.bf16.msra.mxu0 0
      %429 = vmatprep.mubr.bf16.mxu0 0
      %430 = vmatmul.mubr.bf16.gmra.mrb[0].mxu0 %v392
      %v431 = vpop.f32.mrb[0].mxu0
      %v432 = vadd.f32 0.0, %v431
      %v433 = vpop.f32.mrb[0].mxu0
      %v434 = vpop.f32.mrb[0].mxu0
      %v435 = vpop.f32.mrb[0].mxu0
      %436 = vdwg.mxu0
      %437 = vrot.lane.b32.xlu0 %v213, 112
      %v438 = vpop.permute.xlu0 %437
      %439 = vrot.lane.b32.xlu0 %v214, 80
      %v440 = vpop.permute.xlu0 %439
      %v442 = vsel %vm218, %v438, 0
      %v445 = vsel %vm218, %v440, 0
      %447 = vmatprep.subr.bf16.mxu0 0
      %448 = vmatpush1.bf16.xpose.msra.mxu0 %v445
      %449 = vmatprep.subr.bf16.mxu0 0
      %450 = vmatpush1.bf16.xpose.msra.mxu0 0
      %451 = vmatprep.subr.bf16.mxu0 0
      %452 = vmatpush1.bf16.xpose.msra.mxu0 0
      %453 = vmatprep.subr.bf16.mxu0 0
      %454 = vmatpush1.bf16.xpose.msra.mxu0 0
      %455 = vmatprep.subr.bf16.mxu0 0
      %456 = vmatpush1.bf16.xpose.msra.mxu0 0
      %457 = vmatprep.subr.bf16.mxu0 0
      %458 = vmatpush1.bf16.xpose.msra.mxu0 0
      %459 = vmatprep.subr.bf16.mxu0 0
      %460 = vmatpush1.bf16.xpose.msra.mxu0 0
      %461 = vmatprep.subr.bf16.mxu0 0
      %462 = vmatpush1.bf16.xpose.msra.mxu0 0
      %463 = vmatprep.subr.bf16.mxu0 0
      %464 = vmatpush1.bf16.xpose.msra.mxu0 0
      %465 = vmatprep.subr.bf16.mxu0 0
      %466 = vmatpush1.bf16.xpose.msra.mxu0 0
      %467 = vmatprep.subr.bf16.mxu0 0
      %468 = vmatpush1.bf16.xpose.msra.mxu0 0
      %469 = vmatprep.subr.bf16.mxu0 0
      %470 = vmatpush1.bf16.xpose.msra.mxu0 0
      %471 = vmatprep.subr.bf16.mxu0 0
      %472 = vmatpush1.bf16.xpose.msra.mxu0 0
      %473 = vmatprep.subr.bf16.mxu0 0
      %474 = vmatpush1.bf16.xpose.msra.mxu0 0
      %475 = vmatprep.subr.bf16.mxu0 0
      %476 = vmatpush1.bf16.xpose.msra.mxu0 0
      %477 = vmatprep.subr.bf16.mxu0 0
      %478 = vmatpush1.bf16.xpose.msra.mxu0 0
      %479 = vmatprep.mubr.bf16.mxu0 0
      %480 = vmatmul.mubr.bf16.gmra.mrb[0].mxu0 %v442
      %v481 = vpop.f32.mrb[0].mxu0
      %v482 = vadd.f32 0.0, %v481
      %v483 = vpop.f32.mrb[0].mxu0
      %v484 = vpop.f32.mrb[0].mxu0
      %v485 = vpop.f32.mrb[0].mxu0
      %486 = vdwg.mxu0
      %v487 = vsel %vm218, %v482, -inf
      %488 = vmax.xlane.f32.xlu0 %v487
      %v489 = vpop.xlane.xlu0 %488
      %v490 = vsub.f32 %v482, %v489
      %v491 = vmul.f32 %v490, 1.442695
      %v492 = vpow.pop %v491
      %v493 = vsel %vm218, %v492, 0.0
      %494 = vadd.xlane.f32.xlu0 %v493
      %v495 = vpop.xlane.xlu0 %494
      %v496 = vrcp.pop %v495
      %v497 = vmul.f32 %v492, %v496
      %v498 = vpack.c.bf16 %v497, %v497
      %499 = vrot.lane.b32.xlu0 %v214, 48
      %v500 = vpop.permute.xlu0 %499
      %v502 = vsel %vm218, %v498, 0
      %v505 = vsel %vm282, %v500, 0
      %507 = vmatprep.subr.bf16.mxu0 0
      %508 = vmatpush1.bf16.msra.mxu0 %v505
      %509 = vmatprep.subr.bf16.mxu0 0
      %510 = vmatpush1.bf16.msra.mxu0 0
      %511 = vmatprep.subr.bf16.mxu0 0
      %512 = vmatpush1.bf16.msra.mxu0 0
      %513 = vmatprep.subr.bf16.mxu0 0
      %514 = vmatpush1.bf16.msra.mxu0 0
      %515 = vmatprep.subr.bf16.mxu0 0
      %516 = vmatpush1.bf16.msra.mxu0 0
      %517 = vmatprep.subr.bf16.mxu0 0
      %518 = vmatpush1.bf16.msra.mxu0 0
      %519 = vmatprep.subr.bf16.mxu0 0
      %520 = vmatpush1.bf16.msra.mxu0 0
      %521 = vmatprep.subr.bf16.mxu0 0
      %522 = vmatpush1.bf16.msra.mxu0 0
      %523 = vmatprep.subr.bf16.mxu0 0
      %524 = vmatpush1.bf16.msra.mxu0 0
      %525 = vmatprep.subr.bf16.mxu0 0
      %526 = vmatpush1.bf16.msra.mxu0 0
      %527 = vmatprep.subr.bf16.mxu0 0
      %528 = vmatpush1.bf16.msra.mxu0 0
      %529 = vmatprep.subr.bf16.mxu0 0
      %530 = vmatpush1.bf16.msra.mxu0 0
      %531 = vmatprep.subr.bf16.mxu0 0
      %532 = vmatpush1.bf16.msra.mxu0 0
      %533 = vmatprep.subr.bf16.mxu0 0
      %534 = vmatpush1.bf16.msra.mxu0 0
      %535 = vmatprep.subr.bf16.mxu0 0
      %536 = vmatpush1.bf16.msra.mxu0 0
      %537 = vmatprep.subr.bf16.mxu0 0
      %538 = vmatpush1.bf16.msra.mxu0 0
      %539 = vmatprep.mubr.bf16.mxu0 0
      %540 = vmatmul.mubr.bf16.gmra.mrb[0].mxu0 %v502
      %v541 = vpop.f32.mrb[0].mxu0
      %v542 = vadd.f32 0.0, %v541
      %v543 = vpop.f32.mrb[0].mxu0
      %v544 = vpop.f32.mrb[0].mxu0
      %v545 = vpop.f32.mrb[0].mxu0
      %546 = vdwg.mxu0
      %547 = vrot.lane.b32.xlu0 %v213, 104
      %v548 = vpop.permute.xlu0 %547
      %549 = vrot.lane.b32.xlu0 %v214, 72
      %v550 = vpop.permute.xlu0 %549
      %v552 = vsel %vm218, %v548, 0
      %v555 = vsel %vm218, %v550, 0
      %557 = vmatprep.subr.bf16.mxu0 0
      %558 = vmatpush1.bf16.xpose.msra.mxu0 %v555
      %559 = vmatprep.subr.bf16.mxu0 0
      %560 = vmatpush1.bf16.xpose.msra.mxu0 0
      %561 = vmatprep.subr.bf16.mxu0 0
      %562 = vmatpush1.bf16.xpose.msra.mxu0 0
      %563 = vmatprep.subr.bf16.mxu0 0
      %564 = vmatpush1.bf16.xpose.msra.mxu0 0
      %565 = vmatprep.subr.bf16.mxu0 0
      %566 = vmatpush1.bf16.xpose.msra.mxu0 0
      %567 = vmatprep.subr.bf16.mxu0 0
      %568 = vmatpush1.bf16.xpose.msra.mxu0 0
      %569 = vmatprep.subr.bf16.mxu0 0
      %570 = vmatpush1.bf16.xpose.msra.mxu0 0
      %571 = vmatprep.subr.bf16.mxu0 0
      %572 = vmatpush1.bf16.xpose.msra.mxu0 0
      %573 = vmatprep.subr.bf16.mxu0 0
      %574 = vmatpush1.bf16.xpose.msra.mxu0 0
      %575 = vmatprep.subr.bf16.mxu0 0
      %576 = vmatpush1.bf16.xpose.msra.mxu0 0
      %577 = vmatprep.subr.bf16.mxu0 0
      %578 = vmatpush1.bf16.xpose.msra.mxu0 0
      %579 = vmatprep.subr.bf16.mxu0 0
      %580 = vmatpush1.bf16.xpose.msra.mxu0 0
      %581 = vmatprep.subr.bf16.mxu0 0
      %582 = vmatpush1.bf16.xpose.msra.mxu0 0
      %583 = vmatprep.subr.bf16.mxu0 0
      %584 = vmatpush1.bf16.xpose.msra.mxu0 0
      %585 = vmatprep.subr.bf16.mxu0 0
      %586 = vmatpush1.bf16.xpose.msra.mxu0 0
      %587 = vmatprep.subr.bf16.mxu0 0
      %588 = vmatpush1.bf16.xpose.msra.mxu0 0
      %589 = vmatprep.mubr.bf16.mxu0 0
      %590 = vmatmul.mubr.bf16.gmra.mrb[0].mxu0 %v552
      %v591 = vpop.f32.mrb[0].mxu0
      %v592 = vadd.f32 0.0, %v591
      %v593 = vpop.f32.mrb[0].mxu0
      %v594 = vpop.f32.mrb[0].mxu0
      %v595 = vpop.f32.mrb[0].mxu0
      %596 = vdwg.mxu0
      %v597 = vsel %vm218, %v592, -inf
      %598 = vmax.xlane.f32.xlu0 %v597
      %v599 = vpop.xlane.xlu0 %598
      %v600 = vsub.f32 %v592, %v599
      %v601 = vmul.f32 %v600, 1.442695
      %v602 = vpow.pop %v601
      %v603 = vsel %vm218, %v602, 0.0
      %604 = vadd.xlane.f32.xlu0 %v603
      %v605 = vpop.xlane.xlu0 %604
      %v606 = vrcp.pop %v605
      %v607 = vmul.f32 %v602, %v606
      %v608 = vpack.c.bf16 %v607, %v607
      %609 = vrot.lane.b32.xlu0 %v214, 40
      %v610 = vpop.permute.xlu0 %609
      %v612 = vsel %vm218, %v608, 0
      %v615 = vsel %vm282, %v610, 0
      %617 = vmatprep.subr.bf16.mxu0 0
      %618 = vmatpush1.bf16.msra.mxu0 %v615
      %619 = vmatprep.subr.bf16.mxu0 0
      %620 = vmatpush1.bf16.msra.mxu0 0
      %621 = vmatprep.subr.bf16.mxu0 0
      %622 = vmatpush1.bf16.msra.mxu0 0
      %623 = vmatprep.subr.bf16.mxu0 0
      %624 = vmatpush1.bf16.msra.mxu0 0
      %625 = vmatprep.subr.bf16.mxu0 0
      %626 = vmatpush1.bf16.msra.mxu0 0
      %627 = vmatprep.subr.bf16.mxu0 0
      %628 = vmatpush1.bf16.msra.mxu0 0
      %629 = vmatprep.subr.bf16.mxu0 0
      %630 = vmatpush1.bf16.msra.mxu0 0
      %631 = vmatprep.subr.bf16.mxu0 0
      %632 = vmatpush1.bf16.msra.mxu0 0
      %633 = vmatprep.subr.bf16.mxu0 0
      %634 = vmatpush1.bf16.msra.mxu0 0
      %635 = vmatprep.subr.bf16.mxu0 0
      %636 = vmatpush1.bf16.msra.mxu0 0
      %637 = vmatprep.subr.bf16.mxu0 0
      %638 = vmatpush1.bf16.msra.mxu0 0
      %639 = vmatprep.subr.bf16.mxu0 0
      %640 = vmatpush1.bf16.msra.mxu0 0
      %641 = vmatprep.subr.bf16.mxu0 0
      %642 = vmatpush1.bf16.msra.mxu0 0
      %643 = vmatprep.subr.bf16.mxu0 0
      %644 = vmatpush1.bf16.msra.mxu0 0
      %645 = vmatprep.subr.bf16.mxu0 0
      %646 = vmatpush1.bf16.msra.mxu0 0
      %647 = vmatprep.subr.bf16.mxu0 0
      %648 = vmatpush1.bf16.msra.mxu0 0
      %649 = vmatprep.mubr.bf16.mxu0 0
      %650 = vmatmul.mubr.bf16.gmra.mrb[0].mxu0 %v612
      %v651 = vpop.f32.mrb[0].mxu0
      %v652 = vadd.f32 0.0, %v651
      %v653 = vpop.f32.mrb[0].mxu0
      %v654 = vpop.f32.mrb[0].mxu0
      %v655 = vpop.f32.mrb[0].mxu0
      %656 = vdwg.mxu0
      %658 = vrot.lane.b32.xlu0 %v432, 8
      %v659 = vpop.permute.xlu0 %658
      %662 = vrot.lane.b32.xlu0 %v542, 16
      %v663 = vpop.permute.xlu0 %662
      %666 = vrot.lane.b32.xlu0 %v652, 24
      %v667 = vpop.permute.xlu0 %666
      %v669 = vsel %vm218, %v321, %v659
      %vm670 = vcmask 130048
      %v671 = vsel %vm670, %v669, %v663
      %vm672 = vcmask 195584
      %v673 = vsel %vm672, %v671, %v667
      %v674 = vpack.c.bf16 %v673, %v673
      %v675 = vld [vmem:[%s1] sm:$0xf]
      %v676 = vld [vmem:[%s1 + $0x4] sm:$0xf]
      %v677 = vld [vmem:[%s1 + $0x8] sm:$0xf]
      %v678 = vld [vmem:[%s1 + $0xc] sm:$0xf]
      %v679 = vld [vmem:[%s2] sm:$0x1]
      %v681 = vlaneseq
      %v682 = vshrl.u32 %v681, 7
      %v683 = vsub.s32 0, %v682
      %v684 = vrot.slane %v679, %v683
      %v690 = vunpack.c.l.b16 %v675
      %v691 = vunpack.c.l.b16 %v676
      %v692 = vunpack.c.l.b16 %v677
      %v693 = vunpack.c.l.b16 %v678
      %v694 = vpack.c.b16 %v691, %v690
      %v695 = vpack.c.b16 %v693, %v692
      %vm698 = vcmask 261120
      %v700 = vsel %vm698, %v674, 0
      %702 = vmatprep.subr.bf16.mxu0 0
      %703 = vmatpush1.bf16.msra.mxu0 %v694
      %704 = vmatprep.subr.bf16.mxu0 0
      %705 = vmatpush1.bf16.msra.mxu0 %v695
      %706 = vmatprep.subr.bf16.mxu0 0
      %707 = vmatpush1.bf16.msra.mxu0 0
      %708 = vmatprep.subr.bf16.mxu0 0
      %709 = vmatpush1.bf16.msra.mxu0 0
      %710 = vmatprep.subr.bf16.mxu0 0
      %711 = vmatpush1.bf16.msra.mxu0 0
      %712 = vmatprep.subr.bf16.mxu0 0
      %713 = vmatpush1.bf16.msra.mxu0 0
      %714 = vmatprep.subr.bf16.mxu0 0
      %715 = vmatpush1.bf16.msra.mxu0 0
      %716 = vmatprep.subr.bf16.mxu0 0
      %717 = vmatpush1.bf16.msra.mxu0 0
      %718 = vmatprep.subr.bf16.mxu0 0
      %719 = vmatpush1.bf16.msra.mxu0 0
      %720 = vmatprep.subr.bf16.mxu0 0
      %721 = vmatpush1.bf16.msra.mxu0 0
      %722 = vmatprep.subr.bf16.mxu0 0
      %723 = vmatpush1.bf16.msra.mxu0 0
      %724 = vmatprep.subr.bf16.mxu0 0
      %725 = vmatpush1.bf16.msra.mxu0 0
      %726 = vmatprep.subr.bf16.mxu0 0
      %727 = vmatpush1.bf16.msra.mxu0 0
      %728 = vmatprep.subr.bf16.mxu0 0
      %729 = vmatpush1.bf16.msra.mxu0 0
      %730 = vmatprep.subr.bf16.mxu0 0
      %731 = vmatpush1.bf16.msra.mxu0 0
      %732 = vmatprep.subr.bf16.mxu0 0
      %733 = vmatpush1.bf16.msra.mxu0 0
      %734 = vmatprep.mubr.bf16.mxu0 0
      %735 = vmatmul.mubr.bf16.gmra.mrb[0].mxu0 %v700
      %v736 = vpop.f32.mrb[0].mxu0
      %v737 = vadd.f32 %v684, %v736
      %v738 = vpop.f32.mrb[0].mxu0
      %v739 = vpop.f32.mrb[0].mxu0
      %v740 = vpop.f32.mrb[0].mxu0
      %741 = vdwg.mxu0
      %v742 = vld [vmem:[%s205] sm:$0xff]
      %v743 = vadd.f32 %v737, %v742
      %744 = vst.msk [vmem:[%s209] sm:$0xff] %vm698, %v743
      %p745 = scmp.lt.s32.totalorder %s15, 1
      %s746 = scalar_select %p745, %s15, 1
      %s747 = smul.addr %s746, 8
      %s748 = scalar_lea.vmem %s4, %s747
      // Predicated region
      $region37: #{decoder_layer.8} parent=35 // pred_check
        %p749 = pneg %p127
      $region38: #{decoder_layer.8} parent=35 // pred_check_branch
        %751 = sbr.rel (%p749) target = $region40
      $region39: #{decoder_layer.8} parent=35 // pred_region
        _
      $region40: #{decoder_layer.8} parent=35 // pred_fallthru
        _
    $region36: #{decoder_layer.8} parent=5 // pred_fallthru
      _
    %p752 = scmp.le.s32.totalorder 2, %s10
    // Predicated region
    $region41: #{decoder_layer.8} parent=5 // pred_check
      %p753 = pneg %p752
    $region42: #{decoder_layer.8} parent=5 // pred_check_branch
      %755 = sbr.rel (%p753) target = $region44
    $region43: #{decoder_layer.8} parent=5 // pred_region
      %s756 = ssub.s32 %s10, 2
      // Predicated region
      $region45: #{decoder_layer.8} parent=43 // pred_check
        %p757 = pneg %p133
      $region46: #{decoder_layer.8} parent=43 // pred_check_branch
        %759 = sbr.rel (%p757) target = $region48
      $region47: #{decoder_layer.8} parent=43 // pred_region
        %p760 = scmp.lt.s32.totalorder %s16, 1
        %s761 = scalar_select %p760, %s16, 1
        %s762 = smul.addr %s761, 8
        %s763 = scalar_lea.vmem %s4, %s762
      $region48: #{decoder_layer.8} parent=43 // pred_fallthru
        _
    $region44: #{decoder_layer.8} parent=5 // pred_fallthru
      _
  $region6: #{decoder_layer.8} parent=0 // loop_footer
    %s14 = sadd.s32 1, %s10
  $region7: #{decoder_layer.8} parent=0 // loop_footer_branch
    %9 = sbr.rel target = $region3
  $region8: #{decoder_layer.8} parent=0 // loop_exit
    _

// kernel: decoder_layer.9
$region0: #{decoder_layer.9}
  #allocation0 [shape = 'u32[]', space=smem, size = 0x4, offset = 0x4, fixed_abs, tag = 'smem constant byte address 0x4 - core index']
  #allocation1 [shape = 'u32[144,128]{1,0:T(1,128)}', space=vmem, size = 0x12000, scoped, tag = 'internal scratch']
  %s0 = inlined_call_operand.vmem [shape: f32[16,32], index: 0, kind: input, shape index: {}]
  %s1 = inlined_call_operand.vmem [shape: f32[1,32], index: 1, kind: input, shape index: {}]
  %s2 = inlined_call_operand.vmem [shape: f32[1,32], index: 2, kind: input, shape index: {}]
  %s3 = inlined_call_operand.vmem [shape: bf16[32,32], index: 3, kind: input, shape index: {}]
  %s4 = inlined_call_operand.vmem [shape: f32[1,32], index: 4, kind: input, shape index: {}]
  %s5 = inlined_call_operand.vmem [shape: f32[16,32], index: 5, kind: output, shape index: {}]
  %s6 = sld [smem:[#allocation0]]
  $region30: #{decoder_layer.9} parent=0
    _
  %s8 = ssub.s32 1, %s6
  %s9 = scalar_select 0, %s8, %s6
  // Predicated region
  $region2: #{decoder_layer.9} parent=0 // pred_check
    _
  $region3: #{decoder_layer.9} parent=0 // pred_check_branch
    %11 = sbr.rel (0) target = $region5
  $region4: #{decoder_layer.9} parent=0 // pred_region
    _
  $region5: #{decoder_layer.9} parent=0 // pred_fallthru
    _
  // Predicated region
  $region6: #{decoder_layer.9} parent=0 // pred_check
    _
  $region7: #{decoder_layer.9} parent=0 // pred_check_branch
    %13 = sbr.rel (0) target = $region9
  $region8: #{decoder_layer.9} parent=0 // pred_region
    _
  $region9: #{decoder_layer.9} parent=0 // pred_fallthru
    _
  // Predicated region
  $region10: #{decoder_layer.9} parent=0 // pred_check
    _
  $region11: #{decoder_layer.9} parent=0 // pred_check_branch
    %15 = sbr.rel (0) target = $region13
  $region12: #{decoder_layer.9} parent=0 // pred_region
    _
  $region13: #{decoder_layer.9} parent=0 // pred_fallthru
    _
  // Predicated region
  $region14: #{decoder_layer.9} parent=0 // pred_check
    _
  $region15: #{decoder_layer.9} parent=0 // pred_check_branch
    %17 = sbr.rel (0) target = $region17
  $region16: #{decoder_layer.9} parent=0 // pred_region
    _
  $region17: #{decoder_layer.9} parent=0 // pred_fallthru
    _
  // Predicated region
  $region18: #{decoder_layer.9} parent=0 // pred_check
    _
  $region19: #{decoder_layer.9} parent=0 // pred_check_branch
    %19 = sbr.rel (0) target = $region21
  $region20: #{decoder_layer.9} parent=0 // pred_region
    _
  $region21: #{decoder_layer.9} parent=0 // pred_fallthru
    _
  %v21 = vld [vmem:[%s0] sm:$0xff]
  %v22 = vld [vmem:[%s0 + $0x8] sm:$0xff]
  %vm23 = vcmask 261120
  %v24 = vsel %vm23, %v21, 0.0
  %25 = vadd.xlane.f32.xlu0 %v24
  %v26 = vpop.xlane.xlu0 %25
  %v27 = vsel %vm23, %v22, 0.0
  %28 = vadd.xlane.f32.xlu0 %v27
  %v29 = vpop.xlane.xlu0 %28
  %v30 = vrcp.pop 32.0
  %v31 = vmul.f32 %v26, %v30
  %v32 = vmul.f32 %v29, %v30
  %v33 = vsub.f32 %v21, %v31
  %v34 = vsub.f32 %v22, %v32
  %v35 = vmul.f32 %v33, %v33
  %v36 = vmul.f32 %v34, %v34
  %v37 = vsel %vm23, %v35, 0.0
  %38 = vadd.xlane.f32.xlu0 %v37
  %v39 = vpop.xlane.xlu0 %38
  %v40 = vsel %vm23, %v36, 0.0
  %41 = vadd.xlane.f32.xlu0 %v40
  %v42 = vpop.xlane.xlu0 %41
  %v43 = vmul.f32 %v39, %v30
  %v44 = vmul.f32 %v42, %v30
  %v45 = vadd.f32 %v43, 1e-05
  %v46 = vadd.f32 %v44, 1e-05
  %v47 = vrsqrt.pop %v45
  %v48 = vrsqrt.pop %v46
  %v49 = vmul.f32 %v33, %v47
  %v50 = vmul.f32 %v34, %v48
  %v51 = vld [vmem:[%s1] sm:$0x1]
  %v53 = vlaneseq
  %v54 = vshrl.u32 %v53, 7
  %v55 = vsub.s32 0, %v54
  %v56 = vrot.slane %v51, %v55
  %v58 = vmul.f32 %v49, %v56
  %v59 = vmul.f32 %v50, %v56
  %v60 = vld [vmem:[%s2] sm:$0x1]
  %v62 = vlaneseq
  %v63 = vshrl.u32 %v62, 7
  %v64 = vsub.s32 0, %v63
  %v65 = vrot.slane %v60, %v64
  %v67 = vadd.f32 %v58, %v65
  %v68 = vadd.f32 %v59, %v65
  %v69 = vpack.c.bf16 %v68, %v67
  %v70 = vld [vmem:[%s3] sm:$0xf]
  %v71 = vld [vmem:[%s3 + $0x4] sm:$0xf]
  %v72 = vld [vmem:[%s3 + $0x8] sm:$0xf]
  %v73 = vld [vmem:[%s3 + $0xc] sm:$0xf]
  %v74 = vld [vmem:[%s4] sm:$0x1]
  %v76 = vlaneseq
  %v77 = vshrl.u32 %v76, 7
  %v78 = vsub.s32 0, %v77
  %v79 = vrot.slane %v74, %v78
  %v85 = vunpack.c.l.b16 %v70
  %v86 = vunpack.c.l.b16 %v71
  %v87 = vunpack.c.l.b16 %v72
  %v88 = vunpack.c.l.b16 %v73
  %v89 = vpack.c.b16 %v86, %v85
  %v90 = vpack.c.b16 %v88, %v87
  %v94 = vsel %vm23, %v69, 0
  %96 = vmatprep.subr.bf16.mxu0 0
  %97 = vmatpush1.bf16.msra.mxu0 %v89
  %98 = vmatprep.subr.bf16.mxu0 0
  %99 = vmatpush1.bf16.msra.mxu0 %v90
  %100 = vmatprep.subr.bf16.mxu0 0
  %101 = vmatpush1.bf16.msra.mxu0 0
  %102 = vmatprep.subr.bf16.mxu0 0
  %103 = vmatpush1.bf16.msra.mxu0 0
  %104 = vmatprep.subr.bf16.mxu0 0
  %105 = vmatpush1.bf16.msra.mxu0 0
  %106 = vmatprep.subr.bf16.mxu0 0
  %107 = vmatpush1.bf16.msra.mxu0 0
  %108 = vmatprep.subr.bf16.mxu0 0
  %109 = vmatpush1.bf16.msra.mxu0 0
  %110 = vmatprep.subr.bf16.mxu0 0
  %111 = vmatpush1.bf16.msra.mxu0 0
  %112 = vmatprep.subr.bf16.mxu0 0
  %113 = vmatpush1.bf16.msra.mxu0 0
  %114 = vmatprep.subr.bf16.mxu0 0
  %115 = vmatpush1.bf16.msra.mxu0 0
  %116 = vmatprep.subr.bf16.mxu0 0
  %117 = vmatpush1.bf16.msra.mxu0 0
  %118 = vmatprep.subr.bf16.mxu0 0
  %119 = vmatpush1.bf16.msra.mxu0 0
  %120 = vmatprep.subr.bf16.mxu0 0
  %121 = vmatpush1.bf16.msra.mxu0 0
  %122 = vmatprep.subr.bf16.mxu0 0
  %123 = vmatpush1.bf16.msra.mxu0 0
  %124 = vmatprep.subr.bf16.mxu0 0
  %125 = vmatpush1.bf16.msra.mxu0 0
  %126 = vmatprep.subr.bf16.mxu0 0
  %127 = vmatpush1.bf16.msra.mxu0 0
  %128 = vmatprep.mubr.bf16.mxu0 0
  %129 = vmatmul.mubr.bf16.gmra.mrb[0].mxu0 %v94
  %v130 = vpop.f32.mrb[0].mxu0
  %v131 = vadd.f32 %v79, %v130
  %v132 = vpop.f32.mrb[0].mxu0
  %v133 = vpop.f32.mrb[0].mxu0
  %v134 = vadd.f32 %v79, %v133
  %v135 = vpop.f32.mrb[0].mxu0
  %136 = vdwg.mxu0
  %137 = vst.msk [vmem:[%s5] sm:$0xff] %vm23, %v131
  %138 = vst.msk [vmem:[%s5 + $0x8] sm:$0xff] %vm23, %v134
  // Predicated region
  $region22: #{decoder_layer.9} parent=0 // pred_check
    _
  $region23: #{decoder_layer.9} parent=0 // pred_check_branch
    %140 = sbr.rel (0) target = $region25
  $region24: #{decoder_layer.9} parent=0 // pred_region
    _
  $region25: #{decoder_layer.9} parent=0 // pred_fallthru
    _
  // Predicated region
  $region26: #{decoder_layer.9} parent=0 // pred_check
    _
  $region27: #{decoder_layer.9} parent=0 // pred_check_branch
    %142 = sbr.rel (0) target = $region29
  $region28: #{decoder_layer.9} parent=0 // pred_region
    _
  $region29: #{decoder_layer.9} parent=0 // pred_fallthru
    _

// kernel: decoder_layer.10
$region0: #{decoder_layer.10}
  #allocation0 [shape = 'u32[]', space=smem, size = 0x4, offset = 0x4, fixed_abs, tag = 'smem constant byte address 0x4 - core index']
  #allocation1 [shape = 'u32[144,128]{1,0:T(1,128)}', space=vmem, size = 0x12000, scoped, tag = 'internal scratch']
  %s0 = inlined_call_operand.vmem [shape: f32[16,32], index: 0, kind: input, shape index: {}]
  %s1 = inlined_call_operand.vmem [shape: bf16[32,64], index: 1, kind: input, shape index: {}]
  %s2 = inlined_call_operand.vmem [shape: f32[1,64], index: 2, kind: input, shape index: {}]
  %s3 = inlined_call_operand.vmem [shape: f32[16,64], index: 3, kind: output, shape index: {}]
  %s4 = sld [smem:[#allocation0]]
  $region22: #{decoder_layer.10} parent=0
    _
  %s6 = ssub.s32 1, %s4
  %s7 = scalar_select 0, %s6, %s4
  // Predicated region
  $region2: #{decoder_layer.10} parent=0 // pred_check
    _
  $region3: #{decoder_layer.10} parent=0 // pred_check_branch
    %9 = sbr.rel (0) target = $region5
  $region4: #{decoder_layer.10} parent=0 // pred_region
    _
  $region5: #{decoder_layer.10} parent=0 // pred_fallthru
    _
  // Predicated region
  $region6: #{decoder_layer.10} parent=0 // pred_check
    _
  $region7: #{decoder_layer.10} parent=0 // pred_check_branch
    %11 = sbr.rel (0) target = $region9
  $region8: #{decoder_layer.10} parent=0 // pred_region
    _
  $region9: #{decoder_layer.10} parent=0 // pred_fallthru
    _
  // Predicated region
  $region10: #{decoder_layer.10} parent=0 // pred_check
    _
  $region11: #{decoder_layer.10} parent=0 // pred_check_branch
    %13 = sbr.rel (0) target = $region13
  $region12: #{decoder_layer.10} parent=0 // pred_region
    _
  $region13: #{decoder_layer.10} parent=0 // pred_fallthru
    _
  %v15 = vld [vmem:[%s0] sm:$0xff]
  %v16 = vld [vmem:[%s0 + $0x8] sm:$0xff]
  %v17 = vpack.c.bf16 %v16, %v15
  %v18 = vld [vmem:[%s1] sm:$0xf]
  %v19 = vld [vmem:[%s1 + $0x4] sm:$0xf]
  %v20 = vld [vmem:[%s1 + $0x8] sm:$0xf]
  %v21 = vld [vmem:[%s1 + $0xc] sm:$0xf]
  %v22 = vld [vmem:[%s2] sm:$0x1]
  %v24 = vlaneseq
  %v25 = vshrl.u32 %v24, 7
  %v26 = vsub.s32 0, %v25
  %v27 = vrot.slane %v22, %v26
  %v33 = vunpack.c.l.b16 %v18
  %v34 = vunpack.c.l.b16 %v19
  %v35 = vunpack.c.l.b16 %v20
  %v36 = vunpack.c.l.b16 %v21
  %v37 = vpack.c.b16 %v34, %v33
  %v38 = vpack.c.b16 %v36, %v35
  %vm41 = vcmask 261120
  %v43 = vsel %vm41, %v17, 0
  %45 = vmatprep.subr.bf16.mxu0 0
  %46 = vmatpush1.bf16.msra.mxu0 %v37
  %47 = vmatprep.subr.bf16.mxu0 0
  %48 = vmatpush1.bf16.msra.mxu0 %v38
  %49 = vmatprep.subr.bf16.mxu0 0
  %50 = vmatpush1.bf16.msra.mxu0 0
  %51 = vmatprep.subr.bf16.mxu0 0
  %52 = vmatpush1.bf16.msra.mxu0 0
  %53 = vmatprep.subr.bf16.mxu0 0
  %54 = vmatpush1.bf16.msra.mxu0 0
  %55 = vmatprep.subr.bf16.mxu0 0
  %56 = vmatpush1.bf16.msra.mxu0 0
  %57 = vmatprep.subr.bf16.mxu0 0
  %58 = vmatpush1.bf16.msra.mxu0 0
  %59 = vmatprep.subr.bf16.mxu0 0
  %60 = vmatpush1.bf16.msra.mxu0 0
  %61 = vmatprep.subr.bf16.mxu0 0
  %62 = vmatpush1.bf16.msra.mxu0 0
  %63 = vmatprep.subr.bf16.mxu0 0
  %64 = vmatpush1.bf16.msra.mxu0 0
  %65 = vmatprep.subr.bf16.mxu0 0
  %66 = vmatpush1.bf16.msra.mxu0 0
  %67 = vmatprep.subr.bf16.mxu0 0
  %68 = vmatpush1.bf16.msra.mxu0 0
  %69 = vmatprep.subr.bf16.mxu0 0
  %70 = vmatpush1.bf16.msra.mxu0 0
  %71 = vmatprep.subr.bf16.mxu0 0
  %72 = vmatpush1.bf16.msra.mxu0 0
  %73 = vmatprep.subr.bf16.mxu0 0
  %74 = vmatpush1.bf16.msra.mxu0 0
  %75 = vmatprep.subr.bf16.mxu0 0
  %76 = vmatpush1.bf16.msra.mxu0 0
  %77 = vmatprep.mubr.bf16.mxu0 0
  %78 = vmatmul.mubr.bf16.gmra.mrb[0].mxu0 %v43
  %v79 = vpop.f32.mrb[0].mxu0
  %v80 = vadd.f32 %v27, %v79
  %v81 = vpop.f32.mrb[0].mxu0
  %v82 = vpop.f32.mrb[0].mxu0
  %v83 = vadd.f32 %v27, %v82
  %v84 = vpop.f32.mrb[0].mxu0
  %85 = vdwg.mxu0
  %vm86 = vcmask 523264
  %87 = vst.msk [vmem:[%s3] sm:$0xff] %vm86, %v80
  %88 = vst.msk [vmem:[%s3 + $0x8] sm:$0xff] %vm86, %v83
  // Predicated region
  $region14: #{decoder_layer.10} parent=0 // pred_check
    _
  $region15: #{decoder_layer.10} parent=0 // pred_check_branch
    %90 = sbr.rel (0) target = $region17
  $region16: #{decoder_layer.10} parent=0 // pred_region
    _
  $region17: #{decoder_layer.10} parent=0 // pred_fallthru
    _
  // Predicated region
  $region18: #{decoder_layer.10} parent=0 // pred_check
    _
  $region19: #{decoder_layer.10} parent=0 // pred_check_branch
    %92 = sbr.rel (0) target = $region21
  $region20: #{decoder_layer.10} parent=0 // pred_region
    _
  $region21: #{decoder_layer.10} parent=0 // pred_fallthru
    _

// kernel: decoder_layer.13
$region0: #{decoder_layer.13}
  #allocation0 [shape = 'u32[]', space=smem, size = 0x4, offset = 0x4, fixed_abs, tag = 'smem constant byte address 0x4 - core index']
  #allocation1 [shape = 'u32[144,128]{1,0:T(1,128)}', space=vmem, size = 0x12000, scoped, tag = 'internal scratch']
  %s0 = inlined_call_operand.vmem [shape: f32[16,64], index: 0, kind: input, shape index: {}]
  %s1 = inlined_call_operand.vmem [shape: bf16[64,32], index: 1, kind: input, shape index: {}]
  %s2 = inlined_call_operand.vmem [shape: f32[1,32], index: 2, kind: input, shape index: {}]
  %s3 = inlined_call_operand.vmem [shape: f32[16,32], index: 3, kind: input, shape index: {}]
  %s4 = inlined_call_operand.hbm [shape: f32[16,32], index: 4, kind: output, shape index: {}]
  %s5 = sld [smem:[#allocation0]]
  $region26: #{decoder_layer.13} parent=0
    _
  %s7 = ssub.s32 1, %s5
  %s8 = scalar_select 0, %s7, %s5
  $region1: #{decoder_layer.13} parent=0
    #allocation2 [shape = 'u8[8192]{0}', space=vmem, size = 0x2000, scoped, tag = 'output window, operand 0, single buffered']
    #allocation3 [shape = 's32[1]{0}', space=sflag, size = 0x4, scoped, tag = 'scoped memory for decoder_layer.13']
    %9 = vsyncpa [#allocation3], 0
    // Predicated region
    $region2: #{decoder_layer.13} parent=1 // pred_check
      _
    $region3: #{decoder_layer.13} parent=1 // pred_check_branch
      %11 = sbr.rel (0) target = $region5
    $region4: #{decoder_layer.13} parent=1 // pred_region
      _
    $region5: #{decoder_layer.13} parent=1 // pred_fallthru
      _
    // Predicated region
    $region6: #{decoder_layer.13} parent=1 // pred_check
      _
    $region7: #{decoder_layer.13} parent=1 // pred_check_branch
      %13 = sbr.rel (0) target = $region9
    $region8: #{decoder_layer.13} parent=1 // pred_region
      _
    $region9: #{decoder_layer.13} parent=1 // pred_fallthru
      _
    // Predicated region
    $region10: #{decoder_layer.13} parent=1 // pred_check
      _
    $region11: #{decoder_layer.13} parent=1 // pred_check_branch
      %15 = sbr.rel (0) target = $region13
    $region12: #{decoder_layer.13} parent=1 // pred_region
      _
    $region13: #{decoder_layer.13} parent=1 // pred_fallthru
      _
    // Predicated region
    $region14: #{decoder_layer.13} parent=1 // pred_check
      _
    $region15: #{decoder_layer.13} parent=1 // pred_check_branch
      %17 = sbr.rel (0) target = $region17
    $region16: #{decoder_layer.13} parent=1 // pred_region
      _
    $region17: #{decoder_layer.13} parent=1 // pred_fallthru
      _
    %v19 = vld [vmem:[%s0] sm:$0xff]
    %v20 = vld [vmem:[%s0 + $0x8] sm:$0xff]
    %v21 = vpack.c.bf16 %v20, %v19
    %v22 = vld [vmem:[%s1] sm:$0xf]
    %v23 = vld [vmem:[%s1 + $0x4] sm:$0xf]
    %v24 = vld [vmem:[%s1 + $0x8] sm:$0xf]
    %v25 = vld [vmem:[%s1 + $0xc] sm:$0xf]
    %v26 = vld [vmem:[%s1 + $0x10] sm:$0xf]
    %v27 = vld [vmem:[%s1 + $0x14] sm:$0xf]
    %v28 = vld [vmem:[%s1 + $0x18] sm:$0xf]
    %v29 = vld [vmem:[%s1 + $0x1c] sm:$0xf]
    %v30 = vld [vmem:[%s2] sm:$0x1]
    %v32 = vlaneseq
    %v33 = vshrl.u32 %v32, 7
    %v34 = vsub.s32 0, %v33
    %v35 = vrot.slane %v30, %v34
    %v45 = vunpack.c.l.b16 %v22
    %v46 = vunpack.c.l.b16 %v23
    %v47 = vunpack.c.l.b16 %v24
    %v48 = vunpack.c.l.b16 %v25
    %v49 = vunpack.c.l.b16 %v26
    %v50 = vunpack.c.l.b16 %v27
    %v51 = vunpack.c.l.b16 %v28
    %v52 = vunpack.c.l.b16 %v29
    %v53 = vpack.c.b16 %v46, %v45
    %v54 = vpack.c.b16 %v48, %v47
    %v55 = vpack.c.b16 %v50, %v49
    %v56 = vpack.c.b16 %v52, %v51
    %vm61 = vcmask 523264
    %v63 = vsel %vm61, %v21, 0
    %65 = vmatprep.subr.bf16.mxu0 0
    %66 = vmatpush1.bf16.msra.mxu0 %v53
    %67 = vmatprep.subr.bf16.mxu0 0
    %68 = vmatpush1.bf16.msra.mxu0 %v54
    %69 = vmatprep.subr.bf16.mxu0 0
    %70 = vmatpush1.bf16.msra.mxu0 %v55
    %71 = vmatprep.subr.bf16.mxu0 0
    %72 = vmatpush1.bf16.msra.mxu0 %v56
    %73 = vmatprep.subr.bf16.mxu0 0
    %74 = vmatpush1.bf16.msra.mxu0 0
    %75 = vmatprep.subr.bf16.mxu0 0
    %76 = vmatpush1.bf16.msra.mxu0 0
    %77 = vmatprep.subr.bf16.mxu0 0
    %78 = vmatpush1.bf16.msra.mxu0 0
    %79 = vmatprep.subr.bf16.mxu0 0
    %80 = vmatpush1.bf16.msra.mxu0 0
    %81 = vmatprep.subr.bf16.mxu0 0
    %82 = vmatpush1.bf16.msra.mxu0 0
    %83 = vmatprep.subr.bf16.mxu0 0
    %84 = vmatpush1.bf16.msra.mxu0 0
    %85 = vmatprep.subr.bf16.mxu0 0
    %86 = vmatpush1.bf16.msra.mxu0 0
    %87 = vmatprep.subr.bf16.mxu0 0
    %88 = vmatpush1.bf16.msra.mxu0 0
    %89 = vmatprep.subr.bf16.mxu0 0
    %90 = vmatpush1.bf16.msra.mxu0 0
    %91 = vmatprep.subr.bf16.mxu0 0
    %92 = vmatpush1.bf16.msra.mxu0 0
    %93 = vmatprep.subr.bf16.mxu0 0
    %94 = vmatpush1.bf16.msra.mxu0 0
    %95 = vmatprep.subr.bf16.mxu0 0
    %96 = vmatpush1.bf16.msra.mxu0 0
    %97 = vmatprep.mubr.bf16.mxu0 0
    %98 = vmatmul.mubr.bf16.gmra.mrb[0].mxu0 %v63
    %v99 = vpop.f32.mrb[0].mxu0
    %v100 = vadd.f32 %v35, %v99
    %v101 = vpop.f32.mrb[0].mxu0
    %v102 = vpop.f32.mrb[0].mxu0
    %v103 = vadd.f32 %v35, %v102
    %v104 = vpop.f32.mrb[0].mxu0
    %105 = vdwg.mxu0
    %v106 = vld [vmem:[%s3] sm:$0xff]
    %v107 = vld [vmem:[%s3 + $0x8] sm:$0xff]
    %v108 = vadd.f32 %v100, %v106
    %v109 = vadd.f32 %v103, %v107
    %vm110 = vcmask 261120
    %111 = vst.msk [vmem:[#allocation2] sm:$0xff] %vm110, %v108
    %112 = vst.msk [vmem:[#allocation2 + $0x8] sm:$0xff] %vm110, %v109
    // Predicated region
    $region18: #{decoder_layer.13} parent=1 // pred_check
      _
    $region19: #{decoder_layer.13} parent=1 // pred_check_branch
      %114 = sbr.rel (0) target = $region21
    $region20: #{decoder_layer.13} parent=1 // pred_region
      %s116 = ssub.s32 256, 256
      %117 = vsyncadd [#allocation3], %s116
      %s118 = sshll.u32 [#allocation2], 4
      %s119 = int_to_ptr.vmem [resolvable:$true] %s118
      %124 = dma.vmem_to_hbm [thread:$0]  %s119, 256, %s4, [#allocation3], 128, 128, 8
    $region21: #{decoder_layer.13} parent=1 // pred_fallthru
      _
    // Predicated region
    $region22: #{decoder_layer.13} parent=1 // pred_check
      _
    $region23: #{decoder_layer.13} parent=1 // pred_check_branch
      %126 = sbr.rel (0) target = $region25
    $region24: #{decoder_layer.13} parent=1 // pred_region
      %127 = dma.done [#allocation3], 256
    $region25: #{decoder_layer.13} parent=1 // pred_fallthru
      _
    %128 = vsyncpa [#allocation3], 1

// kernel: decoder_layer.12
$region0: #{decoder_layer.12}
  #allocation0 [shape = 'u32[]', space=smem, size = 0x4, offset = 0x4, fixed_abs, tag = 'smem constant byte address 0x4 - core index']
  #allocation1 [shape = 'u32[144,128]{1,0:T(1,128)}', space=vmem, size = 0x12000, scoped, tag = 'internal scratch']
  %s0 = inlined_call_operand.vmem [shape: f32[16,32], index: 0, kind: input, shape index: {}]
  %s1 = inlined_call_operand.vmem [shape: f32[1,32], index: 1, kind: input, shape index: {}]
  %s2 = inlined_call_operand.vmem [shape: f32[1,32], index: 2, kind: input, shape index: {}]
  %s3 = inlined_call_operand.vmem [shape: bf16[32,64], index: 3, kind: input, shape index: {}]
  %s4 = inlined_call_operand.vmem [shape: f32[1,64], index: 4, kind: input, shape index: {}]
  %s5 = inlined_call_operand.vmem [shape: f32[16,64], index: 5, kind: output, shape index: {}]
  %s6 = sld [smem:[#allocation0]]
  $region30: #{decoder_layer.12} parent=0
    _
  %s8 = ssub.s32 1, %s6
  %s9 = scalar_select 0, %s8, %s6
  // Predicated region
  $region2: #{decoder_layer.12} parent=0 // pred_check
    _
  $region3: #{decoder_layer.12} parent=0 // pred_check_branch
    %11 = sbr.rel (0) target = $region5
  $region4: #{decoder_layer.12} parent=0 // pred_region
    _
  $region5: #{decoder_layer.12} parent=0 // pred_fallthru
    _
  // Predicated region
  $region6: #{decoder_layer.12} parent=0 // pred_check
    _
  $region7: #{decoder_layer.12} parent=0 // pred_check_branch
    %13 = sbr.rel (0) target = $region9
  $region8: #{decoder_layer.12} parent=0 // pred_region
    _
  $region9: #{decoder_layer.12} parent=0 // pred_fallthru
    _
  // Predicated region
  $region10: #{decoder_layer.12} parent=0 // pred_check
    _
  $region11: #{decoder_layer.12} parent=0 // pred_check_branch
    %15 = sbr.rel (0) target = $region13
  $region12: #{decoder_layer.12} parent=0 // pred_region
    _
  $region13: #{decoder_layer.12} parent=0 // pred_fallthru
    _
  // Predicated region
  $region14: #{decoder_layer.12} parent=0 // pred_check
    _
  $region15: #{decoder_layer.12} parent=0 // pred_check_branch
    %17 = sbr.rel (0) target = $region17
  $region16: #{decoder_layer.12} parent=0 // pred_region
    _
  $region17: #{decoder_layer.12} parent=0 // pred_fallthru
    _
  // Predicated region
  $region18: #{decoder_layer.12} parent=0 // pred_check
    _
  $region19: #{decoder_layer.12} parent=0 // pred_check_branch
    %19 = sbr.rel (0) target = $region21
  $region20: #{decoder_layer.12} parent=0 // pred_region
    _
  $region21: #{decoder_layer.12} parent=0 // pred_fallthru
    _
  %v21 = vld [vmem:[%s0] sm:$0xff]
  %v22 = vld [vmem:[%s0 + $0x8] sm:$0xff]
  %vm23 = vcmask 261120
  %v24 = vsel %vm23, %v21, 0.0
  %25 = vadd.xlane.f32.xlu0 %v24
  %v26 = vpop.xlane.xlu0 %25
  %v27 = vsel %vm23, %v22, 0.0
  %28 = vadd.xlane.f32.xlu0 %v27
  %v29 = vpop.xlane.xlu0 %28
  %v30 = vrcp.pop 32.0
  %v31 = vmul.f32 %v26, %v30
  %v32 = vmul.f32 %v29, %v30
  %v33 = vsub.f32 %v21, %v31
  %v34 = vsub.f32 %v22, %v32
  %v35 = vmul.f32 %v33, %v33
  %v36 = vmul.f32 %v34, %v34
  %v37 = vsel %vm23, %v35, 0.0
  %38 = vadd.xlane.f32.xlu0 %v37
  %v39 = vpop.xlane.xlu0 %38
  %v40 = vsel %vm23, %v36, 0.0
  %41 = vadd.xlane.f32.xlu0 %v40
  %v42 = vpop.xlane.xlu0 %41
  %v43 = vmul.f32 %v39, %v30
  %v44 = vmul.f32 %v42, %v30
  %v45 = vadd.f32 %v43, 1e-05
  %v46 = vadd.f32 %v44, 1e-05
  %v47 = vrsqrt.pop %v45
  %v48 = vrsqrt.pop %v46
  %v49 = vmul.f32 %v33, %v47
  %v50 = vmul.f32 %v34, %v48
  %v51 = vld [vmem:[%s1] sm:$0x1]
  %v53 = vlaneseq
  %v54 = vshrl.u32 %v53, 7
  %v55 = vsub.s32 0, %v54
  %v56 = vrot.slane %v51, %v55
  %v58 = vmul.f32 %v49, %v56
  %v59 = vmul.f32 %v50, %v56
  %v60 = vld [vmem:[%s2] sm:$0x1]
  %v62 = vlaneseq
  %v63 = vshrl.u32 %v62, 7
  %v64 = vsub.s32 0, %v63
  %v65 = vrot.slane %v60, %v64
  %v67 = vadd.f32 %v58, %v65
  %v68 = vadd.f32 %v59, %v65
  %v69 = vpack.c.bf16 %v68, %v67
  %v70 = vld [vmem:[%s3] sm:$0xf]
  %v71 = vld [vmem:[%s3 + $0x4] sm:$0xf]
  %v72 = vld [vmem:[%s3 + $0x8] sm:$0xf]
  %v73 = vld [vmem:[%s3 + $0xc] sm:$0xf]
  %v74 = vld [vmem:[%s4] sm:$0x1]
  %v76 = vlaneseq
  %v77 = vshrl.u32 %v76, 7
  %v78 = vsub.s32 0, %v77
  %v79 = vrot.slane %v74, %v78
  %v85 = vunpack.c.l.b16 %v70
  %v86 = vunpack.c.l.b16 %v71
  %v87 = vunpack.c.l.b16 %v72
  %v88 = vunpack.c.l.b16 %v73
  %v89 = vpack.c.b16 %v86, %v85
  %v90 = vpack.c.b16 %v88, %v87
  %v94 = vsel %vm23, %v69, 0
  %96 = vmatprep.subr.bf16.mxu0 0
  %97 = vmatpush1.bf16.msra.mxu0 %v89
  %98 = vmatprep.subr.bf16.mxu0 0
  %99 = vmatpush1.bf16.msra.mxu0 %v90
  %100 = vmatprep.subr.bf16.mxu0 0
  %101 = vmatpush1.bf16.msra.mxu0 0
  %102 = vmatprep.subr.bf16.mxu0 0
  %103 = vmatpush1.bf16.msra.mxu0 0
  %104 = vmatprep.subr.bf16.mxu0 0
  %105 = vmatpush1.bf16.msra.mxu0 0
  %106 = vmatprep.subr.bf16.mxu0 0
  %107 = vmatpush1.bf16.msra.mxu0 0
  %108 = vmatprep.subr.bf16.mxu0 0
  %109 = vmatpush1.bf16.msra.mxu0 0
  %110 = vmatprep.subr.bf16.mxu0 0
  %111 = vmatpush1.bf16.msra.mxu0 0
  %112 = vmatprep.subr.bf16.mxu0 0
  %113 = vmatpush1.bf16.msra.mxu0 0
  %114 = vmatprep.subr.bf16.mxu0 0
  %115 = vmatpush1.bf16.msra.mxu0 0
  %116 = vmatprep.subr.bf16.mxu0 0
  %117 = vmatpush1.bf16.msra.mxu0 0
  %118 = vmatprep.subr.bf16.mxu0 0
  %119 = vmatpush1.bf16.msra.mxu0 0
  %120 = vmatprep.subr.bf16.mxu0 0
  %121 = vmatpush1.bf16.msra.mxu0 0
  %122 = vmatprep.subr.bf16.mxu0 0
  %123 = vmatpush1.bf16.msra.mxu0 0
  %124 = vmatprep.subr.bf16.mxu0 0
  %125 = vmatpush1.bf16.msra.mxu0 0
  %126 = vmatprep.subr.bf16.mxu0 0
  %127 = vmatpush1.bf16.msra.mxu0 0
  %128 = vmatprep.mubr.bf16.mxu0 0
  %129 = vmatmul.mubr.bf16.gmra.mrb[0].mxu0 %v94
  %v130 = vpop.f32.mrb[0].mxu0
  %v131 = vadd.f32 %v79, %v130
  %v132 = vpop.f32.mrb[0].mxu0
  %v133 = vpop.f32.mrb[0].mxu0
  %v134 = vadd.f32 %v79, %v133
  %v135 = vpop.f32.mrb[0].mxu0
  %136 = vdwg.mxu0
  %v137 = vmax.f32 %v131, 0.0
  %v138 = vmax.f32 %v134, 0.0
  %vm139 = vcmask 523264
  %140 = vst.msk [vmem:[%s5] sm:$0xff] %vm139, %v137
  %141 = vst.msk [vmem:[%s5 + $0x8] sm:$0xff] %vm139, %v138
  // Predicated region
  $region22: #{decoder_layer.12} parent=0 // pred_check
    _
  $region23: #{decoder_layer.12} parent=0 // pred_check_branch
    %143 = sbr.rel (0) target = $region25
  $region24: #{decoder_layer.12} parent=0 // pred_region
    _
  $region25: #{decoder_layer.12} parent=0 // pred_fallthru
    _
  // Predicated region
  $region26: #{decoder_layer.12} parent=0 // pred_check
    _
  $region27: #{decoder_layer.12} parent=0 // pred_check_branch
    %145 = sbr.rel (0) target = $region29
  $region28: #{decoder_layer.12} parent=0 // pred_region
    _
  $region29: #{decoder_layer.12} parent=0 // pred_fallthru
    _

// kernel: decoder_layer.11
$region0: #{decoder_layer.11}
  #allocation0 [shape = 'u32[]', space=smem, size = 0x4, offset = 0x4, fixed_abs, tag = 'smem constant byte address 0x4 - core index']
  #allocation1 [shape = 'u32[144,128]{1,0:T(1,128)}', space=vmem, size = 0x12000, scoped, tag = 'internal scratch']
  %s0 = inlined_call_operand.vmem [shape: f32[2,8,32], index: 0, kind: input, shape index: {}]
  %s1 = inlined_call_operand.vmem [shape: f32[2,8,64], index: 1, kind: input, shape index: {}]
  %s2 = inlined_call_operand.vmem [shape: bf16[32,32], index: 2, kind: input, shape index: {}]
  %s3 = inlined_call_operand.vmem [shape: f32[1,32], index: 3, kind: input, shape index: {}]
  %s4 = inlined_call_operand.vmem [shape: f32[2,8,32], index: 4, kind: input, shape index: {}]
  %s5 = inlined_call_operand.vmem [shape: f32[2,8,32], index: 5, kind: output, shape index: {}]
  %s6 = sld [smem:[#allocation0]]
  $region53: #{decoder_layer.11} parent=0
    _
  %s8 = ssub.s32 1, %s6
  %s9 = scalar_select 0, %s8, %s6
  loop: start=0, step=1, limit=4
  $region2: #{decoder_layer.11} parent=0 // loop_pre_header
    _
  $region3: #{decoder_layer.11} parent=0 // loop_header
    %s11 = sphi 0, %s15
    %p12 = scmp.ge.s32.totalorder %s11, 4
    %s21 = sphi 0, %s23
    %s24 = sphi 0, %s21
    %s25 = sphi 0, %s24
    %s41 = sphi 0, %s25
    %s47 = sphi 0, %s49
    %s50 = sphi 0, %s47
    %s51 = sphi 0, %s50
    %s67 = sphi 0, %s51
    %s71 = sphi 0, %s71
    %s73 = sphi 0, %s71
    %s74 = sphi 0, %s73
    %s88 = sphi 0, %s74
    %s92 = sphi 0, %s92
    %s94 = sphi 0, %s92
    %s95 = sphi 0, %s94
    %s109 = sphi 0, %s95
    %s115 = sphi 0, %s117
    %s118 = sphi 0, %s115
    %s119 = sphi 0, %s118
    %s135 = sphi 0, %s119
    %s141 = sphi 0, %s143
    %s144 = sphi 0, %s141
    %s145 = sphi 0, %s144
    %s161 = sphi 0, %s145
  $region4: #{decoder_layer.11} parent=0 // loop_header_branch
    %14 = sbr.rel (%p12) target = $region8
  $region5: #{decoder_layer.11} parent=0 // loop_body
    %s16 = ssub.s32 %s11, 1
    %s17 = ssub.s32 %s11, 2
    %s18 = sadd.s32 %s11, 1
    %s19 = ssub.s32 %s11, %s18
    %p20 = scmp.eq.s32.totalorder %s19, 0
    %s22 = sadd.s32 %s21, 1
    %s23 = scalar_select %p20, %s21, %s22
    %p26 = pneg %p20
    %p27 = scmp.eq.s32.totalorder %s11, 1
    %p28 = por %p26, %p27
    %p29 = scmp.ne.s32.totalorder %s21, %s24
    %p30 = scmp.eq.s32.totalorder %s11, 0
    %p31 = por %p29, %p30
    %p32 = scmp.ne.s32.totalorder %s21, %s24
    %p33 = scmp.eq.s32.totalorder %s16, 1
    %p34 = por %p32, %p33
    %p35 = scmp.ne.s32.totalorder %s24, %s25
    %p36 = scmp.eq.s32.totalorder %s16, 0
    %p37 = por %p35, %p36
    %p38 = scmp.ne.s32.totalorder %s24, %s25
    %p39 = scmp.eq.s32.totalorder %s17, 1
    %p40 = por %p38, %p39
    %p42 = scmp.ne.s32.totalorder %s25, %s41
    %p43 = scmp.eq.s32.totalorder %s17, 0
    %p44 = por %p42, %p43
    %s45 = ssub.s32 %s11, %s18
    %p46 = scmp.eq.s32.totalorder %s45, 0
    %s48 = sadd.s32 %s47, 1
    %s49 = scalar_select %p46, %s47, %s48
    %p52 = pneg %p46
    %p53 = scmp.eq.s32.totalorder %s11, 1
    %p54 = por %p52, %p53
    %p55 = scmp.ne.s32.totalorder %s47, %s50
    %p56 = scmp.eq.s32.totalorder %s11, 0
    %p57 = por %p55, %p56
    %p58 = scmp.ne.s32.totalorder %s47, %s50
    %p59 = scmp.eq.s32.totalorder %s16, 1
    %p60 = por %p58, %p59
    %p61 = scmp.ne.s32.totalorder %s50, %s51
    %p62 = scmp.eq.s32.totalorder %s16, 0
    %p63 = por %p61, %p62
    %p64 = scmp.ne.s32.totalorder %s50, %s51
    %p65 = scmp.eq.s32.totalorder %s17, 1
    %p66 = por %p64, %p65
    %p68 = scmp.ne.s32.totalorder %s51, %s67
    %p69 = scmp.eq.s32.totalorder %s17, 0
    %p70 = por %p68, %p69
    %s72 = sadd.s32 %s71, 1
    %p75 = scmp.eq.s32.totalorder %s11, 1
    %p76 = scmp.ne.s32.totalorder %s71, %s73
    %p77 = scmp.eq.s32.totalorder %s11, 0
    %p78 = por %p76, %p77
    %p79 = scmp.ne.s32.totalorder %s71, %s73
    %p80 = scmp.eq.s32.totalorder %s16, 1
    %p81 = por %p79, %p80
    %p82 = scmp.ne.s32.totalorder %s73, %s74
    %p83 = scmp.eq.s32.totalorder %s16, 0
    %p84 = por %p82, %p83
    %p85 = scmp.ne.s32.totalorder %s73, %s74
    %p86 = scmp.eq.s32.totalorder %s17, 1
    %p87 = por %p85, %p86
    %p89 = scmp.ne.s32.totalorder %s74, %s88
    %p90 = scmp.eq.s32.totalorder %s17, 0
    %p91 = por %p89, %p90
    %s93 = sadd.s32 %s92, 1
    %p96 = scmp.eq.s32.totalorder %s11, 1
    %p97 = scmp.ne.s32.totalorder %s92, %s94
    %p98 = scmp.eq.s32.totalorder %s11, 0
    %p99 = por %p97, %p98
    %p100 = scmp.ne.s32.totalorder %s92, %s94
    %p101 = scmp.eq.s32.totalorder %s16, 1
    %p102 = por %p100, %p101
    %p103 = scmp.ne.s32.totalorder %s94, %s95
    %p104 = scmp.eq.s32.totalorder %s16, 0
    %p105 = por %p103, %p104
    %p106 = scmp.ne.s32.totalorder %s94, %s95
    %p107 = scmp.eq.s32.totalorder %s17, 1
    %p108 = por %p106, %p107
    %p110 = scmp.ne.s32.totalorder %s95, %s109
    %p111 = scmp.eq.s32.totalorder %s17, 0
    %p112 = por %p110, %p111
    %s113 = ssub.s32 %s11, %s18
    %p114 = scmp.eq.s32.totalorder %s113, 0
    %s116 = sadd.s32 %s115, 1
    %s117 = scalar_select %p114, %s115, %s116
    %p120 = pneg %p114
    %p121 = scmp.eq.s32.totalorder %s11, 1
    %p122 = por %p120, %p121
    %p123 = scmp.ne.s32.totalorder %s115, %s118
    %p124 = scmp.eq.s32.totalorder %s11, 0
    %p125 = por %p123, %p124
    %p126 = scmp.ne.s32.totalorder %s115, %s118
    %p127 = scmp.eq.s32.totalorder %s16, 1
    %p128 = por %p126, %p127
    %p129 = scmp.ne.s32.totalorder %s118, %s119
    %p130 = scmp.eq.s32.totalorder %s16, 0
    %p131 = por %p129, %p130
    %p132 = scmp.ne.s32.totalorder %s118, %s119
    %p133 = scmp.eq.s32.totalorder %s17, 1
    %p134 = por %p132, %p133
    %p136 = scmp.ne.s32.totalorder %s119, %s135
    %p137 = scmp.eq.s32.totalorder %s17, 0
    %p138 = por %p136, %p137
    %s139 = ssub.s32 %s11, %s18
    %p140 = scmp.eq.s32.totalorder %s139, 0
    %s142 = sadd.s32 %s141, 1
    %s143 = scalar_select %p140, %s141, %s142
    %p146 = pneg %p140
    %p147 = scmp.eq.s32.totalorder %s11, 1
    %p148 = por %p146, %p147
    %p149 = scmp.ne.s32.totalorder %s141, %s144
    %p150 = scmp.eq.s32.totalorder %s11, 0
    %p151 = por %p149, %p150
    %p152 = scmp.ne.s32.totalorder %s141, %s144
    %p153 = scmp.eq.s32.totalorder %s16, 1
    %p154 = por %p152, %p153
    %p155 = scmp.ne.s32.totalorder %s144, %s145
    %p156 = scmp.eq.s32.totalorder %s16, 0
    %p157 = por %p155, %p156
    %p158 = scmp.ne.s32.totalorder %s144, %s145
    %p159 = scmp.eq.s32.totalorder %s17, 1
    %p160 = por %p158, %p159
    %p162 = scmp.ne.s32.totalorder %s145, %s161
    %p163 = scmp.eq.s32.totalorder %s17, 0
    %p164 = por %p162, %p163
    %p165 = scmp.le.s32.totalorder 1, %s11
    %p166 = scmp.lt.s32.totalorder %s11, 3
    %p167 = pnand %p165, %p166
    %p168 = pneg %p167
    // Predicated region
    $region9: #{decoder_layer.11} parent=5 // pred_check
      _
    $region10: #{decoder_layer.11} parent=5 // pred_check_branch
      %170 = sbr.rel (%p167) target = $region12
    $region11: #{decoder_layer.11} parent=5 // pred_region
      %s171 = ssub.s32 %s11, 1
      // Predicated region
      $region13: #{decoder_layer.11} parent=11 // pred_check
        %p172 = pneg %p84
      $region14: #{decoder_layer.11} parent=11 // pred_check_branch
        %174 = sbr.rel (%p172) target = $region16
      $region15: #{decoder_layer.11} parent=11 // pred_region
        _
      $region16: #{decoder_layer.11} parent=11 // pred_fallthru
        _
      // Predicated region
      $region17: #{decoder_layer.11} parent=11 // pred_check
        %p175 = pneg %p105
      $region18: #{decoder_layer.11} parent=11 // pred_check_branch
        %177 = sbr.rel (%p175) target = $region20
      $region19: #{decoder_layer.11} parent=11 // pred_region
        _
      $region20: #{decoder_layer.11} parent=11 // pred_fallthru
        _
    $region12: #{decoder_layer.11} parent=5 // pred_fallthru
      _
    %p178 = scmp.lt.s32.totalorder %s11, 2
    // Predicated region
    $region21: #{decoder_layer.11} parent=5 // pred_check
      %p179 = pneg %p178
    $region22: #{decoder_layer.11} parent=5 // pred_check_branch
      %181 = sbr.rel (%p179) target = $region24
    $region23: #{decoder_layer.11} parent=5 // pred_region
      // Predicated region
      $region25: #{decoder_layer.11} parent=23 // pred_check
        %p182 = pneg %p31
      $region26: #{decoder_layer.11} parent=23 // pred_check_branch
        %184 = sbr.rel (%p182) target = $region28
      $region27: #{decoder_layer.11} parent=23 // pred_region
        %p185 = scmp.lt.s32.totalorder %s11, 1
        %s186 = scalar_select %p185, %s11, 1
        %s187 = smul.addr %s186, 8
        %s188 = scalar_lea.vmem %s0, %s187
      $region28: #{decoder_layer.11} parent=23 // pred_fallthru
        _
      // Predicated region
      $region29: #{decoder_layer.11} parent=23 // pred_check
        %p189 = pneg %p57
      $region30: #{decoder_layer.11} parent=23 // pred_check_branch
        %191 = sbr.rel (%p189) target = $region32
      $region31: #{decoder_layer.11} parent=23 // pred_region
        %p192 = scmp.lt.s32.totalorder %s11, 1
        %s193 = scalar_select %p192, %s11, 1
        %s194 = smul.addr %s193, 8
        %s195 = scalar_lea.vmem %s1, %s194
      $region32: #{decoder_layer.11} parent=23 // pred_fallthru
        _
      // Predicated region
      $region33: #{decoder_layer.11} parent=23 // pred_check
        %p196 = pneg %p125
      $region34: #{decoder_layer.11} parent=23 // pred_check_branch
        %198 = sbr.rel (%p196) target = $region36
      $region35: #{decoder_layer.11} parent=23 // pred_region
        %p199 = scmp.lt.s32.totalorder %s11, 1
        %s200 = scalar_select %p199, %s11, 1
        %s201 = smul.addr %s200, 8
        %s202 = scalar_lea.vmem %s4, %s201
      $region36: #{decoder_layer.11} parent=23 // pred_fallthru
        _
    $region24: #{decoder_layer.11} parent=5 // pred_fallthru
      _
    %p203 = scmp.le.s32.totalorder 1, %s11
    %p204 = scmp.lt.s32.totalorder %s11, 3
    %p205 = pnand %p203, %p204
    %p206 = pneg %p205
    // Predicated region
    $region37: #{decoder_layer.11} parent=5 // pred_check
      _
    $region38: #{decoder_layer.11} parent=5 // pred_check_branch
      %208 = sbr.rel (%p205) target = $region40
    $region39: #{decoder_layer.11} parent=5 // pred_region
      %s209 = ssub.s32 %s11, 1
      %p210 = scmp.lt.s32.totalorder %s16, 1
      %s211 = scalar_select %p210, %s16, 1
      %s212 = smul.addr %s211, 8
      %s213 = scalar_lea.vmem %s0, %s212
      %p214 = pneg %p37
      %p215 = pneg %p34
      %p216 = scmp.lt.s32.totalorder %s16, 1
      %s217 = scalar_select %p216, %s16, 1
      %s218 = smul.addr %s217, 8
      %s219 = scalar_lea.vmem %s1, %s218
      %p220 = pneg %p63
      %p221 = pneg %p60
      %p222 = pneg %p84
      %p223 = pneg %p81
      %p224 = pneg %p105
      %p225 = pneg %p102
      %p226 = scmp.lt.s32.totalorder %s16, 1
      %s227 = scalar_select %p226, %s16, 1
      %s228 = smul.addr %s227, 8
      %s229 = scalar_lea.vmem %s4, %s228
      %p230 = pneg %p131
      %p231 = pneg %p128
      %p232 = pneg %p157
      %p233 = pneg %p154
      %p234 = scmp.lt.s32.totalorder %s16, 1
      %s235 = scalar_select %p234, %s16, 1
      %s236 = smul.addr %s235, 8
      %s237 = scalar_lea.vmem %s5, %s236
      %p238 = scmp.lt.s32.totalorder %s16, 1
      %s239 = scalar_select %p238, %s16, 1
      %s240 = smul.addr %s239, 8
      %s241 = scalar_lea.vmem %s0, %s240
      %p242 = scmp.lt.s32.totalorder %s16, 1
      %s243 = scalar_select %p242, %s16, 1
      %s244 = smul.addr %s243, 8
      %s245 = scalar_lea.vmem %s1, %s244
      %p246 = scmp.lt.s32.totalorder %s16, 1
      %s247 = scalar_select %p246, %s16, 1
      %s248 = smul.addr %s247, 8
      %s249 = scalar_lea.vmem %s4, %s248
      %p250 = scmp.lt.s32.totalorder %s16, 1
      %s251 = scalar_select %p250, %s16, 1
      %s252 = smul.addr %s251, 8
      %s253 = scalar_lea.vmem %s5, %s252
      %v255 = vld [vmem:[%s241] sm:$0xff]
      %v256 = vld [vmem:[%s245] sm:$0xff]
      %v257 = vmul.f32 %v255, 0.35355338
      %v258 = vpack.c.bf16 %v257, %v257
      %v259 = vpack.c.bf16 %v256, %v256
      %vm260 = vcmask 64512
      %v262 = vsel %vm260, %v258, 0
      %v265 = vsel %vm260, %v259, 0
      %267 = vmatprep.subr.bf16.mxu0 0
      %268 = vmatpush1.bf16.xpose.msra.mxu0 %v265
      %269 = vmatprep.subr.bf16.mxu0 0
      %270 = vmatpush1.bf16.xpose.msra.mxu0 0
      %271 = vmatprep.subr.bf16.mxu0 0
      %272 = vmatpush1.bf16.xpose.msra.mxu0 0
      %273 = vmatprep.subr.bf16.mxu0 0
      %274 = vmatpush1.bf16.xpose.msra.mxu0 0
      %275 = vmatprep.subr.bf16.mxu0 0
      %276 = vmatpush1.bf16.xpose.msra.mxu0 0
      %277 = vmatprep.subr.bf16.mxu0 0
      %278 = vmatpush1.bf16.xpose.msra.mxu0 0
      %279 = vmatprep.subr.bf16.mxu0 0
      %280 = vmatpush1.bf16.xpose.msra.mxu0 0
      %281 = vmatprep.subr.bf16.mxu0 0
      %282 = vmatpush1.bf16.xpose.msra.mxu0 0
      %283 = vmatprep.subr.bf16.mxu0 0
      %284 = vmatpush1.bf16.xpose.msra.mxu0 0
      %285 = vmatprep.subr.bf16.mxu0 0
      %286 = vmatpush1.bf16.xpose.msra.mxu0 0
      %287 = vmatprep.subr.bf16.mxu0 0
      %288 = vmatpush1.bf16.xpose.msra.mxu0 0
      %289 = vmatprep.subr.bf16.mxu0 0
      %290 = vmatpush1.bf16.xpose.msra.mxu0 0
      %291 = vmatprep.subr.bf16.mxu0 0
      %292 = vmatpush1.bf16.xpose.msra.mxu0 0
      %293 = vmatprep.subr.bf16.mxu0 0
      %294 = vmatpush1.bf16.xpose.msra.mxu0 0
      %295 = vmatprep.subr.bf16.mxu0 0
      %296 = vmatpush1.bf16.xpose.msra.mxu0 0
      %297 = vmatprep.subr.bf16.mxu0 0
      %298 = vmatpush1.bf16.xpose.msra.mxu0 0
      %299 = vmatprep.mubr.bf16.mxu0 0
      %300 = vmatmul.mubr.bf16.gmra.mrb[0].mxu0 %v262
      %v301 = vpop.f32.mrb[0].mxu0
      %v302 = vadd.f32 0.0, %v301
      %v303 = vpop.f32.mrb[0].mxu0
      %v304 = vpop.f32.mrb[0].mxu0
      %v305 = vpop.f32.mrb[0].mxu0
      %306 = vdwg.mxu0
      %v307 = vsel %vm260, %v302, -inf
      %308 = vmax.xlane.f32.xlu0 %v307
      %v309 = vpop.xlane.xlu0 %308
      %v310 = vsub.f32 %v302, %v309
      %v311 = vmul.f32 %v310, 1.442695
      %v312 = vpow.pop %v311
      %v313 = vsel %vm260, %v312, 0.0
      %314 = vadd.xlane.f32.xlu0 %v313
      %v315 = vpop.xlane.xlu0 %314
      %v316 = vrcp.pop %v315
      %v317 = vmul.f32 %v312, %v316
      %v318 = vpack.c.bf16 %v317, %v317
      %320 = vrot.lane.b32.xlu0 %v259, 96
      %v321 = vpop.permute.xlu0 %320
      %v323 = vsel %vm260, %v318, 0
      %vm325 = vcmask 1043456
      %v327 = vsel %vm325, %v321, 0
      %329 = vmatprep.subr.bf16.mxu0 0
      %330 = vmatpush1.bf16.msra.mxu0 %v327
      %331 = vmatprep.subr.bf16.mxu0 0
      %332 = vmatpush1.bf16.msra.mxu0 0
      %333 = vmatprep.subr.bf16.mxu0 0
      %334 = vmatpush1.bf16.msra.mxu0 0
      %335 = vmatprep.subr.bf16.mxu0 0
      %336 = vmatpush1.bf16.msra.mxu0 0
      %337 = vmatprep.subr.bf16.mxu0 0
      %338 = vmatpush1.bf16.msra.mxu0 0
      %339 = vmatprep.subr.bf16.mxu0 0
      %340 = vmatpush1.bf16.msra.mxu0 0
      %341 = vmatprep.subr.bf16.mxu0 0
      %342 = vmatpush1.bf16.msra.mxu0 0
      %343 = vmatprep.subr.bf16.mxu0 0
      %344 = vmatpush1.bf16.msra.mxu0 0
      %345 = vmatprep.subr.bf16.mxu0 0
      %346 = vmatpush1.bf16.msra.mxu0 0
      %347 = vmatprep.subr.bf16.mxu0 0
      %348 = vmatpush1.bf16.msra.mxu0 0
      %349 = vmatprep.subr.bf16.mxu0 0
      %350 = vmatpush1.bf16.msra.mxu0 0
      %351 = vmatprep.subr.bf16.mxu0 0
      %352 = vmatpush1.bf16.msra.mxu0 0
      %353 = vmatprep.subr.bf16.mxu0 0
      %354 = vmatpush1.bf16.msra.mxu0 0
      %355 = vmatprep.subr.bf16.mxu0 0
      %356 = vmatpush1.bf16.msra.mxu0 0
      %357 = vmatprep.subr.bf16.mxu0 0
      %358 = vmatpush1.bf16.msra.mxu0 0
      %359 = vmatprep.subr.bf16.mxu0 0
      %360 = vmatpush1.bf16.msra.mxu0 0
      %361 = vmatprep.mubr.bf16.mxu0 0
      %362 = vmatmul.mubr.bf16.gmra.mrb[0].mxu0 %v323
      %v363 = vpop.f32.mrb[0].mxu0
      %v364 = vadd.f32 0.0, %v363
      %v365 = vpop.f32.mrb[0].mxu0
      %v366 = vpop.f32.mrb[0].mxu0
      %v367 = vpop.f32.mrb[0].mxu0
      %368 = vdwg.mxu0
      %370 = vrot.lane.b32.xlu0 %v258, 120
      %v371 = vpop.permute.xlu0 %370
      %372 = vrot.lane.b32.xlu0 %v259, 120
      %v373 = vpop.permute.xlu0 %372
      %v375 = vsel %vm260, %v371, 0
      %v378 = vsel %vm260, %v373, 0
      %380 = vmatprep.subr.bf16.mxu0 0
      %381 = vmatpush1.bf16.xpose.msra.mxu0 %v378
      %382 = vmatprep.subr.bf16.mxu0 0
      %383 = vmatpush1.bf16.xpose.msra.mxu0 0
      %384 = vmatprep.subr.bf16.mxu0 0
      %385 = vmatpush1.bf16.xpose.msra.mxu0 0
      %386 = vmatprep.subr.bf16.mxu0 0
      %387 = vmatpush1.bf16.xpose.msra.mxu0 0
      %388 = vmatprep.subr.bf16.mxu0 0
      %389 = vmatpush1.bf16.xpose.msra.mxu0 0
      %390 = vmatprep.subr.bf16.mxu0 0
      %391 = vmatpush1.bf16.xpose.msra.mxu0 0
      %392 = vmatprep.subr.bf16.mxu0 0
      %393 = vmatpush1.bf16.xpose.msra.mxu0 0
      %394 = vmatprep.subr.bf16.mxu0 0
      %395 = vmatpush1.bf16.xpose.msra.mxu0 0
      %396 = vmatprep.subr.bf16.mxu0 0
      %397 = vmatpush1.bf16.xpose.msra.mxu0 0
      %398 = vmatprep.subr.bf16.mxu0 0
      %399 = vmatpush1.bf16.xpose.msra.mxu0 0
      %400 = vmatprep.subr.bf16.mxu0 0
      %401 = vmatpush1.bf16.xpose.msra.mxu0 0
      %402 = vmatprep.subr.bf16.mxu0 0
      %403 = vmatpush1.bf16.xpose.msra.mxu0 0
      %404 = vmatprep.subr.bf16.mxu0 0
      %405 = vmatpush1.bf16.xpose.msra.mxu0 0
      %406 = vmatprep.subr.bf16.mxu0 0
      %407 = vmatpush1.bf16.xpose.msra.mxu0 0
      %408 = vmatprep.subr.bf16.mxu0 0
      %409 = vmatpush1.bf16.xpose.msra.mxu0 0
      %410 = vmatprep.subr.bf16.mxu0 0
      %411 = vmatpush1.bf16.xpose.msra.mxu0 0
      %412 = vmatprep.mubr.bf16.mxu0 0
      %413 = vmatmul.mubr.bf16.gmra.mrb[0].mxu0 %v375
      %v414 = vpop.f32.mrb[0].mxu0
      %v415 = vadd.f32 0.0, %v414
      %v416 = vpop.f32.mrb[0].mxu0
      %v417 = vpop.f32.mrb[0].mxu0
      %v418 = vpop.f32.mrb[0].mxu0
      %419 = vdwg.mxu0
      %v420 = vsel %vm260, %v415, -inf
      %421 = vmax.xlane.f32.xlu0 %v420
      %v422 = vpop.xlane.xlu0 %421
      %v423 = vsub.f32 %v415, %v422
      %v424 = vmul.f32 %v423, 1.442695
      %v425 = vpow.pop %v424
      %v426 = vsel %vm260, %v425, 0.0
      %427 = vadd.xlane.f32.xlu0 %v426
      %v428 = vpop.xlane.xlu0 %427
      %v429 = vrcp.pop %v428
      %v430 = vmul.f32 %v425, %v429
      %v431 = vpack.c.bf16 %v430, %v430
      %432 = vrot.lane.b32.xlu0 %v259, 88
      %v433 = vpop.permute.xlu0 %432
      %v435 = vsel %vm260, %v431, 0
      %v438 = vsel %vm325, %v433, 0
      %440 = vmatprep.subr.bf16.mxu0 0
      %441 = vmatpush1.bf16.msra.mxu0 %v438
      %442 = vmatprep.subr.bf16.mxu0 0
      %443 = vmatpush1.bf16.msra.mxu0 0
      %444 = vmatprep.subr.bf16.mxu0 0
      %445 = vmatpush1.bf16.msra.mxu0 0
      %446 = vmatprep.subr.bf16.mxu0 0
      %447 = vmatpush1.bf16.msra.mxu0 0
      %448 = vmatprep.subr.bf16.mxu0 0
      %449 = vmatpush1.bf16.msra.mxu0 0
      %450 = vmatprep.subr.bf16.mxu0 0
      %451 = vmatpush1.bf16.msra.mxu0 0
      %452 = vmatprep.subr.bf16.mxu0 0
      %453 = vmatpush1.bf16.msra.mxu0 0
      %454 = vmatprep.subr.bf16.mxu0 0
      %455 = vmatpush1.bf16.msra.mxu0 0
      %456 = vmatprep.subr.bf16.mxu0 0
      %457 = vmatpush1.bf16.msra.mxu0 0
      %458 = vmatprep.subr.bf16.mxu0 0
      %459 = vmatpush1.bf16.msra.mxu0 0
      %460 = vmatprep.subr.bf16.mxu0 0
      %461 = vmatpush1.bf16.msra.mxu0 0
      %462 = vmatprep.subr.bf16.mxu0 0
      %463 = vmatpush1.bf16.msra.mxu0 0
      %464 = vmatprep.subr.bf16.mxu0 0
      %465 = vmatpush1.bf16.msra.mxu0 0
      %466 = vmatprep.subr.bf16.mxu0 0
      %467 = vmatpush1.bf16.msra.mxu0 0
      %468 = vmatprep.subr.bf16.mxu0 0
      %469 = vmatpush1.bf16.msra.mxu0 0
      %470 = vmatprep.subr.bf16.mxu0 0
      %471 = vmatpush1.bf16.msra.mxu0 0
      %472 = vmatprep.mubr.bf16.mxu0 0
      %473 = vmatmul.mubr.bf16.gmra.mrb[0].mxu0 %v435
      %v474 = vpop.f32.mrb[0].mxu0
      %v475 = vadd.f32 0.0, %v474
      %v476 = vpop.f32.mrb[0].mxu0
      %v477 = vpop.f32.mrb[0].mxu0
      %v478 = vpop.f32.mrb[0].mxu0
      %479 = vdwg.mxu0
      %480 = vrot.lane.b32.xlu0 %v258, 112
      %v481 = vpop.permute.xlu0 %480
      %482 = vrot.lane.b32.xlu0 %v259, 112
      %v483 = vpop.permute.xlu0 %482
      %v485 = vsel %vm260, %v481, 0
      %v488 = vsel %vm260, %v483, 0
      %490 = vmatprep.subr.bf16.mxu0 0
      %491 = vmatpush1.bf16.xpose.msra.mxu0 %v488
      %492 = vmatprep.subr.bf16.mxu0 0
      %493 = vmatpush1.bf16.xpose.msra.mxu0 0
      %494 = vmatprep.subr.bf16.mxu0 0
      %495 = vmatpush1.bf16.xpose.msra.mxu0 0
      %496 = vmatprep.subr.bf16.mxu0 0
      %497 = vmatpush1.bf16.xpose.msra.mxu0 0
      %498 = vmatprep.subr.bf16.mxu0 0
      %499 = vmatpush1.bf16.xpose.msra.mxu0 0
      %500 = vmatprep.subr.bf16.mxu0 0
      %501 = vmatpush1.bf16.xpose.msra.mxu0 0
      %502 = vmatprep.subr.bf16.mxu0 0
      %503 = vmatpush1.bf16.xpose.msra.mxu0 0
      %504 = vmatprep.subr.bf16.mxu0 0
      %505 = vmatpush1.bf16.xpose.msra.mxu0 0
      %506 = vmatprep.subr.bf16.mxu0 0
      %507 = vmatpush1.bf16.xpose.msra.mxu0 0
      %508 = vmatprep.subr.bf16.mxu0 0
      %509 = vmatpush1.bf16.xpose.msra.mxu0 0
      %510 = vmatprep.subr.bf16.mxu0 0
      %511 = vmatpush1.bf16.xpose.msra.mxu0 0
      %512 = vmatprep.subr.bf16.mxu0 0
      %513 = vmatpush1.bf16.xpose.msra.mxu0 0
      %514 = vmatprep.subr.bf16.mxu0 0
      %515 = vmatpush1.bf16.xpose.msra.mxu0 0
      %516 = vmatprep.subr.bf16.mxu0 0
      %517 = vmatpush1.bf16.xpose.msra.mxu0 0
      %518 = vmatprep.subr.bf16.mxu0 0
      %519 = vmatpush1.bf16.xpose.msra.mxu0 0
      %520 = vmatprep.subr.bf16.mxu0 0
      %521 = vmatpush1.bf16.xpose.msra.mxu0 0
      %522 = vmatprep.mubr.bf16.mxu0 0
      %523 = vmatmul.mubr.bf16.gmra.mrb[0].mxu0 %v485
      %v524 = vpop.f32.mrb[0].mxu0
      %v525 = vadd.f32 0.0, %v524
      %v526 = vpop.f32.mrb[0].mxu0
      %v527 = vpop.f32.mrb[0].mxu0
      %v528 = vpop.f32.mrb[0].mxu0
      %529 = vdwg.mxu0
      %v530 = vsel %vm260, %v525, -inf
      %531 = vmax.xlane.f32.xlu0 %v530
      %v532 = vpop.xlane.xlu0 %531
      %v533 = vsub.f32 %v525, %v532
      %v534 = vmul.f32 %v533, 1.442695
      %v535 = vpow.pop %v534
      %v536 = vsel %vm260, %v535, 0.0
      %537 = vadd.xlane.f32.xlu0 %v536
      %v538 = vpop.xlane.xlu0 %537
      %v539 = vrcp.pop %v538
      %v540 = vmul.f32 %v535, %v539
      %v541 = vpack.c.bf16 %v540, %v540
      %542 = vrot.lane.b32.xlu0 %v259, 80
      %v543 = vpop.permute.xlu0 %542
      %v545 = vsel %vm260, %v541, 0
      %v548 = vsel %vm325, %v543, 0
      %550 = vmatprep.subr.bf16.mxu0 0
      %551 = vmatpush1.bf16.msra.mxu0 %v548
      %552 = vmatprep.subr.bf16.mxu0 0
      %553 = vmatpush1.bf16.msra.mxu0 0
      %554 = vmatprep.subr.bf16.mxu0 0
      %555 = vmatpush1.bf16.msra.mxu0 0
      %556 = vmatprep.subr.bf16.mxu0 0
      %557 = vmatpush1.bf16.msra.mxu0 0
      %558 = vmatprep.subr.bf16.mxu0 0
      %559 = vmatpush1.bf16.msra.mxu0 0
      %560 = vmatprep.subr.bf16.mxu0 0
      %561 = vmatpush1.bf16.msra.mxu0 0
      %562 = vmatprep.subr.bf16.mxu0 0
      %563 = vmatpush1.bf16.msra.mxu0 0
      %564 = vmatprep.subr.bf16.mxu0 0
      %565 = vmatpush1.bf16.msra.mxu0 0
      %566 = vmatprep.subr.bf16.mxu0 0
      %567 = vmatpush1.bf16.msra.mxu0 0
      %568 = vmatprep.subr.bf16.mxu0 0
      %569 = vmatpush1.bf16.msra.mxu0 0
      %570 = vmatprep.subr.bf16.mxu0 0
      %571 = vmatpush1.bf16.msra.mxu0 0
      %572 = vmatprep.subr.bf16.mxu0 0
      %573 = vmatpush1.bf16.msra.mxu0 0
      %574 = vmatprep.subr.bf16.mxu0 0
      %575 = vmatpush1.bf16.msra.mxu0 0
      %576 = vmatprep.subr.bf16.mxu0 0
      %577 = vmatpush1.bf16.msra.mxu0 0
      %578 = vmatprep.subr.bf16.mxu0 0
      %579 = vmatpush1.bf16.msra.mxu0 0
      %580 = vmatprep.subr.bf16.mxu0 0
      %581 = vmatpush1.bf16.msra.mxu0 0
      %582 = vmatprep.mubr.bf16.mxu0 0
      %583 = vmatmul.mubr.bf16.gmra.mrb[0].mxu0 %v545
      %v584 = vpop.f32.mrb[0].mxu0
      %v585 = vadd.f32 0.0, %v584
      %v586 = vpop.f32.mrb[0].mxu0
      %v587 = vpop.f32.mrb[0].mxu0
      %v588 = vpop.f32.mrb[0].mxu0
      %589 = vdwg.mxu0
      %590 = vrot.lane.b32.xlu0 %v258, 104
      %v591 = vpop.permute.xlu0 %590
      %592 = vrot.lane.b32.xlu0 %v259, 104
      %v593 = vpop.permute.xlu0 %592
      %v595 = vsel %vm260, %v591, 0
      %v598 = vsel %vm260, %v593, 0
      %600 = vmatprep.subr.bf16.mxu0 0
      %601 = vmatpush1.bf16.xpose.msra.mxu0 %v598
      %602 = vmatprep.subr.bf16.mxu0 0
      %603 = vmatpush1.bf16.xpose.msra.mxu0 0
      %604 = vmatprep.subr.bf16.mxu0 0
      %605 = vmatpush1.bf16.xpose.msra.mxu0 0
      %606 = vmatprep.subr.bf16.mxu0 0
      %607 = vmatpush1.bf16.xpose.msra.mxu0 0
      %608 = vmatprep.subr.bf16.mxu0 0
      %609 = vmatpush1.bf16.xpose.msra.mxu0 0
      %610 = vmatprep.subr.bf16.mxu0 0
      %611 = vmatpush1.bf16.xpose.msra.mxu0 0
      %612 = vmatprep.subr.bf16.mxu0 0
      %613 = vmatpush1.bf16.xpose.msra.mxu0 0
      %614 = vmatprep.subr.bf16.mxu0 0
      %615 = vmatpush1.bf16.xpose.msra.mxu0 0
      %616 = vmatprep.subr.bf16.mxu0 0
      %617 = vmatpush1.bf16.xpose.msra.mxu0 0
      %618 = vmatprep.subr.bf16.mxu0 0
      %619 = vmatpush1.bf16.xpose.msra.mxu0 0
      %620 = vmatprep.subr.bf16.mxu0 0
      %621 = vmatpush1.bf16.xpose.msra.mxu0 0
      %622 = vmatprep.subr.bf16.mxu0 0
      %623 = vmatpush1.bf16.xpose.msra.mxu0 0
      %624 = vmatprep.subr.bf16.mxu0 0
      %625 = vmatpush1.bf16.xpose.msra.mxu0 0
      %626 = vmatprep.subr.bf16.mxu0 0
      %627 = vmatpush1.bf16.xpose.msra.mxu0 0
      %628 = vmatprep.subr.bf16.mxu0 0
      %629 = vmatpush1.bf16.xpose.msra.mxu0 0
      %630 = vmatprep.subr.bf16.mxu0 0
      %631 = vmatpush1.bf16.xpose.msra.mxu0 0
      %632 = vmatprep.mubr.bf16.mxu0 0
      %633 = vmatmul.mubr.bf16.gmra.mrb[0].mxu0 %v595
      %v634 = vpop.f32.mrb[0].mxu0
      %v635 = vadd.f32 0.0, %v634
      %v636 = vpop.f32.mrb[0].mxu0
      %v637 = vpop.f32.mrb[0].mxu0
      %v638 = vpop.f32.mrb[0].mxu0
      %639 = vdwg.mxu0
      %v640 = vsel %vm260, %v635, -inf
      %641 = vmax.xlane.f32.xlu0 %v640
      %v642 = vpop.xlane.xlu0 %641
      %v643 = vsub.f32 %v635, %v642
      %v644 = vmul.f32 %v643, 1.442695
      %v645 = vpow.pop %v644
      %v646 = vsel %vm260, %v645, 0.0
      %647 = vadd.xlane.f32.xlu0 %v646
      %v648 = vpop.xlane.xlu0 %647
      %v649 = vrcp.pop %v648
      %v650 = vmul.f32 %v645, %v649
      %v651 = vpack.c.bf16 %v650, %v650
      %652 = vrot.lane.b32.xlu0 %v259, 72
      %v653 = vpop.permute.xlu0 %652
      %v655 = vsel %vm260, %v651, 0
      %v658 = vsel %vm325, %v653, 0
      %660 = vmatprep.subr.bf16.mxu0 0
      %661 = vmatpush1.bf16.msra.mxu0 %v658
      %662 = vmatprep.subr.bf16.mxu0 0
      %663 = vmatpush1.bf16.msra.mxu0 0
      %664 = vmatprep.subr.bf16.mxu0 0
      %665 = vmatpush1.bf16.msra.mxu0 0
      %666 = vmatprep.subr.bf16.mxu0 0
      %667 = vmatpush1.bf16.msra.mxu0 0
      %668 = vmatprep.subr.bf16.mxu0 0
      %669 = vmatpush1.bf16.msra.mxu0 0
      %670 = vmatprep.subr.bf16.mxu0 0
      %671 = vmatpush1.bf16.msra.mxu0 0
      %672 = vmatprep.subr.bf16.mxu0 0
      %673 = vmatpush1.bf16.msra.mxu0 0
      %674 = vmatprep.subr.bf16.mxu0 0
      %675 = vmatpush1.bf16.msra.mxu0 0
      %676 = vmatprep.subr.bf16.mxu0 0
      %677 = vmatpush1.bf16.msra.mxu0 0
      %678 = vmatprep.subr.bf16.mxu0 0
      %679 = vmatpush1.bf16.msra.mxu0 0
      %680 = vmatprep.subr.bf16.mxu0 0
      %681 = vmatpush1.bf16.msra.mxu0 0
      %682 = vmatprep.subr.bf16.mxu0 0
      %683 = vmatpush1.bf16.msra.mxu0 0
      %684 = vmatprep.subr.bf16.mxu0 0
      %685 = vmatpush1.bf16.msra.mxu0 0
      %686 = vmatprep.subr.bf16.mxu0 0
      %687 = vmatpush1.bf16.msra.mxu0 0
      %688 = vmatprep.subr.bf16.mxu0 0
      %689 = vmatpush1.bf16.msra.mxu0 0
      %690 = vmatprep.subr.bf16.mxu0 0
      %691 = vmatpush1.bf16.msra.mxu0 0
      %692 = vmatprep.mubr.bf16.mxu0 0
      %693 = vmatmul.mubr.bf16.gmra.mrb[0].mxu0 %v655
      %v694 = vpop.f32.mrb[0].mxu0
      %v695 = vadd.f32 0.0, %v694
      %v696 = vpop.f32.mrb[0].mxu0
      %v697 = vpop.f32.mrb[0].mxu0
      %v698 = vpop.f32.mrb[0].mxu0
      %699 = vdwg.mxu0
      %701 = vrot.lane.b32.xlu0 %v475, 8
      %v702 = vpop.permute.xlu0 %701
      %705 = vrot.lane.b32.xlu0 %v585, 16
      %v706 = vpop.permute.xlu0 %705
      %709 = vrot.lane.b32.xlu0 %v695, 24
      %v710 = vpop.permute.xlu0 %709
      %v712 = vsel %vm260, %v364, %v702
      %vm713 = vcmask 130048
      %v714 = vsel %vm713, %v712, %v706
      %vm715 = vcmask 195584
      %v716 = vsel %vm715, %v714, %v710
      %v717 = vpack.c.bf16 %v716, %v716
      %v718 = vld [vmem:[%s2] sm:$0xf]
      %v719 = vld [vmem:[%s2 + $0x4] sm:$0xf]
      %v720 = vld [vmem:[%s2 + $0x8] sm:$0xf]
      %v721 = vld [vmem:[%s2 + $0xc] sm:$0xf]
      %v722 = vld [vmem:[%s3] sm:$0x1]
      %v724 = vlaneseq
      %v725 = vshrl.u32 %v724, 7
      %v726 = vsub.s32 0, %v725
      %v727 = vrot.slane %v722, %v726
      %v733 = vunpack.c.l.b16 %v718
      %v734 = vunpack.c.l.b16 %v719
      %v735 = vunpack.c.l.b16 %v720
      %v736 = vunpack.c.l.b16 %v721
      %v737 = vpack.c.b16 %v734, %v733
      %v738 = vpack.c.b16 %v736, %v735
      %vm741 = vcmask 261120
      %v743 = vsel %vm741, %v717, 0
      %745 = vmatprep.subr.bf16.mxu0 0
      %746 = vmatpush1.bf16.msra.mxu0 %v737
      %747 = vmatprep.subr.bf16.mxu0 0
      %748 = vmatpush1.bf16.msra.mxu0 %v738
      %749 = vmatprep.subr.bf16.mxu0 0
      %750 = vmatpush1.bf16.msra.mxu0 0
      %751 = vmatprep.subr.bf16.mxu0 0
      %752 = vmatpush1.bf16.msra.mxu0 0
      %753 = vmatprep.subr.bf16.mxu0 0
      %754 = vmatpush1.bf16.msra.mxu0 0
      %755 = vmatprep.subr.bf16.mxu0 0
      %756 = vmatpush1.bf16.msra.mxu0 0
      %757 = vmatprep.subr.bf16.mxu0 0
      %758 = vmatpush1.bf16.msra.mxu0 0
      %759 = vmatprep.subr.bf16.mxu0 0
      %760 = vmatpush1.bf16.msra.mxu0 0
      %761 = vmatprep.subr.bf16.mxu0 0
      %762 = vmatpush1.bf16.msra.mxu0 0
      %763 = vmatprep.subr.bf16.mxu0 0
      %764 = vmatpush1.bf16.msra.mxu0 0
      %765 = vmatprep.subr.bf16.mxu0 0
      %766 = vmatpush1.bf16.msra.mxu0 0
      %767 = vmatprep.subr.bf16.mxu0 0
      %768 = vmatpush1.bf16.msra.mxu0 0
      %769 = vmatprep.subr.bf16.mxu0 0
      %770 = vmatpush1.bf16.msra.mxu0 0
      %771 = vmatprep.subr.bf16.mxu0 0
      %772 = vmatpush1.bf16.msra.mxu0 0
      %773 = vmatprep.subr.bf16.mxu0 0
      %774 = vmatpush1.bf16.msra.mxu0 0
      %775 = vmatprep.subr.bf16.mxu0 0
      %776 = vmatpush1.bf16.msra.mxu0 0
      %777 = vmatprep.mubr.bf16.mxu0 0
      %778 = vmatmul.mubr.bf16.gmra.mrb[0].mxu0 %v743
      %v779 = vpop.f32.mrb[0].mxu0
      %v780 = vadd.f32 %v727, %v779
      %v781 = vpop.f32.mrb[0].mxu0
      %v782 = vpop.f32.mrb[0].mxu0
      %v783 = vpop.f32.mrb[0].mxu0
      %784 = vdwg.mxu0
      %v785 = vld [vmem:[%s249] sm:$0xff]
      %v786 = vadd.f32 %v780, %v785
      %787 = vst.msk [vmem:[%s253] sm:$0xff] %vm741, %v786
      %p788 = scmp.lt.s32.totalorder %s16, 1
      %s789 = scalar_select %p788, %s16, 1
      %s790 = smul.addr %s789, 8
      %s791 = scalar_lea.vmem %s5, %s790
      // Predicated region
      $region41: #{decoder_layer.11} parent=39 // pred_check
        %p792 = pneg %p154
      $region42: #{decoder_layer.11} parent=39 // pred_check_branch
        %794 = sbr.rel (%p792) target = $region44
      $region43: #{decoder_layer.11} parent=39 // pred_region
        _
      $region44: #{decoder_layer.11} parent=39 // pred_fallthru
        _
    $region40: #{decoder_layer.11} parent=5 // pred_fallthru
      _
    %p795 = scmp.le.s32.totalorder 2, %s11
    // Predicated region
    $region45: #{decoder_layer.11} parent=5 // pred_check
      %p796 = pneg %p795
    $region46: #{decoder_layer.11} parent=5 // pred_check_branch
      %798 = sbr.rel (%p796) target = $region48
    $region47: #{decoder_layer.11} parent=5 // pred_region
      %s799 = ssub.s32 %s11, 2
      // Predicated region
      $region49: #{decoder_layer.11} parent=47 // pred_check
        %p800 = pneg %p160
      $region50: #{decoder_layer.11} parent=47 // pred_check_branch
        %802 = sbr.rel (%p800) target = $region52
      $region51: #{decoder_layer.11} parent=47 // pred_region
        %p803 = scmp.lt.s32.totalorder %s17, 1
        %s804 = scalar_select %p803, %s17, 1
        %s805 = smul.addr %s804, 8
        %s806 = scalar_lea.vmem %s5, %s805
      $region52: #{decoder_layer.11} parent=47 // pred_fallthru
        _
    $region48: #{decoder_layer.11} parent=5 // pred_fallthru
      _
  $region6: #{decoder_layer.11} parent=0 // loop_footer
    %s15 = sadd.s32 1, %s11
  $region7: #{decoder_layer.11} parent=0 // loop_footer_branch
    %10 = sbr.rel target = $region3
  $region8: #{decoder_layer.11} parent=0 // loop_exit
    _

</llo_original>
